<compile_context>
chip_gen: v5e
topology: v5e:2x2
jax: 0.10.0
libtpu: 0.0.40
codegen_flags: <defaults>
</compile_context>

<pallas_src>
import jax
import jax.numpy as jnp
from jax import lax
from jax.experimental import pallas as pl
from jax.experimental.pallas import tpu as pltpu

I_DIM = 3
I_PAD = 8           # K of input projection padded 3 -> 8 (sublane-full operand)
H_DIM = 32
T_LEN = 30          # fc1 expects 30 * 32 features -> sequence length must be 30
FC1_OUT = 32
FC2_OUT = 1


def _lstm_kernel(x_ref, wih_ref, whh_ref, b_ref, scale_ref, shift_ref,
                 w1_ref, b1_ref, w2_ref, b2_ref, out_ref, gx_sc):
    H = H_DIM
    T = T_LEN
    B = out_ref.shape[0]

    # ---- hoisted input projection: one matmul + bias for all timesteps -------
    # (T*B, 8) @ (8, 4H) + (1, 4H) -> (T*B, 4H), entirely off the serial chain.
    gx_sc[...] = (jnp.dot(x_ref[...], wih_ref[...],
                          preferred_element_type=jnp.float32)
                  + b_ref[...])

    # ---- loop-invariant operands hoisted out of the unrolled recurrence ------
    whh = whh_ref[...]                                           # (H, 4H)
    scale = jnp.broadcast_to(scale_ref[...], (B, 4 * H))         # {.5,.5,1,.5}
    shift = jnp.broadcast_to(shift_ref[...], (B, 4 * H))         # {.5,.5,0,.5}

    # ---- recurrence: h/c/acc carried as values, T static -> fully unrolled ---
    h = jnp.zeros((B, H), jnp.float32)
    c = jnp.zeros((B, H), jnp.float32)
    acc = jnp.zeros((B, FC1_OUT), jnp.float32)                   # fused fc1 acc

    # TODO(synk): bundle-audit whether Mosaic keeps W_hh resident in the MXU across
    # the unrolled steps; if not, drive it weight-stationary with
    # pltpu.matmul_push_rhs / matmul_acc_lhs / matmul_pop (and route the fused fc1
    # pushes to the other MXU).  Also audit vreg spills; fallback is
    # lax.fori_loop(..., unroll=4) carrying (h, c, acc).
    for t in range(T):                                           # static unroll
        gates = (gx_sc[t * B:(t + 1) * B, :]
                 + jnp.dot(h, whh, preferred_element_type=jnp.float32))  # (B, 4H)
        # ONE full-width EUP push: i/f/o columns were pre-scaled by 0.5, so
        # sigmoid(g) == 0.5*tanh(g/2) + 0.5 falls out of a lane-constant FMA.
        y = jnp.tanh(gates)
        act = y * scale + shift            # (i_sig, f_sig, g_tanh, o_sig)
        c = act[:, 1 * H:2 * H] * c + act[:, 0 * H:1 * H] * act[:, 2 * H:3 * H]
        h = act[:, 3 * H:4 * H] * jnp.tanh(c)
        # fused fc1 contribution: depends only on h, off the serial chain.
        acc = acc + jnp.dot(h, w1_ref[t], preferred_element_type=jnp.float32)

    # ---- fc1 bias + ReLU + fc2 ------------------------------------------------
    z1 = jnp.maximum(acc + b1_ref[...], 0.0)
    out_ref[...] = (jnp.dot(z1, w2_ref[...],
                            preferred_element_type=jnp.float32)
                    + b2_ref[...])                               # (B, 1)


def _full_spec(shape):
    # gridless call -> index_map takes no args, block == whole array
    return pl.BlockSpec(shape, lambda: tuple(0 for _ in shape))


def lstm_forward(x_btI, params):
    """x_btI: (B, T, I) float32, batch_first like PyTorch. Returns (B, 1)."""
    B, T, I = x_btI.shape
    assert T == T_LEN and I == I_DIM

    w_ih, w_hh, b_ih, b_hh, w1, b1, w2, b2 = params
    H = H_DIM

    # sigmoid-via-tanh: pre-scale i/f/o gate columns by 0.5 (one-time weight prep)
    col_scale = jnp.concatenate([jnp.full((H,), 0.5), jnp.full((H,), 0.5),
                                 jnp.ones((H,)), jnp.full((H,), 0.5)]
                                ).astype(jnp.float32)                      # (4H,)
    act_shift = jnp.concatenate([jnp.full((H,), 0.5), jnp.full((H,), 0.5),
                                 jnp.zeros((H,)), jnp.full((H,), 0.5)]
                                ).astype(jnp.float32)                      # (4H,)

    wih_t = (w_ih.T * col_scale[None, :]).astype(jnp.float32)             # (I, 4H)
    whh_t = (w_hh.T * col_scale[None, :]).astype(jnp.float32)             # (H, 4H)
    bias = ((b_ih + b_hh) * col_scale).reshape(1, 4 * H).astype(jnp.float32)

    # time-major flatten + pad the K=3 projection operands to K=8
    x_2d = jnp.transpose(x_btI, (1, 0, 2)).reshape(T * B, I).astype(jnp.float32)
    x_p = jnp.zeros((T * B, I_PAD), jnp.float32).at[:, :I].set(x_2d)
    wih_p = jnp.zeros((I_PAD, 4 * H), jnp.float32).at[:I, :].set(wih_t)

    w1_r = jnp.transpose(w1.reshape(FC1_OUT, T_LEN, H_DIM),
                         (1, 2, 0)).astype(jnp.float32)                    # (T, H, 32)
    b1_r = b1.reshape(1, FC1_OUT).astype(jnp.float32)                      # (1, 32)
    w2_t = w2.T.astype(jnp.float32)                                        # (32, 1)
    b2_r = b2.reshape(1, FC2_OUT).astype(jnp.float32)                      # (1, 1)

    operands = (x_p, wih_p, whh_t, bias,
                col_scale.reshape(1, 4 * H), act_shift.reshape(1, 4 * H),
                w1_r, b1_r, w2_t, b2_r)

    # Note: for real serving batches (B >= 16) on v7x, add a leading batch grid
    # axis with dimension_semantics=("parallel",) (per-tile gx scratch) to use
    # both TensorCores; at this size a grid would only add pipeline overhead.
    return pl.pallas_call(
        _lstm_kernel,
        out_shape=jax.ShapeDtypeStruct((B, FC2_OUT), jnp.float32),
        in_specs=[_full_spec(a.shape) for a in operands],
        out_specs=_full_spec((B, FC2_OUT)),
        scratch_shapes=[
            pltpu.VMEM((T_LEN * B, 4 * H_DIM), jnp.float32),   # hoisted x-projection
        ],
    )(*operands)


def lstm_forward_ref(x_btI, params):
    """Pure-JAX reference mirroring the PyTorch module (original weights)."""
    w_ih, w_hh, b_ih, b_hh, w1, b1, w2, b2 = params
    B, T, _ = x_btI.shape
    H = H_DIM

    def cell(carry, x_t):
        h, c = carry
        g = x_t @ w_ih.T + b_ih + h @ w_hh.T + b_hh
        i = jax.nn.sigmoid(g[:, 0 * H:1 * H])
        f = jax.nn.sigmoid(g[:, 1 * H:2 * H])
        gg = jnp.tanh(g[:, 2 * H:3 * H])
        o = jax.nn.sigmoid(g[:, 3 * H:4 * H])
        c = f * c + i * gg
        h = o * jnp.tanh(c)
        return (h, c), h

    h0 = jnp.zeros((B, H), jnp.float32)
    (_, _), hs = lax.scan(cell, (h0, h0), jnp.transpose(x_btI, (1, 0, 2)))
    feats = jnp.transpose(hs, (1, 0, 2)).reshape(B, T * H)
    z1 = jnp.maximum(feats @ w1.T + b1, 0.0)
    return z1 @ w2.T + b2


def init_params(key):
    ks = jax.random.split(key, 8)

    def u(k, shape, bound):
        return jax.random.uniform(k, shape, jnp.float32, -bound, bound)

    kb = 1.0 / jnp.sqrt(H_DIM)
    w_ih = u(ks[0], (4 * H_DIM, I_DIM), kb)
    w_hh = u(ks[1], (4 * H_DIM, H_DIM), kb)
    b_ih = u(ks[2], (4 * H_DIM,), kb)
    b_hh = u(ks[3], (4 * H_DIM,), kb)
    k1 = 1.0 / jnp.sqrt(T_LEN * H_DIM)
    w1 = u(ks[4], (FC1_OUT, T_LEN * H_DIM), k1)
    b1 = u(ks[5], (FC1_OUT,), k1)
    k2 = 1.0 / jnp.sqrt(FC1_OUT)
    w2 = u(ks[6], (FC2_OUT, FC1_OUT), k2)
    b2 = u(ks[7], (FC2_OUT,), k2)
    return (w_ih, w_hh, b_ih, b_hh, w1, b1, w2, b2)


if __name__ == "__main__":
    key = jax.random.PRNGKey(0)
    kp, kx = jax.random.split(key)
    params = init_params(kp)

    B = 8   # sublane-full batch; kernel is generic in B (keep B a multiple of 8)
    x = jax.random.normal(kx, (B, T_LEN, I_DIM), jnp.float32)

    out = jax.block_until_ready(lstm_forward(x, params))
    ref = jax.block_until_ready(lstm_forward_ref(x, params))

    assert out.shape == (B, 1), out.shape
    assert jnp.allclose(out, ref, atol=1e-4, rtol=1e-4), (out, ref)
    print("KERNEL_OK")
</pallas_src>

<mosaic_0001>
module attributes {stable_mosaic.version = 11 : i64} {
  func.func @_lstm_kernel(%arg0: memref<240x8xf32, #tpu.memory_space<vmem>>, %arg1: memref<8x128xf32, #tpu.memory_space<vmem>>, %arg2: memref<32x128xf32, #tpu.memory_space<vmem>>, %arg3: memref<1x128xf32, #tpu.memory_space<vmem>>, %arg4: memref<1x128xf32, #tpu.memory_space<vmem>>, %arg5: memref<1x128xf32, #tpu.memory_space<vmem>>, %arg6: memref<30x32x32xf32, #tpu.memory_space<vmem>>, %arg7: memref<1x32xf32, #tpu.memory_space<vmem>>, %arg8: memref<32x1xf32, #tpu.memory_space<vmem>>, %arg9: memref<1x1xf32, #tpu.memory_space<vmem>>, %arg10: memref<8x1xf32, #tpu.memory_space<vmem>>, %arg11: memref<240x128xf32, #tpu.memory_space<vmem>>) attributes {dimension_semantics = [], scalar_prefetch = 0 : i64, scratch_operands = 1 : i64, tpu.core_type = #tpu.core_type<tc>} {
    %c0 = arith.constant 0 : index
    %c0_0 = arith.constant 0 : index
    %0 = vector.load %arg0[%c0, %c0_0] : memref<240x8xf32, #tpu.memory_space<vmem>>, vector<240x8xf32>
    %c0_1 = arith.constant 0 : index
    %c0_2 = arith.constant 0 : index
    %1 = vector.load %arg1[%c0_1, %c0_2] : memref<8x128xf32, #tpu.memory_space<vmem>>, vector<8x128xf32>
    %cst = arith.constant dense<0.000000e+00> : vector<240x128xf32>
    %2 = tpu.matmul %0, %1, %cst {dimension_numbers = #tpu.dot_dimension_numbers<[1], [0], [0], [1], [0, 0, 1, 1], [], []>} : vector<240x8xf32>, vector<8x128xf32>, vector<240x128xf32> -> vector<240x128xf32>
    %c0_3 = arith.constant 0 : index
    %c0_4 = arith.constant 0 : index
    %3 = vector.load %arg3[%c0_3, %c0_4] : memref<1x128xf32, #tpu.memory_space<vmem>>, vector<1x128xf32>
    %4 = vector.broadcast %3 : vector<1x128xf32> to vector<240x128xf32>
    %5 = arith.addf %2, %4 : vector<240x128xf32>
    %c0_5 = arith.constant 0 : index
    %c0_6 = arith.constant 0 : index
    %6 = vector.load %arg11[%c0_5, %c0_6] : memref<240x128xf32, #tpu.memory_space<vmem>>, vector<240x128xf32>
    tpu.vector_store %arg11[%c0_5, %c0_6], %5 {strides = array<i32>} : memref<240x128xf32, #tpu.memory_space<vmem>>, vector<240x128xf32>,
    %c0_7 = arith.constant 0 : index
    %c0_8 = arith.constant 0 : index
    %7 = vector.load %arg2[%c0_7, %c0_8] : memref<32x128xf32, #tpu.memory_space<vmem>>, vector<32x128xf32>
    %c0_9 = arith.constant 0 : index
    %c0_10 = arith.constant 0 : index
    %8 = vector.load %arg4[%c0_9, %c0_10] : memref<1x128xf32, #tpu.memory_space<vmem>>, vector<1x128xf32>
    %9 = vector.shape_cast %8 : vector<1x128xf32> to vector<1x128xf32>
    %10 = vector.broadcast %9 : vector<1x128xf32> to vector<8x128xf32>
    %c0_11 = arith.constant 0 : index
    %c0_12 = arith.constant 0 : index
    %11 = vector.load %arg5[%c0_11, %c0_12] : memref<1x128xf32, #tpu.memory_space<vmem>>, vector<1x128xf32>
    %12 = vector.shape_cast %11 : vector<1x128xf32> to vector<1x128xf32>
    %13 = vector.broadcast %12 : vector<1x128xf32> to vector<8x128xf32>
    %cst_13 = arith.constant 0.000000e+00 : f32
    %14 = vector.broadcast %cst_13 : f32 to vector<8x32xf32>
    %cst_14 = arith.constant 0.000000e+00 : f32
    %15 = vector.broadcast %cst_14 : f32 to vector<8x32xf32>
    %cst_15 = arith.constant 0.000000e+00 : f32
    %16 = vector.broadcast %cst_15 : f32 to vector<8x32xf32>
    %c0_16 = arith.constant 0 : index
    %c0_17 = arith.constant 0 : index
    %17 = vector.load %arg11[%c0_16, %c0_17] : memref<240x128xf32, #tpu.memory_space<vmem>>, vector<8x128xf32>
    %cst_18 = arith.constant dense<0.000000e+00> : vector<8x128xf32>
    %18 = tpu.matmul %14, %7, %cst_18 {dimension_numbers = #tpu.dot_dimension_numbers<[1], [0], [0], [1], [0, 0, 1, 1], [], []>} : vector<8x32xf32>, vector<32x128xf32>, vector<8x128xf32> -> vector<8x128xf32>
    %19 = arith.addf %17, %18 : vector<8x128xf32>
    %20 = math.tanh %19 : vector<8x128xf32>
    %21 = arith.mulf %20, %10 : vector<8x128xf32>
    %22 = arith.addf %21, %13 : vector<8x128xf32>
    %23 = vector.extract_strided_slice %22 {offsets = [0, 32], sizes = [8, 32], strides = [1, 1]} : vector<8x128xf32> to vector<8x32xf32>
    %24 = arith.mulf %23, %15 : vector<8x32xf32>
    %25 = vector.extract_strided_slice %22 {offsets = [0, 0], sizes = [8, 32], strides = [1, 1]} : vector<8x128xf32> to vector<8x32xf32>
    %26 = vector.extract_strided_slice %22 {offsets = [0, 64], sizes = [8, 32], strides = [1, 1]} : vector<8x128xf32> to vector<8x32xf32>
    %27 = arith.mulf %25, %26 : vector<8x32xf32>
    %28 = arith.addf %24, %27 : vector<8x32xf32>
    %29 = vector.extract_strided_slice %22 {offsets = [0, 96], sizes = [8, 32], strides = [1, 1]} : vector<8x128xf32> to vector<8x32xf32>
    %30 = math.tanh %28 : vector<8x32xf32>
    %31 = arith.mulf %29, %30 : vector<8x32xf32>
    %c0_19 = arith.constant 0 : index
    %c0_20 = arith.constant 0 : index
    %c0_21 = arith.constant 0 : index
    %32 = vector.load %arg6[%c0_19, %c0_20, %c0_21] : memref<30x32x32xf32, #tpu.memory_space<vmem>>, vector<1x32x32xf32>
    %33 = vector.shape_cast %32 : vector<1x32x32xf32> to vector<32x32xf32>
    %cst_22 = arith.constant dense<0.000000e+00> : vector<8x32xf32>
    %34 = tpu.matmul %31, %33, %cst_22 {dimension_numbers = #tpu.dot_dimension_numbers<[1], [0], [0], [1], [0, 0, 1, 1], [], []>} : vector<8x32xf32>, vector<32x32xf32>, vector<8x32xf32> -> vector<8x32xf32>
    %35 = arith.addf %16, %34 : vector<8x32xf32>
    %c8 = arith.constant 8 : index
    %c0_23 = arith.constant 0 : index
    %36 = vector.load %arg11[%c8, %c0_23] : memref<240x128xf32, #tpu.memory_space<vmem>>, vector<8x128xf32>
    %cst_24 = arith.constant dense<0.000000e+00> : vector<8x128xf32>
    %37 = tpu.matmul %31, %7, %cst_24 {dimension_numbers = #tpu.dot_dimension_numbers<[1], [0], [0], [1], [0, 0, 1, 1], [], []>} : vector<8x32xf32>, vector<32x128xf32>, vector<8x128xf32> -> vector<8x128xf32>
    %38 = arith.addf %36, %37 : vector<8x128xf32>
    %39 = math.tanh %38 : vector<8x128xf32>
    %40 = arith.mulf %39, %10 : vector<8x128xf32>
    %41 = arith.addf %40, %13 : vector<8x128xf32>
    %42 = vector.extract_strided_slice %41 {offsets = [0, 32], sizes = [8, 32], strides = [1, 1]} : vector<8x128xf32> to vector<8x32xf32>
    %43 = arith.mulf %42, %28 : vector<8x32xf32>
    %44 = vector.extract_strided_slice %41 {offsets = [0, 0], sizes = [8, 32], strides = [1, 1]} : vector<8x128xf32> to vector<8x32xf32>
    %45 = vector.extract_strided_slice %41 {offsets = [0, 64], sizes = [8, 32], strides = [1, 1]} : vector<8x128xf32> to vector<8x32xf32>
    %46 = arith.mulf %44, %45 : vector<8x32xf32>
    %47 = arith.addf %43, %46 : vector<8x32xf32>
    %48 = vector.extract_strided_slice %41 {offsets = [0, 96], sizes = [8, 32], strides = [1, 1]} : vector<8x128xf32> to vector<8x32xf32>
    %49 = math.tanh %47 : vector<8x32xf32>
    %50 = arith.mulf %48, %49 : vector<8x32xf32>
    %c1 = arith.constant 1 : index
    %c0_25 = arith.constant 0 : index
    %c0_26 = arith.constant 0 : index
    %51 = vector.load %arg6[%c1, %c0_25, %c0_26] : memref<30x32x32xf32, #tpu.memory_space<vmem>>, vector<1x32x32xf32>
    %52 = vector.shape_cast %51 : vector<1x32x32xf32> to vector<32x32xf32>
    %cst_27 = arith.constant dense<0.000000e+00> : vector<8x32xf32>
    %53 = tpu.matmul %50, %52, %cst_27 {dimension_numbers = #tpu.dot_dimension_numbers<[1], [0], [0], [1], [0, 0, 1, 1], [], []>} : vector<8x32xf32>, vector<32x32xf32>, vector<8x32xf32> -> vector<8x32xf32>
    %54 = arith.addf %35, %53 : vector<8x32xf32>
    %c16 = arith.constant 16 : index
    %c0_28 = arith.constant 0 : index
    %55 = vector.load %arg11[%c16, %c0_28] : memref<240x128xf32, #tpu.memory_space<vmem>>, vector<8x128xf32>
    %cst_29 = arith.constant dense<0.000000e+00> : vector<8x128xf32>
    %56 = tpu.matmul %50, %7, %cst_29 {dimension_numbers = #tpu.dot_dimension_numbers<[1], [0], [0], [1], [0, 0, 1, 1], [], []>} : vector<8x32xf32>, vector<32x128xf32>, vector<8x128xf32> -> vector<8x128xf32>
    %57 = arith.addf %55, %56 : vector<8x128xf32>
    %58 = math.tanh %57 : vector<8x128xf32>
    %59 = arith.mulf %58, %10 : vector<8x128xf32>
    %60 = arith.addf %59, %13 : vector<8x128xf32>
    %61 = vector.extract_strided_slice %60 {offsets = [0, 32], sizes = [8, 32], strides = [1, 1]} : vector<8x128xf32> to vector<8x32xf32>
    %62 = arith.mulf %61, %47 : vector<8x32xf32>
    %63 = vector.extract_strided_slice %60 {offsets = [0, 0], sizes = [8, 32], strides = [1, 1]} : vector<8x128xf32> to vector<8x32xf32>
    %64 = vector.extract_strided_slice %60 {offsets = [0, 64], sizes = [8, 32], strides = [1, 1]} : vector<8x128xf32> to vector<8x32xf32>
    %65 = arith.mulf %63, %64 : vector<8x32xf32>
    %66 = arith.addf %62, %65 : vector<8x32xf32>
    %67 = vector.extract_strided_slice %60 {offsets = [0, 96], sizes = [8, 32], strides = [1, 1]} : vector<8x128xf32> to vector<8x32xf32>
    %68 = math.tanh %66 : vector<8x32xf32>
    %69 = arith.mulf %67, %68 : vector<8x32xf32>
    %c2 = arith.constant 2 : index
    %c0_30 = arith.constant 0 : index
    %c0_31 = arith.constant 0 : index
    %70 = vector.load %arg6[%c2, %c0_30, %c0_31] : memref<30x32x32xf32, #tpu.memory_space<vmem>>, vector<1x32x32xf32>
    %71 = vector.shape_cast %70 : vector<1x32x32xf32> to vector<32x32xf32>
    %cst_32 = arith.constant dense<0.000000e+00> : vector<8x32xf32>
    %72 = tpu.matmul %69, %71, %cst_32 {dimension_numbers = #tpu.dot_dimension_numbers<[1], [0], [0], [1], [0, 0, 1, 1], [], []>} : vector<8x32xf32>, vector<32x32xf32>, vector<8x32xf32> -> vector<8x32xf32>
    %73 = arith.addf %54, %72 : vector<8x32xf32>
    %c24 = arith.constant 24 : index
    %c0_33 = arith.constant 0 : index
    %74 = vector.load %arg11[%c24, %c0_33] : memref<240x128xf32, #tpu.memory_space<vmem>>, vector<8x128xf32>
    %cst_34 = arith.constant dense<0.000000e+00> : vector<8x128xf32>
    %75 = tpu.matmul %69, %7, %cst_34 {dimension_numbers = #tpu.dot_dimension_numbers<[1], [0], [0], [1], [0, 0, 1, 1], [], []>} : vector<8x32xf32>, vector<32x128xf32>, vector<8x128xf32> -> vector<8x128xf32>
    %76 = arith.addf %74, %75 : vector<8x128xf32>
    %77 = math.tanh %76 : vector<8x128xf32>
    %78 = arith.mulf %77, %10 : vector<8x128xf32>
    %79 = arith.addf %78, %13 : vector<8x128xf32>
    %80 = vector.extract_strided_slice %79 {offsets = [0, 32], sizes = [8, 32], strides = [1, 1]} : vector<8x128xf32> to vector<8x32xf32>
    %81 = arith.mulf %80, %66 : vector<8x32xf32>
    %82 = vector.extract_strided_slice %79 {offsets = [0, 0], sizes = [8, 32], strides = [1, 1]} : vector<8x128xf32> to vector<8x32xf32>
    %83 = vector.extract_strided_slice %79 {offsets = [0, 64], sizes = [8, 32], strides = [1, 1]} : vector<8x128xf32> to vector<8x32xf32>
    %84 = arith.mulf %82, %83 : vector<8x32xf32>
    %85 = arith.addf %81, %84 : vector<8x32xf32>
    %86 = vector.extract_strided_slice %79 {offsets = [0, 96], sizes = [8, 32], strides = [1, 1]} : vector<8x128xf32> to vector<8x32xf32>
    %87 = math.tanh %85 : vector<8x32xf32>
    %88 = arith.mulf %86, %87 : vector<8x32xf32>
    %c3 = arith.constant 3 : index
    %c0_35 = arith.constant 0 : index
    %c0_36 = arith.constant 0 : index
    %89 = vector.load %arg6[%c3, %c0_35, %c0_36] : memref<30x32x32xf32, #tpu.memory_space<vmem>>, vector<1x32x32xf32>
    %90 = vector.shape_cast %89 : vector<1x32x32xf32> to vector<32x32xf32>
    %cst_37 = arith.constant dense<0.000000e+00> : vector<8x32xf32>
    %91 = tpu.matmul %88, %90, %cst_37 {dimension_numbers = #tpu.dot_dimension_numbers<[1], [0], [0], [1], [0, 0, 1, 1], [], []>} : vector<8x32xf32>, vector<32x32xf32>, vector<8x32xf32> -> vector<8x32xf32>
    %92 = arith.addf %73, %91 : vector<8x32xf32>
    %c32 = arith.constant 32 : index
    %c0_38 = arith.constant 0 : index
    %93 = vector.load %arg11[%c32, %c0_38] : memref<240x128xf32, #tpu.memory_space<vmem>>, vector<8x128xf32>
    %cst_39 = arith.constant dense<0.000000e+00> : vector<8x128xf32>
    %94 = tpu.matmul %88, %7, %cst_39 {dimension_numbers = #tpu.dot_dimension_numbers<[1], [0], [0], [1], [0, 0, 1, 1], [], []>} : vector<8x32xf32>, vector<32x128xf32>, vector<8x128xf32> -> vector<8x128xf32>
    %95 = arith.addf %93, %94 : vector<8x128xf32>
    %96 = math.tanh %95 : vector<8x128xf32>
    %97 = arith.mulf %96, %10 : vector<8x128xf32>
    %98 = arith.addf %97, %13 : vector<8x128xf32>
    %99 = vector.extract_strided_slice %98 {offsets = [0, 32], sizes = [8, 32], strides = [1, 1]} : vector<8x128xf32> to vector<8x32xf32>
    %100 = arith.mulf %99, %85 : vector<8x32xf32>
    %101 = vector.extract_strided_slice %98 {offsets = [0, 0], sizes = [8, 32], strides = [1, 1]} : vector<8x128xf32> to vector<8x32xf32>
    %102 = vector.extract_strided_slice %98 {offsets = [0, 64], sizes = [8, 32], strides = [1, 1]} : vector<8x128xf32> to vector<8x32xf32>
    %103 = arith.mulf %101, %102 : vector<8x32xf32>
    %104 = arith.addf %100, %103 : vector<8x32xf32>
    %105 = vector.extract_strided_slice %98 {offsets = [0, 96], sizes = [8, 32], strides = [1, 1]} : vector<8x128xf32> to vector<8x32xf32>
    %106 = math.tanh %104 : vector<8x32xf32>
    %107 = arith.mulf %105, %106 : vector<8x32xf32>
    %c4 = arith.constant 4 : index
    %c0_40 = arith.constant 0 : index
    %c0_41 = arith.constant 0 : index
    %108 = vector.load %arg6[%c4, %c0_40, %c0_41] : memref<30x32x32xf32, #tpu.memory_space<vmem>>, vector<1x32x32xf32>
    %109 = vector.shape_cast %108 : vector<1x32x32xf32> to vector<32x32xf32>
    %cst_42 = arith.constant dense<0.000000e+00> : vector<8x32xf32>
    %110 = tpu.matmul %107, %109, %cst_42 {dimension_numbers = #tpu.dot_dimension_numbers<[1], [0], [0], [1], [0, 0, 1, 1], [], []>} : vector<8x32xf32>, vector<32x32xf32>, vector<8x32xf32> -> vector<8x32xf32>
    %111 = arith.addf %92, %110 : vector<8x32xf32>
    %c40 = arith.constant 40 : index
    %c0_43 = arith.constant 0 : index
    %112 = vector.load %arg11[%c40, %c0_43] : memref<240x128xf32, #tpu.memory_space<vmem>>, vector<8x128xf32>
    %cst_44 = arith.constant dense<0.000000e+00> : vector<8x128xf32>
    %113 = tpu.matmul %107, %7, %cst_44 {dimension_numbers = #tpu.dot_dimension_numbers<[1], [0], [0], [1], [0, 0, 1, 1], [], []>} : vector<8x32xf32>, vector<32x128xf32>, vector<8x128xf32> -> vector<8x128xf32>
    %114 = arith.addf %112, %113 : vector<8x128xf32>
    %115 = math.tanh %114 : vector<8x128xf32>
    %116 = arith.mulf %115, %10 : vector<8x128xf32>
    %117 = arith.addf %116, %13 : vector<8x128xf32>
    %118 = vector.extract_strided_slice %117 {offsets = [0, 32], sizes = [8, 32], strides = [1, 1]} : vector<8x128xf32> to vector<8x32xf32>
    %119 = arith.mulf %118, %104 : vector<8x32xf32>
    %120 = vector.extract_strided_slice %117 {offsets = [0, 0], sizes = [8, 32], strides = [1, 1]} : vector<8x128xf32> to vector<8x32xf32>
    %121 = vector.extract_strided_slice %117 {offsets = [0, 64], sizes = [8, 32], strides = [1, 1]} : vector<8x128xf32> to vector<8x32xf32>
    %122 = arith.mulf %120, %121 : vector<8x32xf32>
    %123 = arith.addf %119, %122 : vector<8x32xf32>
    %124 = vector.extract_strided_slice %117 {offsets = [0, 96], sizes = [8, 32], strides = [1, 1]} : vector<8x128xf32> to vector<8x32xf32>
    %125 = math.tanh %123 : vector<8x32xf32>
    %126 = arith.mulf %124, %125 : vector<8x32xf32>
    %c5 = arith.constant 5 : index
    %c0_45 = arith.constant 0 : index
    %c0_46 = arith.constant 0 : index
    %127 = vector.load %arg6[%c5, %c0_45, %c0_46] : memref<30x32x32xf32, #tpu.memory_space<vmem>>, vector<1x32x32xf32>
    %128 = vector.shape_cast %127 : vector<1x32x32xf32> to vector<32x32xf32>
    %cst_47 = arith.constant dense<0.000000e+00> : vector<8x32xf32>
    %129 = tpu.matmul %126, %128, %cst_47 {dimension_numbers = #tpu.dot_dimension_numbers<[1], [0], [0], [1], [0, 0, 1, 1], [], []>} : vector<8x32xf32>, vector<32x32xf32>, vector<8x32xf32> -> vector<8x32xf32>
    %130 = arith.addf %111, %129 : vector<8x32xf32>
    %c48 = arith.constant 48 : index
    %c0_48 = arith.constant 0 : index
    %131 = vector.load %arg11[%c48, %c0_48] : memref<240x128xf32, #tpu.memory_space<vmem>>, vector<8x128xf32>
    %cst_49 = arith.constant dense<0.000000e+00> : vector<8x128xf32>
    %132 = tpu.matmul %126, %7, %cst_49 {dimension_numbers = #tpu.dot_dimension_numbers<[1], [0], [0], [1], [0, 0, 1, 1], [], []>} : vector<8x32xf32>, vector<32x128xf32>, vector<8x128xf32> -> vector<8x128xf32>
    %133 = arith.addf %131, %132 : vector<8x128xf32>
    %134 = math.tanh %133 : vector<8x128xf32>
    %135 = arith.mulf %134, %10 : vector<8x128xf32>
    %136 = arith.addf %135, %13 : vector<8x128xf32>
    %137 = vector.extract_strided_slice %136 {offsets = [0, 32], sizes = [8, 32], strides = [1, 1]} : vector<8x128xf32> to vector<8x32xf32>
    %138 = arith.mulf %137, %123 : vector<8x32xf32>
    %139 = vector.extract_strided_slice %136 {offsets = [0, 0], sizes = [8, 32], strides = [1, 1]} : vector<8x128xf32> to vector<8x32xf32>
    %140 = vector.extract_strided_slice %136 {offsets = [0, 64], sizes = [8, 32], strides = [1, 1]} : vector<8x128xf32> to vector<8x32xf32>
    %141 = arith.mulf %139, %140 : vector<8x32xf32>
    %142 = arith.addf %138, %141 : vector<8x32xf32>
    %143 = vector.extract_strided_slice %136 {offsets = [0, 96], sizes = [8, 32], strides = [1, 1]} : vector<8x128xf32> to vector<8x32xf32>
    %144 = math.tanh %142 : vector<8x32xf32>
    %145 = arith.mulf %143, %144 : vector<8x32xf32>
    %c6 = arith.constant 6 : index
    %c0_50 = arith.constant 0 : index
    %c0_51 = arith.constant 0 : index
    %146 = vector.load %arg6[%c6, %c0_50, %c0_51] : memref<30x32x32xf32, #tpu.memory_space<vmem>>, vector<1x32x32xf32>
    %147 = vector.shape_cast %146 : vector<1x32x32xf32> to vector<32x32xf32>
    %cst_52 = arith.constant dense<0.000000e+00> : vector<8x32xf32>
    %148 = tpu.matmul %145, %147, %cst_52 {dimension_numbers = #tpu.dot_dimension_numbers<[1], [0], [0], [1], [0, 0, 1, 1], [], []>} : vector<8x32xf32>, vector<32x32xf32>, vector<8x32xf32> -> vector<8x32xf32>
    %149 = arith.addf %130, %148 : vector<8x32xf32>
    %c56 = arith.constant 56 : index
    %c0_53 = arith.constant 0 : index
    %150 = vector.load %arg11[%c56, %c0_53] : memref<240x128xf32, #tpu.memory_space<vmem>>, vector<8x128xf32>
    %cst_54 = arith.constant dense<0.000000e+00> : vector<8x128xf32>
    %151 = tpu.matmul %145, %7, %cst_54 {dimension_numbers = #tpu.dot_dimension_numbers<[1], [0], [0], [1], [0, 0, 1, 1], [], []>} : vector<8x32xf32>, vector<32x128xf32>, vector<8x128xf32> -> vector<8x128xf32>
    %152 = arith.addf %150, %151 : vector<8x128xf32>
    %153 = math.tanh %152 : vector<8x128xf32>
    %154 = arith.mulf %153, %10 : vector<8x128xf32>
    %155 = arith.addf %154, %13 : vector<8x128xf32>
    %156 = vector.extract_strided_slice %155 {offsets = [0, 32], sizes = [8, 32], strides = [1, 1]} : vector<8x128xf32> to vector<8x32xf32>
    %157 = arith.mulf %156, %142 : vector<8x32xf32>
    %158 = vector.extract_strided_slice %155 {offsets = [0, 0], sizes = [8, 32], strides = [1, 1]} : vector<8x128xf32> to vector<8x32xf32>
    %159 = vector.extract_strided_slice %155 {offsets = [0, 64], sizes = [8, 32], strides = [1, 1]} : vector<8x128xf32> to vector<8x32xf32>
    %160 = arith.mulf %158, %159 : vector<8x32xf32>
    %161 = arith.addf %157, %160 : vector<8x32xf32>
    %162 = vector.extract_strided_slice %155 {offsets = [0, 96], sizes = [8, 32], strides = [1, 1]} : vector<8x128xf32> to vector<8x32xf32>
    %163 = math.tanh %161 : vector<8x32xf32>
    %164 = arith.mulf %162, %163 : vector<8x32xf32>
    %c7 = arith.constant 7 : index
    %c0_55 = arith.constant 0 : index
    %c0_56 = arith.constant 0 : index
    %165 = vector.load %arg6[%c7, %c0_55, %c0_56] : memref<30x32x32xf32, #tpu.memory_space<vmem>>, vector<1x32x32xf32>
    %166 = vector.shape_cast %165 : vector<1x32x32xf32> to vector<32x32xf32>
    %cst_57 = arith.constant dense<0.000000e+00> : vector<8x32xf32>
    %167 = tpu.matmul %164, %166, %cst_57 {dimension_numbers = #tpu.dot_dimension_numbers<[1], [0], [0], [1], [0, 0, 1, 1], [], []>} : vector<8x32xf32>, vector<32x32xf32>, vector<8x32xf32> -> vector<8x32xf32>
    %168 = arith.addf %149, %167 : vector<8x32xf32>
    %c64 = arith.constant 64 : index
    %c0_58 = arith.constant 0 : index
    %169 = vector.load %arg11[%c64, %c0_58] : memref<240x128xf32, #tpu.memory_space<vmem>>, vector<8x128xf32>
    %cst_59 = arith.constant dense<0.000000e+00> : vector<8x128xf32>
    %170 = tpu.matmul %164, %7, %cst_59 {dimension_numbers = #tpu.dot_dimension_numbers<[1], [0], [0], [1], [0, 0, 1, 1], [], []>} : vector<8x32xf32>, vector<32x128xf32>, vector<8x128xf32> -> vector<8x128xf32>
    %171 = arith.addf %169, %170 : vector<8x128xf32>
    %172 = math.tanh %171 : vector<8x128xf32>
    %173 = arith.mulf %172, %10 : vector<8x128xf32>
    %174 = arith.addf %173, %13 : vector<8x128xf32>
    %175 = vector.extract_strided_slice %174 {offsets = [0, 32], sizes = [8, 32], strides = [1, 1]} : vector<8x128xf32> to vector<8x32xf32>
    %176 = arith.mulf %175, %161 : vector<8x32xf32>
    %177 = vector.extract_strided_slice %174 {offsets = [0, 0], sizes = [8, 32], strides = [1, 1]} : vector<8x128xf32> to vector<8x32xf32>
    %178 = vector.extract_strided_slice %174 {offsets = [0, 64], sizes = [8, 32], strides = [1, 1]} : vector<8x128xf32> to vector<8x32xf32>
    %179 = arith.mulf %177, %178 : vector<8x32xf32>
    %180 = arith.addf %176, %179 : vector<8x32xf32>
    %181 = vector.extract_strided_slice %174 {offsets = [0, 96], sizes = [8, 32], strides = [1, 1]} : vector<8x128xf32> to vector<8x32xf32>
    %182 = math.tanh %180 : vector<8x32xf32>
    %183 = arith.mulf %181, %182 : vector<8x32xf32>
    %c8_60 = arith.constant 8 : index
    %c0_61 = arith.constant 0 : index
    %c0_62 = arith.constant 0 : index
    %184 = vector.load %arg6[%c8_60, %c0_61, %c0_62] : memref<30x32x32xf32, #tpu.memory_space<vmem>>, vector<1x32x32xf32>
    %185 = vector.shape_cast %184 : vector<1x32x32xf32> to vector<32x32xf32>
    %cst_63 = arith.constant dense<0.000000e+00> : vector<8x32xf32>
    %186 = tpu.matmul %183, %185, %cst_63 {dimension_numbers = #tpu.dot_dimension_numbers<[1], [0], [0], [1], [0, 0, 1, 1], [], []>} : vector<8x32xf32>, vector<32x32xf32>, vector<8x32xf32> -> vector<8x32xf32>
    %187 = arith.addf %168, %186 : vector<8x32xf32>
    %c72 = arith.constant 72 : index
    %c0_64 = arith.constant 0 : index
    %188 = vector.load %arg11[%c72, %c0_64] : memref<240x128xf32, #tpu.memory_space<vmem>>, vector<8x128xf32>
    %cst_65 = arith.constant dense<0.000000e+00> : vector<8x128xf32>
    %189 = tpu.matmul %183, %7, %cst_65 {dimension_numbers = #tpu.dot_dimension_numbers<[1], [0], [0], [1], [0, 0, 1, 1], [], []>} : vector<8x32xf32>, vector<32x128xf32>, vector<8x128xf32> -> vector<8x128xf32>
    %190 = arith.addf %188, %189 : vector<8x128xf32>
    %191 = math.tanh %190 : vector<8x128xf32>
    %192 = arith.mulf %191, %10 : vector<8x128xf32>
    %193 = arith.addf %192, %13 : vector<8x128xf32>
    %194 = vector.extract_strided_slice %193 {offsets = [0, 32], sizes = [8, 32], strides = [1, 1]} : vector<8x128xf32> to vector<8x32xf32>
    %195 = arith.mulf %194, %180 : vector<8x32xf32>
    %196 = vector.extract_strided_slice %193 {offsets = [0, 0], sizes = [8, 32], strides = [1, 1]} : vector<8x128xf32> to vector<8x32xf32>
    %197 = vector.extract_strided_slice %193 {offsets = [0, 64], sizes = [8, 32], strides = [1, 1]} : vector<8x128xf32> to vector<8x32xf32>
    %198 = arith.mulf %196, %197 : vector<8x32xf32>
    %199 = arith.addf %195, %198 : vector<8x32xf32>
    %200 = vector.extract_strided_slice %193 {offsets = [0, 96], sizes = [8, 32], strides = [1, 1]} : vector<8x128xf32> to vector<8x32xf32>
    %201 = math.tanh %199 : vector<8x32xf32>
    %202 = arith.mulf %200, %201 : vector<8x32xf32>
    %c9 = arith.constant 9 : index
    %c0_66 = arith.constant 0 : index
    %c0_67 = arith.constant 0 : index
    %203 = vector.load %arg6[%c9, %c0_66, %c0_67] : memref<30x32x32xf32, #tpu.memory_space<vmem>>, vector<1x32x32xf32>
    %204 = vector.shape_cast %203 : vector<1x32x32xf32> to vector<32x32xf32>
    %cst_68 = arith.constant dense<0.000000e+00> : vector<8x32xf32>
    %205 = tpu.matmul %202, %204, %cst_68 {dimension_numbers = #tpu.dot_dimension_numbers<[1], [0], [0], [1], [0, 0, 1, 1], [], []>} : vector<8x32xf32>, vector<32x32xf32>, vector<8x32xf32> -> vector<8x32xf32>
    %206 = arith.addf %187, %205 : vector<8x32xf32>
    %c80 = arith.constant 80 : index
    %c0_69 = arith.constant 0 : index
    %207 = vector.load %arg11[%c80, %c0_69] : memref<240x128xf32, #tpu.memory_space<vmem>>, vector<8x128xf32>
    %cst_70 = arith.constant dense<0.000000e+00> : vector<8x128xf32>
    %208 = tpu.matmul %202, %7, %cst_70 {dimension_numbers = #tpu.dot_dimension_numbers<[1], [0], [0], [1], [0, 0, 1, 1], [], []>} : vector<8x32xf32>, vector<32x128xf32>, vector<8x128xf32> -> vector<8x128xf32>
    %209 = arith.addf %207, %208 : vector<8x128xf32>
    %210 = math.tanh %209 : vector<8x128xf32>
    %211 = arith.mulf %210, %10 : vector<8x128xf32>
    %212 = arith.addf %211, %13 : vector<8x128xf32>
    %213 = vector.extract_strided_slice %212 {offsets = [0, 32], sizes = [8, 32], strides = [1, 1]} : vector<8x128xf32> to vector<8x32xf32>
    %214 = arith.mulf %213, %199 : vector<8x32xf32>
    %215 = vector.extract_strided_slice %212 {offsets = [0, 0], sizes = [8, 32], strides = [1, 1]} : vector<8x128xf32> to vector<8x32xf32>
    %216 = vector.extract_strided_slice %212 {offsets = [0, 64], sizes = [8, 32], strides = [1, 1]} : vector<8x128xf32> to vector<8x32xf32>
    %217 = arith.mulf %215, %216 : vector<8x32xf32>
    %218 = arith.addf %214, %217 : vector<8x32xf32>
    %219 = vector.extract_strided_slice %212 {offsets = [0, 96], sizes = [8, 32], strides = [1, 1]} : vector<8x128xf32> to vector<8x32xf32>
    %220 = math.tanh %218 : vector<8x32xf32>
    %221 = arith.mulf %219, %220 : vector<8x32xf32>
    %c10 = arith.constant 10 : index
    %c0_71 = arith.constant 0 : index
    %c0_72 = arith.constant 0 : index
    %222 = vector.load %arg6[%c10, %c0_71, %c0_72] : memref<30x32x32xf32, #tpu.memory_space<vmem>>, vector<1x32x32xf32>
    %223 = vector.shape_cast %222 : vector<1x32x32xf32> to vector<32x32xf32>
    %cst_73 = arith.constant dense<0.000000e+00> : vector<8x32xf32>
    %224 = tpu.matmul %221, %223, %cst_73 {dimension_numbers = #tpu.dot_dimension_numbers<[1], [0], [0], [1], [0, 0, 1, 1], [], []>} : vector<8x32xf32>, vector<32x32xf32>, vector<8x32xf32> -> vector<8x32xf32>
    %225 = arith.addf %206, %224 : vector<8x32xf32>
    %c88 = arith.constant 88 : index
    %c0_74 = arith.constant 0 : index
    %226 = vector.load %arg11[%c88, %c0_74] : memref<240x128xf32, #tpu.memory_space<vmem>>, vector<8x128xf32>
    %cst_75 = arith.constant dense<0.000000e+00> : vector<8x128xf32>
    %227 = tpu.matmul %221, %7, %cst_75 {dimension_numbers = #tpu.dot_dimension_numbers<[1], [0], [0], [1], [0, 0, 1, 1], [], []>} : vector<8x32xf32>, vector<32x128xf32>, vector<8x128xf32> -> vector<8x128xf32>
    %228 = arith.addf %226, %227 : vector<8x128xf32>
    %229 = math.tanh %228 : vector<8x128xf32>
    %230 = arith.mulf %229, %10 : vector<8x128xf32>
    %231 = arith.addf %230, %13 : vector<8x128xf32>
    %232 = vector.extract_strided_slice %231 {offsets = [0, 32], sizes = [8, 32], strides = [1, 1]} : vector<8x128xf32> to vector<8x32xf32>
    %233 = arith.mulf %232, %218 : vector<8x32xf32>
    %234 = vector.extract_strided_slice %231 {offsets = [0, 0], sizes = [8, 32], strides = [1, 1]} : vector<8x128xf32> to vector<8x32xf32>
    %235 = vector.extract_strided_slice %231 {offsets = [0, 64], sizes = [8, 32], strides = [1, 1]} : vector<8x128xf32> to vector<8x32xf32>
    %236 = arith.mulf %234, %235 : vector<8x32xf32>
    %237 = arith.addf %233, %236 : vector<8x32xf32>
    %238 = vector.extract_strided_slice %231 {offsets = [0, 96], sizes = [8, 32], strides = [1, 1]} : vector<8x128xf32> to vector<8x32xf32>
    %239 = math.tanh %237 : vector<8x32xf32>
    %240 = arith.mulf %238, %239 : vector<8x32xf32>
    %c11 = arith.constant 11 : index
    %c0_76 = arith.constant 0 : index
    %c0_77 = arith.constant 0 : index
    %241 = vector.load %arg6[%c11, %c0_76, %c0_77] : memref<30x32x32xf32, #tpu.memory_space<vmem>>, vector<1x32x32xf32>
    %242 = vector.shape_cast %241 : vector<1x32x32xf32> to vector<32x32xf32>
    %cst_78 = arith.constant dense<0.000000e+00> : vector<8x32xf32>
    %243 = tpu.matmul %240, %242, %cst_78 {dimension_numbers = #tpu.dot_dimension_numbers<[1], [0], [0], [1], [0, 0, 1, 1], [], []>} : vector<8x32xf32>, vector<32x32xf32>, vector<8x32xf32> -> vector<8x32xf32>
    %244 = arith.addf %225, %243 : vector<8x32xf32>
    %c96 = arith.constant 96 : index
    %c0_79 = arith.constant 0 : index
    %245 = vector.load %arg11[%c96, %c0_79] : memref<240x128xf32, #tpu.memory_space<vmem>>, vector<8x128xf32>
    %cst_80 = arith.constant dense<0.000000e+00> : vector<8x128xf32>
    %246 = tpu.matmul %240, %7, %cst_80 {dimension_numbers = #tpu.dot_dimension_numbers<[1], [0], [0], [1], [0, 0, 1, 1], [], []>} : vector<8x32xf32>, vector<32x128xf32>, vector<8x128xf32> -> vector<8x128xf32>
    %247 = arith.addf %245, %246 : vector<8x128xf32>
    %248 = math.tanh %247 : vector<8x128xf32>
    %249 = arith.mulf %248, %10 : vector<8x128xf32>
    %250 = arith.addf %249, %13 : vector<8x128xf32>
    %251 = vector.extract_strided_slice %250 {offsets = [0, 32], sizes = [8, 32], strides = [1, 1]} : vector<8x128xf32> to vector<8x32xf32>
    %252 = arith.mulf %251, %237 : vector<8x32xf32>
    %253 = vector.extract_strided_slice %250 {offsets = [0, 0], sizes = [8, 32], strides = [1, 1]} : vector<8x128xf32> to vector<8x32xf32>
    %254 = vector.extract_strided_slice %250 {offsets = [0, 64], sizes = [8, 32], strides = [1, 1]} : vector<8x128xf32> to vector<8x32xf32>
    %255 = arith.mulf %253, %254 : vector<8x32xf32>
    %256 = arith.addf %252, %255 : vector<8x32xf32>
    %257 = vector.extract_strided_slice %250 {offsets = [0, 96], sizes = [8, 32], strides = [1, 1]} : vector<8x128xf32> to vector<8x32xf32>
    %258 = math.tanh %256 : vector<8x32xf32>
    %259 = arith.mulf %257, %258 : vector<8x32xf32>
    %c12 = arith.constant 12 : index
    %c0_81 = arith.constant 0 : index
    %c0_82 = arith.constant 0 : index
    %260 = vector.load %arg6[%c12, %c0_81, %c0_82] : memref<30x32x32xf32, #tpu.memory_space<vmem>>, vector<1x32x32xf32>
    %261 = vector.shape_cast %260 : vector<1x32x32xf32> to vector<32x32xf32>
    %cst_83 = arith.constant dense<0.000000e+00> : vector<8x32xf32>
    %262 = tpu.matmul %259, %261, %cst_83 {dimension_numbers = #tpu.dot_dimension_numbers<[1], [0], [0], [1], [0, 0, 1, 1], [], []>} : vector<8x32xf32>, vector<32x32xf32>, vector<8x32xf32> -> vector<8x32xf32>
    %263 = arith.addf %244, %262 : vector<8x32xf32>
    %c104 = arith.constant 104 : index
    %c0_84 = arith.constant 0 : index
    %264 = vector.load %arg11[%c104, %c0_84] : memref<240x128xf32, #tpu.memory_space<vmem>>, vector<8x128xf32>
    %cst_85 = arith.constant dense<0.000000e+00> : vector<8x128xf32>
    %265 = tpu.matmul %259, %7, %cst_85 {dimension_numbers = #tpu.dot_dimension_numbers<[1], [0], [0], [1], [0, 0, 1, 1], [], []>} : vector<8x32xf32>, vector<32x128xf32>, vector<8x128xf32> -> vector<8x128xf32>
    %266 = arith.addf %264, %265 : vector<8x128xf32>
    %267 = math.tanh %266 : vector<8x128xf32>
    %268 = arith.mulf %267, %10 : vector<8x128xf32>
    %269 = arith.addf %268, %13 : vector<8x128xf32>
    %270 = vector.extract_strided_slice %269 {offsets = [0, 32], sizes = [8, 32], strides = [1, 1]} : vector<8x128xf32> to vector<8x32xf32>
    %271 = arith.mulf %270, %256 : vector<8x32xf32>
    %272 = vector.extract_strided_slice %269 {offsets = [0, 0], sizes = [8, 32], strides = [1, 1]} : vector<8x128xf32> to vector<8x32xf32>
    %273 = vector.extract_strided_slice %269 {offsets = [0, 64], sizes = [8, 32], strides = [1, 1]} : vector<8x128xf32> to vector<8x32xf32>
    %274 = arith.mulf %272, %273 : vector<8x32xf32>
    %275 = arith.addf %271, %274 : vector<8x32xf32>
    %276 = vector.extract_strided_slice %269 {offsets = [0, 96], sizes = [8, 32], strides = [1, 1]} : vector<8x128xf32> to vector<8x32xf32>
    %277 = math.tanh %275 : vector<8x32xf32>
    %278 = arith.mulf %276, %277 : vector<8x32xf32>
    %c13 = arith.constant 13 : index
    %c0_86 = arith.constant 0 : index
    %c0_87 = arith.constant 0 : index
    %279 = vector.load %arg6[%c13, %c0_86, %c0_87] : memref<30x32x32xf32, #tpu.memory_space<vmem>>, vector<1x32x32xf32>
    %280 = vector.shape_cast %279 : vector<1x32x32xf32> to vector<32x32xf32>
    %cst_88 = arith.constant dense<0.000000e+00> : vector<8x32xf32>
    %281 = tpu.matmul %278, %280, %cst_88 {dimension_numbers = #tpu.dot_dimension_numbers<[1], [0], [0], [1], [0, 0, 1, 1], [], []>} : vector<8x32xf32>, vector<32x32xf32>, vector<8x32xf32> -> vector<8x32xf32>
    %282 = arith.addf %263, %281 : vector<8x32xf32>
    %c112 = arith.constant 112 : index
    %c0_89 = arith.constant 0 : index
    %283 = vector.load %arg11[%c112, %c0_89] : memref<240x128xf32, #tpu.memory_space<vmem>>, vector<8x128xf32>
    %cst_90 = arith.constant dense<0.000000e+00> : vector<8x128xf32>
    %284 = tpu.matmul %278, %7, %cst_90 {dimension_numbers = #tpu.dot_dimension_numbers<[1], [0], [0], [1], [0, 0, 1, 1], [], []>} : vector<8x32xf32>, vector<32x128xf32>, vector<8x128xf32> -> vector<8x128xf32>
    %285 = arith.addf %283, %284 : vector<8x128xf32>
    %286 = math.tanh %285 : vector<8x128xf32>
    %287 = arith.mulf %286, %10 : vector<8x128xf32>
    %288 = arith.addf %287, %13 : vector<8x128xf32>
    %289 = vector.extract_strided_slice %288 {offsets = [0, 32], sizes = [8, 32], strides = [1, 1]} : vector<8x128xf32> to vector<8x32xf32>
    %290 = arith.mulf %289, %275 : vector<8x32xf32>
    %291 = vector.extract_strided_slice %288 {offsets = [0, 0], sizes = [8, 32], strides = [1, 1]} : vector<8x128xf32> to vector<8x32xf32>
    %292 = vector.extract_strided_slice %288 {offsets = [0, 64], sizes = [8, 32], strides = [1, 1]} : vector<8x128xf32> to vector<8x32xf32>
    %293 = arith.mulf %291, %292 : vector<8x32xf32>
    %294 = arith.addf %290, %293 : vector<8x32xf32>
    %295 = vector.extract_strided_slice %288 {offsets = [0, 96], sizes = [8, 32], strides = [1, 1]} : vector<8x128xf32> to vector<8x32xf32>
    %296 = math.tanh %294 : vector<8x32xf32>
    %297 = arith.mulf %295, %296 : vector<8x32xf32>
    %c14 = arith.constant 14 : index
    %c0_91 = arith.constant 0 : index
    %c0_92 = arith.constant 0 : index
    %298 = vector.load %arg6[%c14, %c0_91, %c0_92] : memref<30x32x32xf32, #tpu.memory_space<vmem>>, vector<1x32x32xf32>
    %299 = vector.shape_cast %298 : vector<1x32x32xf32> to vector<32x32xf32>
    %cst_93 = arith.constant dense<0.000000e+00> : vector<8x32xf32>
    %300 = tpu.matmul %297, %299, %cst_93 {dimension_numbers = #tpu.dot_dimension_numbers<[1], [0], [0], [1], [0, 0, 1, 1], [], []>} : vector<8x32xf32>, vector<32x32xf32>, vector<8x32xf32> -> vector<8x32xf32>
    %301 = arith.addf %282, %300 : vector<8x32xf32>
    %c120 = arith.constant 120 : index
    %c0_94 = arith.constant 0 : index
    %302 = vector.load %arg11[%c120, %c0_94] : memref<240x128xf32, #tpu.memory_space<vmem>>, vector<8x128xf32>
    %cst_95 = arith.constant dense<0.000000e+00> : vector<8x128xf32>
    %303 = tpu.matmul %297, %7, %cst_95 {dimension_numbers = #tpu.dot_dimension_numbers<[1], [0], [0], [1], [0, 0, 1, 1], [], []>} : vector<8x32xf32>, vector<32x128xf32>, vector<8x128xf32> -> vector<8x128xf32>
    %304 = arith.addf %302, %303 : vector<8x128xf32>
    %305 = math.tanh %304 : vector<8x128xf32>
    %306 = arith.mulf %305, %10 : vector<8x128xf32>
    %307 = arith.addf %306, %13 : vector<8x128xf32>
    %308 = vector.extract_strided_slice %307 {offsets = [0, 32], sizes = [8, 32], strides = [1, 1]} : vector<8x128xf32> to vector<8x32xf32>
    %309 = arith.mulf %308, %294 : vector<8x32xf32>
    %310 = vector.extract_strided_slice %307 {offsets = [0, 0], sizes = [8, 32], strides = [1, 1]} : vector<8x128xf32> to vector<8x32xf32>
    %311 = vector.extract_strided_slice %307 {offsets = [0, 64], sizes = [8, 32], strides = [1, 1]} : vector<8x128xf32> to vector<8x32xf32>
    %312 = arith.mulf %310, %311 : vector<8x32xf32>
    %313 = arith.addf %309, %312 : vector<8x32xf32>
    %314 = vector.extract_strided_slice %307 {offsets = [0, 96], sizes = [8, 32], strides = [1, 1]} : vector<8x128xf32> to vector<8x32xf32>
    %315 = math.tanh %313 : vector<8x32xf32>
    %316 = arith.mulf %314, %315 : vector<8x32xf32>
    %c15 = arith.constant 15 : index
    %c0_96 = arith.constant 0 : index
    %c0_97 = arith.constant 0 : index
    %317 = vector.load %arg6[%c15, %c0_96, %c0_97] : memref<30x32x32xf32, #tpu.memory_space<vmem>>, vector<1x32x32xf32>
    %318 = vector.shape_cast %317 : vector<1x32x32xf32> to vector<32x32xf32>
    %cst_98 = arith.constant dense<0.000000e+00> : vector<8x32xf32>
    %319 = tpu.matmul %316, %318, %cst_98 {dimension_numbers = #tpu.dot_dimension_numbers<[1], [0], [0], [1], [0, 0, 1, 1], [], []>} : vector<8x32xf32>, vector<32x32xf32>, vector<8x32xf32> -> vector<8x32xf32>
    %320 = arith.addf %301, %319 : vector<8x32xf32>
    %c128 = arith.constant 128 : index
    %c0_99 = arith.constant 0 : index
    %321 = vector.load %arg11[%c128, %c0_99] : memref<240x128xf32, #tpu.memory_space<vmem>>, vector<8x128xf32>
    %cst_100 = arith.constant dense<0.000000e+00> : vector<8x128xf32>
    %322 = tpu.matmul %316, %7, %cst_100 {dimension_numbers = #tpu.dot_dimension_numbers<[1], [0], [0], [1], [0, 0, 1, 1], [], []>} : vector<8x32xf32>, vector<32x128xf32>, vector<8x128xf32> -> vector<8x128xf32>
    %323 = arith.addf %321, %322 : vector<8x128xf32>
    %324 = math.tanh %323 : vector<8x128xf32>
    %325 = arith.mulf %324, %10 : vector<8x128xf32>
    %326 = arith.addf %325, %13 : vector<8x128xf32>
    %327 = vector.extract_strided_slice %326 {offsets = [0, 32], sizes = [8, 32], strides = [1, 1]} : vector<8x128xf32> to vector<8x32xf32>
    %328 = arith.mulf %327, %313 : vector<8x32xf32>
    %329 = vector.extract_strided_slice %326 {offsets = [0, 0], sizes = [8, 32], strides = [1, 1]} : vector<8x128xf32> to vector<8x32xf32>
    %330 = vector.extract_strided_slice %326 {offsets = [0, 64], sizes = [8, 32], strides = [1, 1]} : vector<8x128xf32> to vector<8x32xf32>
    %331 = arith.mulf %329, %330 : vector<8x32xf32>
    %332 = arith.addf %328, %331 : vector<8x32xf32>
    %333 = vector.extract_strided_slice %326 {offsets = [0, 96], sizes = [8, 32], strides = [1, 1]} : vector<8x128xf32> to vector<8x32xf32>
    %334 = math.tanh %332 : vector<8x32xf32>
    %335 = arith.mulf %333, %334 : vector<8x32xf32>
    %c16_101 = arith.constant 16 : index
    %c0_102 = arith.constant 0 : index
    %c0_103 = arith.constant 0 : index
    %336 = vector.load %arg6[%c16_101, %c0_102, %c0_103] : memref<30x32x32xf32, #tpu.memory_space<vmem>>, vector<1x32x32xf32>
    %337 = vector.shape_cast %336 : vector<1x32x32xf32> to vector<32x32xf32>
    %cst_104 = arith.constant dense<0.000000e+00> : vector<8x32xf32>
    %338 = tpu.matmul %335, %337, %cst_104 {dimension_numbers = #tpu.dot_dimension_numbers<[1], [0], [0], [1], [0, 0, 1, 1], [], []>} : vector<8x32xf32>, vector<32x32xf32>, vector<8x32xf32> -> vector<8x32xf32>
    %339 = arith.addf %320, %338 : vector<8x32xf32>
    %c136 = arith.constant 136 : index
    %c0_105 = arith.constant 0 : index
    %340 = vector.load %arg11[%c136, %c0_105] : memref<240x128xf32, #tpu.memory_space<vmem>>, vector<8x128xf32>
    %cst_106 = arith.constant dense<0.000000e+00> : vector<8x128xf32>
    %341 = tpu.matmul %335, %7, %cst_106 {dimension_numbers = #tpu.dot_dimension_numbers<[1], [0], [0], [1], [0, 0, 1, 1], [], []>} : vector<8x32xf32>, vector<32x128xf32>, vector<8x128xf32> -> vector<8x128xf32>
    %342 = arith.addf %340, %341 : vector<8x128xf32>
    %343 = math.tanh %342 : vector<8x128xf32>
    %344 = arith.mulf %343, %10 : vector<8x128xf32>
    %345 = arith.addf %344, %13 : vector<8x128xf32>
    %346 = vector.extract_strided_slice %345 {offsets = [0, 32], sizes = [8, 32], strides = [1, 1]} : vector<8x128xf32> to vector<8x32xf32>
    %347 = arith.mulf %346, %332 : vector<8x32xf32>
    %348 = vector.extract_strided_slice %345 {offsets = [0, 0], sizes = [8, 32], strides = [1, 1]} : vector<8x128xf32> to vector<8x32xf32>
    %349 = vector.extract_strided_slice %345 {offsets = [0, 64], sizes = [8, 32], strides = [1, 1]} : vector<8x128xf32> to vector<8x32xf32>
    %350 = arith.mulf %348, %349 : vector<8x32xf32>
    %351 = arith.addf %347, %350 : vector<8x32xf32>
    %352 = vector.extract_strided_slice %345 {offsets = [0, 96], sizes = [8, 32], strides = [1, 1]} : vector<8x128xf32> to vector<8x32xf32>
    %353 = math.tanh %351 : vector<8x32xf32>
    %354 = arith.mulf %352, %353 : vector<8x32xf32>
    %c17 = arith.constant 17 : index
    %c0_107 = arith.constant 0 : index
    %c0_108 = arith.constant 0 : index
    %355 = vector.load %arg6[%c17, %c0_107, %c0_108] : memref<30x32x32xf32, #tpu.memory_space<vmem>>, vector<1x32x32xf32>
    %356 = vector.shape_cast %355 : vector<1x32x32xf32> to vector<32x32xf32>
    %cst_109 = arith.constant dense<0.000000e+00> : vector<8x32xf32>
    %357 = tpu.matmul %354, %356, %cst_109 {dimension_numbers = #tpu.dot_dimension_numbers<[1], [0], [0], [1], [0, 0, 1, 1], [], []>} : vector<8x32xf32>, vector<32x32xf32>, vector<8x32xf32> -> vector<8x32xf32>
    %358 = arith.addf %339, %357 : vector<8x32xf32>
    %c144 = arith.constant 144 : index
    %c0_110 = arith.constant 0 : index
    %359 = vector.load %arg11[%c144, %c0_110] : memref<240x128xf32, #tpu.memory_space<vmem>>, vector<8x128xf32>
    %cst_111 = arith.constant dense<0.000000e+00> : vector<8x128xf32>
    %360 = tpu.matmul %354, %7, %cst_111 {dimension_numbers = #tpu.dot_dimension_numbers<[1], [0], [0], [1], [0, 0, 1, 1], [], []>} : vector<8x32xf32>, vector<32x128xf32>, vector<8x128xf32> -> vector<8x128xf32>
    %361 = arith.addf %359, %360 : vector<8x128xf32>
    %362 = math.tanh %361 : vector<8x128xf32>
    %363 = arith.mulf %362, %10 : vector<8x128xf32>
    %364 = arith.addf %363, %13 : vector<8x128xf32>
    %365 = vector.extract_strided_slice %364 {offsets = [0, 32], sizes = [8, 32], strides = [1, 1]} : vector<8x128xf32> to vector<8x32xf32>
    %366 = arith.mulf %365, %351 : vector<8x32xf32>
    %367 = vector.extract_strided_slice %364 {offsets = [0, 0], sizes = [8, 32], strides = [1, 1]} : vector<8x128xf32> to vector<8x32xf32>
    %368 = vector.extract_strided_slice %364 {offsets = [0, 64], sizes = [8, 32], strides = [1, 1]} : vector<8x128xf32> to vector<8x32xf32>
    %369 = arith.mulf %367, %368 : vector<8x32xf32>
    %370 = arith.addf %366, %369 : vector<8x32xf32>
    %371 = vector.extract_strided_slice %364 {offsets = [0, 96], sizes = [8, 32], strides = [1, 1]} : vector<8x128xf32> to vector<8x32xf32>
    %372 = math.tanh %370 : vector<8x32xf32>
    %373 = arith.mulf %371, %372 : vector<8x32xf32>
    %c18 = arith.constant 18 : index
    %c0_112 = arith.constant 0 : index
    %c0_113 = arith.constant 0 : index
    %374 = vector.load %arg6[%c18, %c0_112, %c0_113] : memref<30x32x32xf32, #tpu.memory_space<vmem>>, vector<1x32x32xf32>
    %375 = vector.shape_cast %374 : vector<1x32x32xf32> to vector<32x32xf32>
    %cst_114 = arith.constant dense<0.000000e+00> : vector<8x32xf32>
    %376 = tpu.matmul %373, %375, %cst_114 {dimension_numbers = #tpu.dot_dimension_numbers<[1], [0], [0], [1], [0, 0, 1, 1], [], []>} : vector<8x32xf32>, vector<32x32xf32>, vector<8x32xf32> -> vector<8x32xf32>
    %377 = arith.addf %358, %376 : vector<8x32xf32>
    %c152 = arith.constant 152 : index
    %c0_115 = arith.constant 0 : index
    %378 = vector.load %arg11[%c152, %c0_115] : memref<240x128xf32, #tpu.memory_space<vmem>>, vector<8x128xf32>
    %cst_116 = arith.constant dense<0.000000e+00> : vector<8x128xf32>
    %379 = tpu.matmul %373, %7, %cst_116 {dimension_numbers = #tpu.dot_dimension_numbers<[1], [0], [0], [1], [0, 0, 1, 1], [], []>} : vector<8x32xf32>, vector<32x128xf32>, vector<8x128xf32> -> vector<8x128xf32>
    %380 = arith.addf %378, %379 : vector<8x128xf32>
    %381 = math.tanh %380 : vector<8x128xf32>
    %382 = arith.mulf %381, %10 : vector<8x128xf32>
    %383 = arith.addf %382, %13 : vector<8x128xf32>
    %384 = vector.extract_strided_slice %383 {offsets = [0, 32], sizes = [8, 32], strides = [1, 1]} : vector<8x128xf32> to vector<8x32xf32>
    %385 = arith.mulf %384, %370 : vector<8x32xf32>
    %386 = vector.extract_strided_slice %383 {offsets = [0, 0], sizes = [8, 32], strides = [1, 1]} : vector<8x128xf32> to vector<8x32xf32>
    %387 = vector.extract_strided_slice %383 {offsets = [0, 64], sizes = [8, 32], strides = [1, 1]} : vector<8x128xf32> to vector<8x32xf32>
    %388 = arith.mulf %386, %387 : vector<8x32xf32>
    %389 = arith.addf %385, %388 : vector<8x32xf32>
    %390 = vector.extract_strided_slice %383 {offsets = [0, 96], sizes = [8, 32], strides = [1, 1]} : vector<8x128xf32> to vector<8x32xf32>
    %391 = math.tanh %389 : vector<8x32xf32>
    %392 = arith.mulf %390, %391 : vector<8x32xf32>
    %c19 = arith.constant 19 : index
    %c0_117 = arith.constant 0 : index
    %c0_118 = arith.constant 0 : index
    %393 = vector.load %arg6[%c19, %c0_117, %c0_118] : memref<30x32x32xf32, #tpu.memory_space<vmem>>, vector<1x32x32xf32>
    %394 = vector.shape_cast %393 : vector<1x32x32xf32> to vector<32x32xf32>
    %cst_119 = arith.constant dense<0.000000e+00> : vector<8x32xf32>
    %395 = tpu.matmul %392, %394, %cst_119 {dimension_numbers = #tpu.dot_dimension_numbers<[1], [0], [0], [1], [0, 0, 1, 1], [], []>} : vector<8x32xf32>, vector<32x32xf32>, vector<8x32xf32> -> vector<8x32xf32>
    %396 = arith.addf %377, %395 : vector<8x32xf32>
    %c160 = arith.constant 160 : index
    %c0_120 = arith.constant 0 : index
    %397 = vector.load %arg11[%c160, %c0_120] : memref<240x128xf32, #tpu.memory_space<vmem>>, vector<8x128xf32>
    %cst_121 = arith.constant dense<0.000000e+00> : vector<8x128xf32>
    %398 = tpu.matmul %392, %7, %cst_121 {dimension_numbers = #tpu.dot_dimension_numbers<[1], [0], [0], [1], [0, 0, 1, 1], [], []>} : vector<8x32xf32>, vector<32x128xf32>, vector<8x128xf32> -> vector<8x128xf32>
    %399 = arith.addf %397, %398 : vector<8x128xf32>
    %400 = math.tanh %399 : vector<8x128xf32>
    %401 = arith.mulf %400, %10 : vector<8x128xf32>
    %402 = arith.addf %401, %13 : vector<8x128xf32>
    %403 = vector.extract_strided_slice %402 {offsets = [0, 32], sizes = [8, 32], strides = [1, 1]} : vector<8x128xf32> to vector<8x32xf32>
    %404 = arith.mulf %403, %389 : vector<8x32xf32>
    %405 = vector.extract_strided_slice %402 {offsets = [0, 0], sizes = [8, 32], strides = [1, 1]} : vector<8x128xf32> to vector<8x32xf32>
    %406 = vector.extract_strided_slice %402 {offsets = [0, 64], sizes = [8, 32], strides = [1, 1]} : vector<8x128xf32> to vector<8x32xf32>
    %407 = arith.mulf %405, %406 : vector<8x32xf32>
    %408 = arith.addf %404, %407 : vector<8x32xf32>
    %409 = vector.extract_strided_slice %402 {offsets = [0, 96], sizes = [8, 32], strides = [1, 1]} : vector<8x128xf32> to vector<8x32xf32>
    %410 = math.tanh %408 : vector<8x32xf32>
    %411 = arith.mulf %409, %410 : vector<8x32xf32>
    %c20 = arith.constant 20 : index
    %c0_122 = arith.constant 0 : index
    %c0_123 = arith.constant 0 : index
    %412 = vector.load %arg6[%c20, %c0_122, %c0_123] : memref<30x32x32xf32, #tpu.memory_space<vmem>>, vector<1x32x32xf32>
    %413 = vector.shape_cast %412 : vector<1x32x32xf32> to vector<32x32xf32>
    %cst_124 = arith.constant dense<0.000000e+00> : vector<8x32xf32>
    %414 = tpu.matmul %411, %413, %cst_124 {dimension_numbers = #tpu.dot_dimension_numbers<[1], [0], [0], [1], [0, 0, 1, 1], [], []>} : vector<8x32xf32>, vector<32x32xf32>, vector<8x32xf32> -> vector<8x32xf32>
    %415 = arith.addf %396, %414 : vector<8x32xf32>
    %c168 = arith.constant 168 : index
    %c0_125 = arith.constant 0 : index
    %416 = vector.load %arg11[%c168, %c0_125] : memref<240x128xf32, #tpu.memory_space<vmem>>, vector<8x128xf32>
    %cst_126 = arith.constant dense<0.000000e+00> : vector<8x128xf32>
    %417 = tpu.matmul %411, %7, %cst_126 {dimension_numbers = #tpu.dot_dimension_numbers<[1], [0], [0], [1], [0, 0, 1, 1], [], []>} : vector<8x32xf32>, vector<32x128xf32>, vector<8x128xf32> -> vector<8x128xf32>
    %418 = arith.addf %416, %417 : vector<8x128xf32>
    %419 = math.tanh %418 : vector<8x128xf32>
    %420 = arith.mulf %419, %10 : vector<8x128xf32>
    %421 = arith.addf %420, %13 : vector<8x128xf32>
    %422 = vector.extract_strided_slice %421 {offsets = [0, 32], sizes = [8, 32], strides = [1, 1]} : vector<8x128xf32> to vector<8x32xf32>
    %423 = arith.mulf %422, %408 : vector<8x32xf32>
    %424 = vector.extract_strided_slice %421 {offsets = [0, 0], sizes = [8, 32], strides = [1, 1]} : vector<8x128xf32> to vector<8x32xf32>
    %425 = vector.extract_strided_slice %421 {offsets = [0, 64], sizes = [8, 32], strides = [1, 1]} : vector<8x128xf32> to vector<8x32xf32>
    %426 = arith.mulf %424, %425 : vector<8x32xf32>
    %427 = arith.addf %423, %426 : vector<8x32xf32>
    %428 = vector.extract_strided_slice %421 {offsets = [0, 96], sizes = [8, 32], strides = [1, 1]} : vector<8x128xf32> to vector<8x32xf32>
    %429 = math.tanh %427 : vector<8x32xf32>
    %430 = arith.mulf %428, %429 : vector<8x32xf32>
    %c21 = arith.constant 21 : index
    %c0_127 = arith.constant 0 : index
    %c0_128 = arith.constant 0 : index
    %431 = vector.load %arg6[%c21, %c0_127, %c0_128] : memref<30x32x32xf32, #tpu.memory_space<vmem>>, vector<1x32x32xf32>
    %432 = vector.shape_cast %431 : vector<1x32x32xf32> to vector<32x32xf32>
    %cst_129 = arith.constant dense<0.000000e+00> : vector<8x32xf32>
    %433 = tpu.matmul %430, %432, %cst_129 {dimension_numbers = #tpu.dot_dimension_numbers<[1], [0], [0], [1], [0, 0, 1, 1], [], []>} : vector<8x32xf32>, vector<32x32xf32>, vector<8x32xf32> -> vector<8x32xf32>
    %434 = arith.addf %415, %433 : vector<8x32xf32>
    %c176 = arith.constant 176 : index
    %c0_130 = arith.constant 0 : index
    %435 = vector.load %arg11[%c176, %c0_130] : memref<240x128xf32, #tpu.memory_space<vmem>>, vector<8x128xf32>
    %cst_131 = arith.constant dense<0.000000e+00> : vector<8x128xf32>
    %436 = tpu.matmul %430, %7, %cst_131 {dimension_numbers = #tpu.dot_dimension_numbers<[1], [0], [0], [1], [0, 0, 1, 1], [], []>} : vector<8x32xf32>, vector<32x128xf32>, vector<8x128xf32> -> vector<8x128xf32>
    %437 = arith.addf %435, %436 : vector<8x128xf32>
    %438 = math.tanh %437 : vector<8x128xf32>
    %439 = arith.mulf %438, %10 : vector<8x128xf32>
    %440 = arith.addf %439, %13 : vector<8x128xf32>
    %441 = vector.extract_strided_slice %440 {offsets = [0, 32], sizes = [8, 32], strides = [1, 1]} : vector<8x128xf32> to vector<8x32xf32>
    %442 = arith.mulf %441, %427 : vector<8x32xf32>
    %443 = vector.extract_strided_slice %440 {offsets = [0, 0], sizes = [8, 32], strides = [1, 1]} : vector<8x128xf32> to vector<8x32xf32>
    %444 = vector.extract_strided_slice %440 {offsets = [0, 64], sizes = [8, 32], strides = [1, 1]} : vector<8x128xf32> to vector<8x32xf32>
    %445 = arith.mulf %443, %444 : vector<8x32xf32>
    %446 = arith.addf %442, %445 : vector<8x32xf32>
    %447 = vector.extract_strided_slice %440 {offsets = [0, 96], sizes = [8, 32], strides = [1, 1]} : vector<8x128xf32> to vector<8x32xf32>
    %448 = math.tanh %446 : vector<8x32xf32>
    %449 = arith.mulf %447, %448 : vector<8x32xf32>
    %c22 = arith.constant 22 : index
    %c0_132 = arith.constant 0 : index
    %c0_133 = arith.constant 0 : index
    %450 = vector.load %arg6[%c22, %c0_132, %c0_133] : memref<30x32x32xf32, #tpu.memory_space<vmem>>, vector<1x32x32xf32>
    %451 = vector.shape_cast %450 : vector<1x32x32xf32> to vector<32x32xf32>
    %cst_134 = arith.constant dense<0.000000e+00> : vector<8x32xf32>
    %452 = tpu.matmul %449, %451, %cst_134 {dimension_numbers = #tpu.dot_dimension_numbers<[1], [0], [0], [1], [0, 0, 1, 1], [], []>} : vector<8x32xf32>, vector<32x32xf32>, vector<8x32xf32> -> vector<8x32xf32>
    %453 = arith.addf %434, %452 : vector<8x32xf32>
    %c184 = arith.constant 184 : index
    %c0_135 = arith.constant 0 : index
    %454 = vector.load %arg11[%c184, %c0_135] : memref<240x128xf32, #tpu.memory_space<vmem>>, vector<8x128xf32>
    %cst_136 = arith.constant dense<0.000000e+00> : vector<8x128xf32>
    %455 = tpu.matmul %449, %7, %cst_136 {dimension_numbers = #tpu.dot_dimension_numbers<[1], [0], [0], [1], [0, 0, 1, 1], [], []>} : vector<8x32xf32>, vector<32x128xf32>, vector<8x128xf32> -> vector<8x128xf32>
    %456 = arith.addf %454, %455 : vector<8x128xf32>
    %457 = math.tanh %456 : vector<8x128xf32>
    %458 = arith.mulf %457, %10 : vector<8x128xf32>
    %459 = arith.addf %458, %13 : vector<8x128xf32>
    %460 = vector.extract_strided_slice %459 {offsets = [0, 32], sizes = [8, 32], strides = [1, 1]} : vector<8x128xf32> to vector<8x32xf32>
    %461 = arith.mulf %460, %446 : vector<8x32xf32>
    %462 = vector.extract_strided_slice %459 {offsets = [0, 0], sizes = [8, 32], strides = [1, 1]} : vector<8x128xf32> to vector<8x32xf32>
    %463 = vector.extract_strided_slice %459 {offsets = [0, 64], sizes = [8, 32], strides = [1, 1]} : vector<8x128xf32> to vector<8x32xf32>
    %464 = arith.mulf %462, %463 : vector<8x32xf32>
    %465 = arith.addf %461, %464 : vector<8x32xf32>
    %466 = vector.extract_strided_slice %459 {offsets = [0, 96], sizes = [8, 32], strides = [1, 1]} : vector<8x128xf32> to vector<8x32xf32>
    %467 = math.tanh %465 : vector<8x32xf32>
    %468 = arith.mulf %466, %467 : vector<8x32xf32>
    %c23 = arith.constant 23 : index
    %c0_137 = arith.constant 0 : index
    %c0_138 = arith.constant 0 : index
    %469 = vector.load %arg6[%c23, %c0_137, %c0_138] : memref<30x32x32xf32, #tpu.memory_space<vmem>>, vector<1x32x32xf32>
    %470 = vector.shape_cast %469 : vector<1x32x32xf32> to vector<32x32xf32>
    %cst_139 = arith.constant dense<0.000000e+00> : vector<8x32xf32>
    %471 = tpu.matmul %468, %470, %cst_139 {dimension_numbers = #tpu.dot_dimension_numbers<[1], [0], [0], [1], [0, 0, 1, 1], [], []>} : vector<8x32xf32>, vector<32x32xf32>, vector<8x32xf32> -> vector<8x32xf32>
    %472 = arith.addf %453, %471 : vector<8x32xf32>
    %c192 = arith.constant 192 : index
    %c0_140 = arith.constant 0 : index
    %473 = vector.load %arg11[%c192, %c0_140] : memref<240x128xf32, #tpu.memory_space<vmem>>, vector<8x128xf32>
    %cst_141 = arith.constant dense<0.000000e+00> : vector<8x128xf32>
    %474 = tpu.matmul %468, %7, %cst_141 {dimension_numbers = #tpu.dot_dimension_numbers<[1], [0], [0], [1], [0, 0, 1, 1], [], []>} : vector<8x32xf32>, vector<32x128xf32>, vector<8x128xf32> -> vector<8x128xf32>
    %475 = arith.addf %473, %474 : vector<8x128xf32>
    %476 = math.tanh %475 : vector<8x128xf32>
    %477 = arith.mulf %476, %10 : vector<8x128xf32>
    %478 = arith.addf %477, %13 : vector<8x128xf32>
    %479 = vector.extract_strided_slice %478 {offsets = [0, 32], sizes = [8, 32], strides = [1, 1]} : vector<8x128xf32> to vector<8x32xf32>
    %480 = arith.mulf %479, %465 : vector<8x32xf32>
    %481 = vector.extract_strided_slice %478 {offsets = [0, 0], sizes = [8, 32], strides = [1, 1]} : vector<8x128xf32> to vector<8x32xf32>
    %482 = vector.extract_strided_slice %478 {offsets = [0, 64], sizes = [8, 32], strides = [1, 1]} : vector<8x128xf32> to vector<8x32xf32>
    %483 = arith.mulf %481, %482 : vector<8x32xf32>
    %484 = arith.addf %480, %483 : vector<8x32xf32>
    %485 = vector.extract_strided_slice %478 {offsets = [0, 96], sizes = [8, 32], strides = [1, 1]} : vector<8x128xf32> to vector<8x32xf32>
    %486 = math.tanh %484 : vector<8x32xf32>
    %487 = arith.mulf %485, %486 : vector<8x32xf32>
    %c24_142 = arith.constant 24 : index
    %c0_143 = arith.constant 0 : index
    %c0_144 = arith.constant 0 : index
    %488 = vector.load %arg6[%c24_142, %c0_143, %c0_144] : memref<30x32x32xf32, #tpu.memory_space<vmem>>, vector<1x32x32xf32>
    %489 = vector.shape_cast %488 : vector<1x32x32xf32> to vector<32x32xf32>
    %cst_145 = arith.constant dense<0.000000e+00> : vector<8x32xf32>
    %490 = tpu.matmul %487, %489, %cst_145 {dimension_numbers = #tpu.dot_dimension_numbers<[1], [0], [0], [1], [0, 0, 1, 1], [], []>} : vector<8x32xf32>, vector<32x32xf32>, vector<8x32xf32> -> vector<8x32xf32>
    %491 = arith.addf %472, %490 : vector<8x32xf32>
    %c200 = arith.constant 200 : index
    %c0_146 = arith.constant 0 : index
    %492 = vector.load %arg11[%c200, %c0_146] : memref<240x128xf32, #tpu.memory_space<vmem>>, vector<8x128xf32>
    %cst_147 = arith.constant dense<0.000000e+00> : vector<8x128xf32>
    %493 = tpu.matmul %487, %7, %cst_147 {dimension_numbers = #tpu.dot_dimension_numbers<[1], [0], [0], [1], [0, 0, 1, 1], [], []>} : vector<8x32xf32>, vector<32x128xf32>, vector<8x128xf32> -> vector<8x128xf32>
    %494 = arith.addf %492, %493 : vector<8x128xf32>
    %495 = math.tanh %494 : vector<8x128xf32>
    %496 = arith.mulf %495, %10 : vector<8x128xf32>
    %497 = arith.addf %496, %13 : vector<8x128xf32>
    %498 = vector.extract_strided_slice %497 {offsets = [0, 32], sizes = [8, 32], strides = [1, 1]} : vector<8x128xf32> to vector<8x32xf32>
    %499 = arith.mulf %498, %484 : vector<8x32xf32>
    %500 = vector.extract_strided_slice %497 {offsets = [0, 0], sizes = [8, 32], strides = [1, 1]} : vector<8x128xf32> to vector<8x32xf32>
    %501 = vector.extract_strided_slice %497 {offsets = [0, 64], sizes = [8, 32], strides = [1, 1]} : vector<8x128xf32> to vector<8x32xf32>
    %502 = arith.mulf %500, %501 : vector<8x32xf32>
    %503 = arith.addf %499, %502 : vector<8x32xf32>
    %504 = vector.extract_strided_slice %497 {offsets = [0, 96], sizes = [8, 32], strides = [1, 1]} : vector<8x128xf32> to vector<8x32xf32>
    %505 = math.tanh %503 : vector<8x32xf32>
    %506 = arith.mulf %504, %505 : vector<8x32xf32>
    %c25 = arith.constant 25 : index
    %c0_148 = arith.constant 0 : index
    %c0_149 = arith.constant 0 : index
    %507 = vector.load %arg6[%c25, %c0_148, %c0_149] : memref<30x32x32xf32, #tpu.memory_space<vmem>>, vector<1x32x32xf32>
    %508 = vector.shape_cast %507 : vector<1x32x32xf32> to vector<32x32xf32>
    %cst_150 = arith.constant dense<0.000000e+00> : vector<8x32xf32>
    %509 = tpu.matmul %506, %508, %cst_150 {dimension_numbers = #tpu.dot_dimension_numbers<[1], [0], [0], [1], [0, 0, 1, 1], [], []>} : vector<8x32xf32>, vector<32x32xf32>, vector<8x32xf32> -> vector<8x32xf32>
    %510 = arith.addf %491, %509 : vector<8x32xf32>
    %c208 = arith.constant 208 : index
    %c0_151 = arith.constant 0 : index
    %511 = vector.load %arg11[%c208, %c0_151] : memref<240x128xf32, #tpu.memory_space<vmem>>, vector<8x128xf32>
    %cst_152 = arith.constant dense<0.000000e+00> : vector<8x128xf32>
    %512 = tpu.matmul %506, %7, %cst_152 {dimension_numbers = #tpu.dot_dimension_numbers<[1], [0], [0], [1], [0, 0, 1, 1], [], []>} : vector<8x32xf32>, vector<32x128xf32>, vector<8x128xf32> -> vector<8x128xf32>
    %513 = arith.addf %511, %512 : vector<8x128xf32>
    %514 = math.tanh %513 : vector<8x128xf32>
    %515 = arith.mulf %514, %10 : vector<8x128xf32>
    %516 = arith.addf %515, %13 : vector<8x128xf32>
    %517 = vector.extract_strided_slice %516 {offsets = [0, 32], sizes = [8, 32], strides = [1, 1]} : vector<8x128xf32> to vector<8x32xf32>
    %518 = arith.mulf %517, %503 : vector<8x32xf32>
    %519 = vector.extract_strided_slice %516 {offsets = [0, 0], sizes = [8, 32], strides = [1, 1]} : vector<8x128xf32> to vector<8x32xf32>
    %520 = vector.extract_strided_slice %516 {offsets = [0, 64], sizes = [8, 32], strides = [1, 1]} : vector<8x128xf32> to vector<8x32xf32>
    %521 = arith.mulf %519, %520 : vector<8x32xf32>
    %522 = arith.addf %518, %521 : vector<8x32xf32>
    %523 = vector.extract_strided_slice %516 {offsets = [0, 96], sizes = [8, 32], strides = [1, 1]} : vector<8x128xf32> to vector<8x32xf32>
    %524 = math.tanh %522 : vector<8x32xf32>
    %525 = arith.mulf %523, %524 : vector<8x32xf32>
    %c26 = arith.constant 26 : index
    %c0_153 = arith.constant 0 : index
    %c0_154 = arith.constant 0 : index
    %526 = vector.load %arg6[%c26, %c0_153, %c0_154] : memref<30x32x32xf32, #tpu.memory_space<vmem>>, vector<1x32x32xf32>
    %527 = vector.shape_cast %526 : vector<1x32x32xf32> to vector<32x32xf32>
    %cst_155 = arith.constant dense<0.000000e+00> : vector<8x32xf32>
    %528 = tpu.matmul %525, %527, %cst_155 {dimension_numbers = #tpu.dot_dimension_numbers<[1], [0], [0], [1], [0, 0, 1, 1], [], []>} : vector<8x32xf32>, vector<32x32xf32>, vector<8x32xf32> -> vector<8x32xf32>
    %529 = arith.addf %510, %528 : vector<8x32xf32>
    %c216 = arith.constant 216 : index
    %c0_156 = arith.constant 0 : index
    %530 = vector.load %arg11[%c216, %c0_156] : memref<240x128xf32, #tpu.memory_space<vmem>>, vector<8x128xf32>
    %cst_157 = arith.constant dense<0.000000e+00> : vector<8x128xf32>
    %531 = tpu.matmul %525, %7, %cst_157 {dimension_numbers = #tpu.dot_dimension_numbers<[1], [0], [0], [1], [0, 0, 1, 1], [], []>} : vector<8x32xf32>, vector<32x128xf32>, vector<8x128xf32> -> vector<8x128xf32>
    %532 = arith.addf %530, %531 : vector<8x128xf32>
    %533 = math.tanh %532 : vector<8x128xf32>
    %534 = arith.mulf %533, %10 : vector<8x128xf32>
    %535 = arith.addf %534, %13 : vector<8x128xf32>
    %536 = vector.extract_strided_slice %535 {offsets = [0, 32], sizes = [8, 32], strides = [1, 1]} : vector<8x128xf32> to vector<8x32xf32>
    %537 = arith.mulf %536, %522 : vector<8x32xf32>
    %538 = vector.extract_strided_slice %535 {offsets = [0, 0], sizes = [8, 32], strides = [1, 1]} : vector<8x128xf32> to vector<8x32xf32>
    %539 = vector.extract_strided_slice %535 {offsets = [0, 64], sizes = [8, 32], strides = [1, 1]} : vector<8x128xf32> to vector<8x32xf32>
    %540 = arith.mulf %538, %539 : vector<8x32xf32>
    %541 = arith.addf %537, %540 : vector<8x32xf32>
    %542 = vector.extract_strided_slice %535 {offsets = [0, 96], sizes = [8, 32], strides = [1, 1]} : vector<8x128xf32> to vector<8x32xf32>
    %543 = math.tanh %541 : vector<8x32xf32>
    %544 = arith.mulf %542, %543 : vector<8x32xf32>
    %c27 = arith.constant 27 : index
    %c0_158 = arith.constant 0 : index
    %c0_159 = arith.constant 0 : index
    %545 = vector.load %arg6[%c27, %c0_158, %c0_159] : memref<30x32x32xf32, #tpu.memory_space<vmem>>, vector<1x32x32xf32>
    %546 = vector.shape_cast %545 : vector<1x32x32xf32> to vector<32x32xf32>
    %cst_160 = arith.constant dense<0.000000e+00> : vector<8x32xf32>
    %547 = tpu.matmul %544, %546, %cst_160 {dimension_numbers = #tpu.dot_dimension_numbers<[1], [0], [0], [1], [0, 0, 1, 1], [], []>} : vector<8x32xf32>, vector<32x32xf32>, vector<8x32xf32> -> vector<8x32xf32>
    %548 = arith.addf %529, %547 : vector<8x32xf32>
    %c224 = arith.constant 224 : index
    %c0_161 = arith.constant 0 : index
    %549 = vector.load %arg11[%c224, %c0_161] : memref<240x128xf32, #tpu.memory_space<vmem>>, vector<8x128xf32>
    %cst_162 = arith.constant dense<0.000000e+00> : vector<8x128xf32>
    %550 = tpu.matmul %544, %7, %cst_162 {dimension_numbers = #tpu.dot_dimension_numbers<[1], [0], [0], [1], [0, 0, 1, 1], [], []>} : vector<8x32xf32>, vector<32x128xf32>, vector<8x128xf32> -> vector<8x128xf32>
    %551 = arith.addf %549, %550 : vector<8x128xf32>
    %552 = math.tanh %551 : vector<8x128xf32>
    %553 = arith.mulf %552, %10 : vector<8x128xf32>
    %554 = arith.addf %553, %13 : vector<8x128xf32>
    %555 = vector.extract_strided_slice %554 {offsets = [0, 32], sizes = [8, 32], strides = [1, 1]} : vector<8x128xf32> to vector<8x32xf32>
    %556 = arith.mulf %555, %541 : vector<8x32xf32>
    %557 = vector.extract_strided_slice %554 {offsets = [0, 0], sizes = [8, 32], strides = [1, 1]} : vector<8x128xf32> to vector<8x32xf32>
    %558 = vector.extract_strided_slice %554 {offsets = [0, 64], sizes = [8, 32], strides = [1, 1]} : vector<8x128xf32> to vector<8x32xf32>
    %559 = arith.mulf %557, %558 : vector<8x32xf32>
    %560 = arith.addf %556, %559 : vector<8x32xf32>
    %561 = vector.extract_strided_slice %554 {offsets = [0, 96], sizes = [8, 32], strides = [1, 1]} : vector<8x128xf32> to vector<8x32xf32>
    %562 = math.tanh %560 : vector<8x32xf32>
    %563 = arith.mulf %561, %562 : vector<8x32xf32>
    %c28 = arith.constant 28 : index
    %c0_163 = arith.constant 0 : index
    %c0_164 = arith.constant 0 : index
    %564 = vector.load %arg6[%c28, %c0_163, %c0_164] : memref<30x32x32xf32, #tpu.memory_space<vmem>>, vector<1x32x32xf32>
    %565 = vector.shape_cast %564 : vector<1x32x32xf32> to vector<32x32xf32>
    %cst_165 = arith.constant dense<0.000000e+00> : vector<8x32xf32>
    %566 = tpu.matmul %563, %565, %cst_165 {dimension_numbers = #tpu.dot_dimension_numbers<[1], [0], [0], [1], [0, 0, 1, 1], [], []>} : vector<8x32xf32>, vector<32x32xf32>, vector<8x32xf32> -> vector<8x32xf32>
    %567 = arith.addf %548, %566 : vector<8x32xf32>
    %c232 = arith.constant 232 : index
    %c0_166 = arith.constant 0 : index
    %568 = vector.load %arg11[%c232, %c0_166] : memref<240x128xf32, #tpu.memory_space<vmem>>, vector<8x128xf32>
    %cst_167 = arith.constant dense<0.000000e+00> : vector<8x128xf32>
    %569 = tpu.matmul %563, %7, %cst_167 {dimension_numbers = #tpu.dot_dimension_numbers<[1], [0], [0], [1], [0, 0, 1, 1], [], []>} : vector<8x32xf32>, vector<32x128xf32>, vector<8x128xf32> -> vector<8x128xf32>
    %570 = arith.addf %568, %569 : vector<8x128xf32>
    %571 = math.tanh %570 : vector<8x128xf32>
    %572 = arith.mulf %571, %10 : vector<8x128xf32>
    %573 = arith.addf %572, %13 : vector<8x128xf32>
    %574 = vector.extract_strided_slice %573 {offsets = [0, 32], sizes = [8, 32], strides = [1, 1]} : vector<8x128xf32> to vector<8x32xf32>
    %575 = arith.mulf %574, %560 : vector<8x32xf32>
    %576 = vector.extract_strided_slice %573 {offsets = [0, 0], sizes = [8, 32], strides = [1, 1]} : vector<8x128xf32> to vector<8x32xf32>
    %577 = vector.extract_strided_slice %573 {offsets = [0, 64], sizes = [8, 32], strides = [1, 1]} : vector<8x128xf32> to vector<8x32xf32>
    %578 = arith.mulf %576, %577 : vector<8x32xf32>
    %579 = arith.addf %575, %578 : vector<8x32xf32>
    %580 = vector.extract_strided_slice %573 {offsets = [0, 96], sizes = [8, 32], strides = [1, 1]} : vector<8x128xf32> to vector<8x32xf32>
    %581 = math.tanh %579 : vector<8x32xf32>
    %582 = arith.mulf %580, %581 : vector<8x32xf32>
    %c29 = arith.constant 29 : index
    %c0_168 = arith.constant 0 : index
    %c0_169 = arith.constant 0 : index
    %583 = vector.load %arg6[%c29, %c0_168, %c0_169] : memref<30x32x32xf32, #tpu.memory_space<vmem>>, vector<1x32x32xf32>
    %584 = vector.shape_cast %583 : vector<1x32x32xf32> to vector<32x32xf32>
    %cst_170 = arith.constant dense<0.000000e+00> : vector<8x32xf32>
    %585 = tpu.matmul %582, %584, %cst_170 {dimension_numbers = #tpu.dot_dimension_numbers<[1], [0], [0], [1], [0, 0, 1, 1], [], []>} : vector<8x32xf32>, vector<32x32xf32>, vector<8x32xf32> -> vector<8x32xf32>
    %586 = arith.addf %567, %585 : vector<8x32xf32>
    %c0_171 = arith.constant 0 : index
    %c0_172 = arith.constant 0 : index
    %587 = vector.load %arg7[%c0_171, %c0_172] : memref<1x32xf32, #tpu.memory_space<vmem>>, vector<1x32xf32>
    %588 = vector.broadcast %587 : vector<1x32xf32> to vector<8x32xf32>
    %589 = arith.addf %586, %588 : vector<8x32xf32>
    %cst_173 = arith.constant 0.000000e+00 : f32
    %590 = vector.broadcast %cst_173 : f32 to vector<8x32xf32>
    %591 = arith.maximumf %589, %590 : vector<8x32xf32>
    %c0_174 = arith.constant 0 : index
    %c0_175 = arith.constant 0 : index
    %592 = vector.load %arg8[%c0_174, %c0_175] : memref<32x1xf32, #tpu.memory_space<vmem>>, vector<32x1xf32>
    %cst_176 = arith.constant dense<0.000000e+00> : vector<8x1xf32>
    %593 = tpu.matmul %591, %592, %cst_176 {dimension_numbers = #tpu.dot_dimension_numbers<[1], [0], [0], [1], [0, 0, 1, 1], [], []>} : vector<8x32xf32>, vector<32x1xf32>, vector<8x1xf32> -> vector<8x1xf32>
    %c0_177 = arith.constant 0 : index
    %c0_178 = arith.constant 0 : index
    %594 = vector.load %arg9[%c0_177, %c0_178] : memref<1x1xf32, #tpu.memory_space<vmem>>, vector<1x1xf32>
    %595 = vector.broadcast %594 : vector<1x1xf32> to vector<8x1xf32>
    %596 = arith.addf %593, %595 : vector<8x1xf32>
    %c0_179 = arith.constant 0 : index
    %c0_180 = arith.constant 0 : index
    %597 = vector.load %arg10[%c0_179, %c0_180] : memref<8x1xf32, #tpu.memory_space<vmem>>, vector<8x1xf32>
    tpu.vector_store %arg10[%c0_179, %c0_180], %596 {strides = array<i32>} : memref<8x1xf32, #tpu.memory_space<vmem>>, vector<8x1xf32>,
    return
  }
}

</mosaic_0001>

<llo_original>
// kernel: tpu_custom_call.1
$region0: #{tpu_custom_call.1}
  #allocation0 [shape = 'u32[]', space=smem, size = 0x4, offset = 0x4, fixed_abs, tag = 'smem constant byte address 0x4 - core index']
  #allocation1 [shape = 'u32[72,128]{1,0:T(1,128)}', space=vmem, size = 0x9000, scoped, tag = 'internal scratch']
  #allocation2 [shape = 'f32[240,128]{1,0:T(8,128)}', space=vmem, size = 0x1e000, scoped, tag = 'scratch operand']
  #allocation3 [shape = 'f32[1,1]{1,0:T(1,128)S(1)}', space=vmem, size = 0x200, scoped, tag = 'scoped memory for tpu_custom_call.1']
  %s0 = inlined_call_operand.vmem [shape: f32[240,8], index: 0, kind: input, shape index: {}]
  %s1 = inlined_call_operand.vmem [shape: f32[8,128], index: 1, kind: input, shape index: {}]
  %s2 = inlined_call_operand.vmem [shape: f32[32,128], index: 2, kind: input, shape index: {}]
  %s3 = inlined_call_operand.vmem [shape: f32[1,128], index: 3, kind: input, shape index: {}]
  %s4 = inlined_call_operand.vmem [shape: f32[1,128], index: 4, kind: input, shape index: {}]
  %s5 = inlined_call_operand.vmem [shape: f32[1,128], index: 5, kind: input, shape index: {}]
  %s6 = inlined_call_operand.hbm [shape: f32[30,32,32], index: 6, kind: input, shape index: {}]
  %s7 = inlined_call_operand.vmem [shape: f32[1,32], index: 7, kind: input, shape index: {}]
  %s8 = inlined_call_operand.vmem [shape: f32[32,1], index: 8, kind: input, shape index: {}]
  %s9 = inlined_call_operand.<no memory space> [shape: f32[1,1], index: 9, kind: input, shape index: {}]
  %s10 = inlined_call_operand.vmem [shape: f32[8,1], index: 10, kind: output, shape index: {}]
  %s11 = sld [smem:[#allocation0]]
  $region54: #{tpu_custom_call.1} parent=0
    _
  %s13 = ssub.s32 1, %s11
  %s14 = scalar_select 0, %s13, %s11
  %v15 = vstv %s9
  %16 = vst [vmem:[#allocation3] sm:$0x1] %v15
  $region1: #{tpu_custom_call.1} parent=0
    #allocation4 [shape = 'u8[491520]{0}', space=vmem, size = 0x78000, scoped, tag = 'input window, operand 6, single buffered']
    #allocation5 [shape = 's32[1]{0}', space=sflag, size = 0x4, scoped, tag = 'scoped memory for tpu_custom_call.1']
    %17 = vsyncpa [#allocation5], 0
    // Predicated region
    $region2: #{tpu_custom_call.1} parent=1 // pred_check
      _
    $region3: #{tpu_custom_call.1} parent=1 // pred_check_branch
      %19 = sbr.rel (0) target = $region5
    $region4: #{tpu_custom_call.1} parent=1 // pred_region
      _
    $region5: #{tpu_custom_call.1} parent=1 // pred_fallthru
      _
    // Predicated region
    $region6: #{tpu_custom_call.1} parent=1 // pred_check
      _
    $region7: #{tpu_custom_call.1} parent=1 // pred_check_branch
      %21 = sbr.rel (0) target = $region9
    $region8: #{tpu_custom_call.1} parent=1 // pred_region
      _
    $region9: #{tpu_custom_call.1} parent=1 // pred_fallthru
      _
    // Predicated region
    $region10: #{tpu_custom_call.1} parent=1 // pred_check
      _
    $region11: #{tpu_custom_call.1} parent=1 // pred_check_branch
      %23 = sbr.rel (0) target = $region13
    $region12: #{tpu_custom_call.1} parent=1 // pred_region
      _
    $region13: #{tpu_custom_call.1} parent=1 // pred_fallthru
      _
    // Predicated region
    $region14: #{tpu_custom_call.1} parent=1 // pred_check
      _
    $region15: #{tpu_custom_call.1} parent=1 // pred_check_branch
      %25 = sbr.rel (0) target = $region17
    $region16: #{tpu_custom_call.1} parent=1 // pred_region
      _
    $region17: #{tpu_custom_call.1} parent=1 // pred_fallthru
      _
    // Predicated region
    $region18: #{tpu_custom_call.1} parent=1 // pred_check
      _
    $region19: #{tpu_custom_call.1} parent=1 // pred_check_branch
      %27 = sbr.rel (0) target = $region21
    $region20: #{tpu_custom_call.1} parent=1 // pred_region
      _
    $region21: #{tpu_custom_call.1} parent=1 // pred_fallthru
      _
    // Predicated region
    $region22: #{tpu_custom_call.1} parent=1 // pred_check
      _
    $region23: #{tpu_custom_call.1} parent=1 // pred_check_branch
      %29 = sbr.rel (0) target = $region25
    $region24: #{tpu_custom_call.1} parent=1 // pred_region
      _
    $region25: #{tpu_custom_call.1} parent=1 // pred_fallthru
      _
    // Predicated region
    $region26: #{tpu_custom_call.1} parent=1 // pred_check
      _
    $region27: #{tpu_custom_call.1} parent=1 // pred_check_branch
      %31 = sbr.rel (0) target = $region29
    $region28: #{tpu_custom_call.1} parent=1 // pred_region
      %33 = vsyncadd [#allocation5], 0
      %s34 = sshll.u32 %s6, 4
      %s35 = int_to_ptr.hbm [resolvable:$true] %s34
      %s36 = sshll.u32 [#allocation4], 4
      %s37 = int_to_ptr.vmem [resolvable:$true] %s36
      %42 = dma.hbm_to_vmem [thread:$0]  %s35, 15360, %s37, [#allocation5], 128, 128, 8
    $region29: #{tpu_custom_call.1} parent=1 // pred_fallthru
      _
    // Predicated region
    $region30: #{tpu_custom_call.1} parent=1 // pred_check
      _
    $region31: #{tpu_custom_call.1} parent=1 // pred_check_branch
      %44 = sbr.rel (0) target = $region33
    $region32: #{tpu_custom_call.1} parent=1 // pred_region
      _
    $region33: #{tpu_custom_call.1} parent=1 // pred_fallthru
      _
    // Predicated region
    $region34: #{tpu_custom_call.1} parent=1 // pred_check
      _
    $region35: #{tpu_custom_call.1} parent=1 // pred_check_branch
      %46 = sbr.rel (0) target = $region37
    $region36: #{tpu_custom_call.1} parent=1 // pred_region
      _
    $region37: #{tpu_custom_call.1} parent=1 // pred_fallthru
      _
    // Predicated region
    $region38: #{tpu_custom_call.1} parent=1 // pred_check
      _
    $region39: #{tpu_custom_call.1} parent=1 // pred_check_branch
      %48 = sbr.rel (0) target = $region41
    $region40: #{tpu_custom_call.1} parent=1 // pred_region
      _
    $region41: #{tpu_custom_call.1} parent=1 // pred_fallthru
      _
    // Predicated region
    $region42: #{tpu_custom_call.1} parent=1 // pred_check
      _
    $region43: #{tpu_custom_call.1} parent=1 // pred_check_branch
      %50 = sbr.rel (0) target = $region45
    $region44: #{tpu_custom_call.1} parent=1 // pred_region
      %52 = dma.done [#allocation5], 15360
    $region45: #{tpu_custom_call.1} parent=1 // pred_fallthru
      _
    %v53 = vld [vmem:[%s0] sm:$0xff]
    %v54 = vld [vmem:[%s0 + $0x8] sm:$0xff]
    %v55 = vld [vmem:[%s0 + $0x10] sm:$0xff]
    %v56 = vld [vmem:[%s0 + $0x18] sm:$0xff]
    %v57 = vld [vmem:[%s0 + $0x20] sm:$0xff]
    %v58 = vld [vmem:[%s0 + $0x28] sm:$0xff]
    %v59 = vld [vmem:[%s0 + $0x30] sm:$0xff]
    %v60 = vld [vmem:[%s0 + $0x38] sm:$0xff]
    %v61 = vld [vmem:[%s0 + $0x40] sm:$0xff]
    %v62 = vld [vmem:[%s0 + $0x48] sm:$0xff]
    %v63 = vld [vmem:[%s0 + $0x50] sm:$0xff]
    %v64 = vld [vmem:[%s0 + $0x58] sm:$0xff]
    %v65 = vld [vmem:[%s0 + $0x60] sm:$0xff]
    %v66 = vld [vmem:[%s0 + $0x68] sm:$0xff]
    %v67 = vld [vmem:[%s0 + $0x70] sm:$0xff]
    %v68 = vld [vmem:[%s0 + $0x78] sm:$0xff]
    %v69 = vld [vmem:[%s0 + $0x80] sm:$0xff]
    %v70 = vld [vmem:[%s0 + $0x88] sm:$0xff]
    %v71 = vld [vmem:[%s0 + $0x90] sm:$0xff]
    %v72 = vld [vmem:[%s0 + $0x98] sm:$0xff]
    %v73 = vld [vmem:[%s0 + $0xa0] sm:$0xff]
    %v74 = vld [vmem:[%s0 + $0xa8] sm:$0xff]
    %v75 = vld [vmem:[%s0 + $0xb0] sm:$0xff]
    %v76 = vld [vmem:[%s0 + $0xb8] sm:$0xff]
    %v77 = vld [vmem:[%s0 + $0xc0] sm:$0xff]
    %v78 = vld [vmem:[%s0 + $0xc8] sm:$0xff]
    %v79 = vld [vmem:[%s0 + $0xd0] sm:$0xff]
    %v80 = vld [vmem:[%s0 + $0xd8] sm:$0xff]
    %v81 = vld [vmem:[%s0 + $0xe0] sm:$0xff]
    %v82 = vld [vmem:[%s0 + $0xe8] sm:$0xff]
    %v83 = vld [vmem:[%s1] sm:$0xff]
    %v84 = vld [vmem:[%s3] sm:$0x1]
    %v86 = vperm.slane %v84, 0
    %vm88 = vcmask 64512
    %v90 = vsel %vm88, %v53, 0
    %v93 = vsel %vm88, %v54, 0
    %v96 = vsel %vm88, %v55, 0
    %v99 = vsel %vm88, %v56, 0
    %v102 = vsel %vm88, %v57, 0
    %v105 = vsel %vm88, %v58, 0
    %v108 = vsel %vm88, %v59, 0
    %v111 = vsel %vm88, %v60, 0
    %v114 = vsel %vm88, %v61, 0
    %v117 = vsel %vm88, %v62, 0
    %v120 = vsel %vm88, %v63, 0
    %v123 = vsel %vm88, %v64, 0
    %v126 = vsel %vm88, %v65, 0
    %v129 = vsel %vm88, %v66, 0
    %v132 = vsel %vm88, %v67, 0
    %v135 = vsel %vm88, %v68, 0
    %v138 = vsel %vm88, %v69, 0
    %v141 = vsel %vm88, %v70, 0
    %v144 = vsel %vm88, %v71, 0
    %v147 = vsel %vm88, %v72, 0
    %v150 = vsel %vm88, %v73, 0
    %v153 = vsel %vm88, %v74, 0
    %v156 = vsel %vm88, %v75, 0
    %v159 = vsel %vm88, %v76, 0
    %v162 = vsel %vm88, %v77, 0
    %v165 = vsel %vm88, %v78, 0
    %v168 = vsel %vm88, %v79, 0
    %v171 = vsel %vm88, %v80, 0
    %v174 = vsel %vm88, %v81, 0
    %v177 = vsel %vm88, %v82, 0
    %179 = vmatpush.msra.mxu0 0.0
    %180 = vmatpush.msra.mxu0 0.0
    %181 = vmatpush.msra.mxu0 0.0
    %182 = vmatpush.msra.mxu0 0.0
    %183 = vmatpush.msra.mxu0 0.0
    %184 = vmatpush.msra.mxu0 0.0
    %185 = vmatpush.msra.mxu0 0.0
    %186 = vmatpush.msra.mxu0 0.0
    %187 = vmatpush.msra.mxu0 0.0
    %188 = vmatpush.msra.mxu0 0.0
    %189 = vmatpush.msra.mxu0 0.0
    %190 = vmatpush.msra.mxu0 0.0
    %191 = vmatpush.msra.mxu0 0.0
    %192 = vmatpush.msra.mxu0 0.0
    %193 = vmatpush.msra.mxu0 0.0
    %194 = vmatpush.msra.mxu0 %v83
    %195 = vmatmul.f32.gmra.mxu0 %v90
    %v196 = vpop.f32.mrf.mxu0
    %v197 = vadd.f32 %v86, %v196
    %198 = vmatmul.f32.gmra.mxu0 %v93
    %v199 = vpop.f32.mrf.mxu0
    %v200 = vadd.f32 %v86, %v199
    %201 = vmatmul.f32.gmra.mxu0 %v96
    %v202 = vpop.f32.mrf.mxu0
    %v203 = vadd.f32 %v86, %v202
    %204 = vmatmul.f32.gmra.mxu0 %v99
    %v205 = vpop.f32.mrf.mxu0
    %v206 = vadd.f32 %v86, %v205
    %207 = vmatmul.f32.gmra.mxu0 %v102
    %v208 = vpop.f32.mrf.mxu0
    %v209 = vadd.f32 %v86, %v208
    %210 = vmatmul.f32.gmra.mxu0 %v105
    %v211 = vpop.f32.mrf.mxu0
    %v212 = vadd.f32 %v86, %v211
    %213 = vmatmul.f32.gmra.mxu0 %v108
    %v214 = vpop.f32.mrf.mxu0
    %v215 = vadd.f32 %v86, %v214
    %216 = vmatmul.f32.gmra.mxu0 %v111
    %v217 = vpop.f32.mrf.mxu0
    %v218 = vadd.f32 %v86, %v217
    %219 = vmatmul.f32.gmra.mxu0 %v114
    %v220 = vpop.f32.mrf.mxu0
    %v221 = vadd.f32 %v86, %v220
    %222 = vmatmul.f32.gmra.mxu0 %v117
    %v223 = vpop.f32.mrf.mxu0
    %v224 = vadd.f32 %v86, %v223
    %225 = vmatmul.f32.gmra.mxu0 %v120
    %v226 = vpop.f32.mrf.mxu0
    %v227 = vadd.f32 %v86, %v226
    %228 = vmatmul.f32.gmra.mxu0 %v123
    %v229 = vpop.f32.mrf.mxu0
    %v230 = vadd.f32 %v86, %v229
    %231 = vmatmul.f32.gmra.mxu0 %v126
    %v232 = vpop.f32.mrf.mxu0
    %v233 = vadd.f32 %v86, %v232
    %234 = vmatmul.f32.gmra.mxu0 %v129
    %v235 = vpop.f32.mrf.mxu0
    %v236 = vadd.f32 %v86, %v235
    %237 = vmatmul.f32.gmra.mxu0 %v132
    %v238 = vpop.f32.mrf.mxu0
    %v239 = vadd.f32 %v86, %v238
    %240 = vmatmul.f32.gmra.mxu0 %v135
    %v241 = vpop.f32.mrf.mxu0
    %v242 = vadd.f32 %v86, %v241
    %243 = vmatmul.f32.gmra.mxu0 %v138
    %v244 = vpop.f32.mrf.mxu0
    %v245 = vadd.f32 %v86, %v244
    %246 = vmatmul.f32.gmra.mxu0 %v141
    %v247 = vpop.f32.mrf.mxu0
    %v248 = vadd.f32 %v86, %v247
    %249 = vmatmul.f32.gmra.mxu0 %v144
    %v250 = vpop.f32.mrf.mxu0
    %v251 = vadd.f32 %v86, %v250
    %252 = vmatmul.f32.gmra.mxu0 %v147
    %v253 = vpop.f32.mrf.mxu0
    %v254 = vadd.f32 %v86, %v253
    %255 = vmatmul.f32.gmra.mxu0 %v150
    %v256 = vpop.f32.mrf.mxu0
    %v257 = vadd.f32 %v86, %v256
    %258 = vmatmul.f32.gmra.mxu0 %v153
    %v259 = vpop.f32.mrf.mxu0
    %v260 = vadd.f32 %v86, %v259
    %261 = vmatmul.f32.gmra.mxu0 %v156
    %v262 = vpop.f32.mrf.mxu0
    %v263 = vadd.f32 %v86, %v262
    %264 = vmatmul.f32.gmra.mxu0 %v159
    %v265 = vpop.f32.mrf.mxu0
    %v266 = vadd.f32 %v86, %v265
    %267 = vmatmul.f32.gmra.mxu0 %v162
    %v268 = vpop.f32.mrf.mxu0
    %v269 = vadd.f32 %v86, %v268
    %270 = vmatmul.f32.gmra.mxu0 %v165
    %v271 = vpop.f32.mrf.mxu0
    %v272 = vadd.f32 %v86, %v271
    %273 = vmatmul.f32.gmra.mxu0 %v168
    %v274 = vpop.f32.mrf.mxu0
    %v275 = vadd.f32 %v86, %v274
    %276 = vmatmul.f32.gmra.mxu0 %v171
    %v277 = vpop.f32.mrf.mxu0
    %v278 = vadd.f32 %v86, %v277
    %279 = vmatmul.f32.gmra.mxu0 %v174
    %v280 = vpop.f32.mrf.mxu0
    %v281 = vadd.f32 %v86, %v280
    %282 = vmatmul.f32.gmra.mxu0 %v177
    %v283 = vpop.f32.mrf.mxu0
    %v284 = vadd.f32 %v86, %v283
    %285 = vdwg.mxu0
    %286 = vst [vmem:[#allocation2] sm:$0xff] %v197
    %287 = vst [vmem:[#allocation2 + $0x8] sm:$0xff] %v200
    %288 = vst [vmem:[#allocation2 + $0x10] sm:$0xff] %v203
    %289 = vst [vmem:[#allocation2 + $0x18] sm:$0xff] %v206
    %290 = vst [vmem:[#allocation2 + $0x20] sm:$0xff] %v209
    %291 = vst [vmem:[#allocation2 + $0x28] sm:$0xff] %v212
    %292 = vst [vmem:[#allocation2 + $0x30] sm:$0xff] %v215
    %293 = vst [vmem:[#allocation2 + $0x38] sm:$0xff] %v218
    %294 = vst [vmem:[#allocation2 + $0x40] sm:$0xff] %v221
    %295 = vst [vmem:[#allocation2 + $0x48] sm:$0xff] %v224
    %296 = vst [vmem:[#allocation2 + $0x50] sm:$0xff] %v227
    %297 = vst [vmem:[#allocation2 + $0x58] sm:$0xff] %v230
    %298 = vst [vmem:[#allocation2 + $0x60] sm:$0xff] %v233
    %299 = vst [vmem:[#allocation2 + $0x68] sm:$0xff] %v236
    %300 = vst [vmem:[#allocation2 + $0x70] sm:$0xff] %v239
    %301 = vst [vmem:[#allocation2 + $0x78] sm:$0xff] %v242
    %302 = vst [vmem:[#allocation2 + $0x80] sm:$0xff] %v245
    %303 = vst [vmem:[#allocation2 + $0x88] sm:$0xff] %v248
    %304 = vst [vmem:[#allocation2 + $0x90] sm:$0xff] %v251
    %305 = vst [vmem:[#allocation2 + $0x98] sm:$0xff] %v254
    %306 = vst [vmem:[#allocation2 + $0xa0] sm:$0xff] %v257
    %307 = vst [vmem:[#allocation2 + $0xa8] sm:$0xff] %v260
    %308 = vst [vmem:[#allocation2 + $0xb0] sm:$0xff] %v263
    %309 = vst [vmem:[#allocation2 + $0xb8] sm:$0xff] %v266
    %310 = vst [vmem:[#allocation2 + $0xc0] sm:$0xff] %v269
    %311 = vst [vmem:[#allocation2 + $0xc8] sm:$0xff] %v272
    %312 = vst [vmem:[#allocation2 + $0xd0] sm:$0xff] %v275
    %313 = vst [vmem:[#allocation2 + $0xd8] sm:$0xff] %v278
    %314 = vst [vmem:[#allocation2 + $0xe0] sm:$0xff] %v281
    %315 = vst [vmem:[#allocation2 + $0xe8] sm:$0xff] %v284
    %v316 = vld [vmem:[%s2] sm:$0xff]
    %v317 = vld [vmem:[%s2 + $0x8] sm:$0xff]
    %v318 = vld [vmem:[%s2 + $0x10] sm:$0xff]
    %v319 = vld [vmem:[%s2 + $0x18] sm:$0xff]
    %v320 = vld [vmem:[%s4] sm:$0x1]
    %v322 = vperm.slane %v320, 0
    %v324 = vld [vmem:[%s5] sm:$0x1]
    %v326 = vperm.slane %v324, 0
    %v328 = vld [vmem:[#allocation2] sm:$0xff]
    %vm329 = vcmask 261120
    %v331 = vsel %vm329, 0.0, 0
    %333 = vmatpush.msra.mxu0 0.0
    %334 = vmatpush.msra.mxu0 0.0
    %335 = vmatpush.msra.mxu0 0.0
    %336 = vmatpush.msra.mxu0 0.0
    %337 = vmatpush.msra.mxu0 0.0
    %338 = vmatpush.msra.mxu0 0.0
    %339 = vmatpush.msra.mxu0 0.0
    %340 = vmatpush.msra.mxu0 0.0
    %341 = vmatpush.msra.mxu0 0.0
    %342 = vmatpush.msra.mxu0 0.0
    %343 = vmatpush.msra.mxu0 0.0
    %344 = vmatpush.msra.mxu0 0.0
    %345 = vmatpush.msra.mxu0 %v319
    %346 = vmatpush.msra.mxu0 %v318
    %347 = vmatpush.msra.mxu0 %v317
    %348 = vmatpush.msra.mxu0 %v316
    %349 = vmatmul.f32.gmra.mxu0 %v331
    %v350 = vpop.f32.mrf.mxu0
    %v351 = vadd.f32 0.0, %v350
    %352 = vdwg.mxu0
    %v353 = vadd.f32 %v328, %v351
    %v354 = vtanh.pop %v353
    %v355 = vmul.f32 %v354, %v322
    %v356 = vadd.f32 %v355, %v326
    %v357 = vmul.f32 %v356, 0.0
    %359 = vrot.lane.b32.xlu0 %v356, 64
    %v360 = vpop.permute.xlu0 %359
    %v362 = vmul.f32 %v356, %v360
    %364 = vrot.lane.b32.xlu0 %v362, 32
    %v365 = vpop.permute.xlu0 %364
    %v367 = vadd.f32 %v357, %v365
    %v368 = vtanh.pop %v367
    %370 = vrot.lane.b32.xlu0 %v368, 64
    %v371 = vpop.permute.xlu0 %370
    %v373 = vmul.f32 %v356, %v371
    %v374 = vld [vmem:[#allocation4] sm:$0xff]
    %v375 = vld [vmem:[#allocation4 + $0x8] sm:$0xff]
    %v376 = vld [vmem:[#allocation4 + $0x10] sm:$0xff]
    %v377 = vld [vmem:[#allocation4 + $0x18] sm:$0xff]
    %v378 = vld [vmem:[#allocation2 + $0x8] sm:$0xff]
    %380 = vrot.lane.b32.xlu0 %v373, 32
    %v381 = vpop.permute.xlu0 %380
    %v382 = vsel %vm329, %v381, 0
    %384 = vmatpush.msra.mxu0 0.0
    %385 = vmatpush.msra.mxu0 0.0
    %386 = vmatpush.msra.mxu0 0.0
    %387 = vmatpush.msra.mxu0 0.0
    %388 = vmatpush.msra.mxu0 0.0
    %389 = vmatpush.msra.mxu0 0.0
    %390 = vmatpush.msra.mxu0 0.0
    %391 = vmatpush.msra.mxu0 0.0
    %392 = vmatpush.msra.mxu0 0.0
    %393 = vmatpush.msra.mxu0 0.0
    %394 = vmatpush.msra.mxu0 0.0
    %395 = vmatpush.msra.mxu0 0.0
    %396 = vmatpush.msra.mxu0 %v319
    %397 = vmatpush.msra.mxu0 %v318
    %398 = vmatpush.msra.mxu0 %v317
    %399 = vmatpush.msra.mxu0 %v316
    %400 = vmatmul.f32.gmra.mxu0 %v382
    %v401 = vpop.f32.mrf.mxu0
    %v402 = vadd.f32 0.0, %v401
    %403 = vdwg.mxu0
    %v404 = vadd.f32 %v378, %v402
    %v405 = vtanh.pop %v404
    %v406 = vmul.f32 %v405, %v322
    %v407 = vadd.f32 %v406, %v326
    %v408 = vmul.f32 %v407, %v367
    %410 = vrot.lane.b32.xlu0 %v407, 64
    %v411 = vpop.permute.xlu0 %410
    %v413 = vmul.f32 %v407, %v411
    %415 = vrot.lane.b32.xlu0 %v413, 32
    %v416 = vpop.permute.xlu0 %415
    %v418 = vadd.f32 %v408, %v416
    %v419 = vtanh.pop %v418
    %421 = vrot.lane.b32.xlu0 %v419, 64
    %v422 = vpop.permute.xlu0 %421
    %v424 = vmul.f32 %v407, %v422
    %s425 = scalar_lea.vmem [#allocation4], 32
    %v426 = vld [vmem:[%s425] sm:$0xff]
    %v427 = vld [vmem:[%s425 + $0x8] sm:$0xff]
    %v428 = vld [vmem:[%s425 + $0x10] sm:$0xff]
    %v429 = vld [vmem:[%s425 + $0x18] sm:$0xff]
    %431 = vrot.lane.b32.xlu0 %v424, 32
    %v432 = vpop.permute.xlu0 %431
    %v433 = vsel %vm329, %v432, 0
    %435 = vmatpush.msra.mxu0 0.0
    %436 = vmatpush.msra.mxu0 0.0
    %437 = vmatpush.msra.mxu0 0.0
    %438 = vmatpush.msra.mxu0 0.0
    %439 = vmatpush.msra.mxu0 0.0
    %440 = vmatpush.msra.mxu0 0.0
    %441 = vmatpush.msra.mxu0 0.0
    %442 = vmatpush.msra.mxu0 0.0
    %443 = vmatpush.msra.mxu0 0.0
    %444 = vmatpush.msra.mxu0 0.0
    %445 = vmatpush.msra.mxu0 0.0
    %446 = vmatpush.msra.mxu0 0.0
    %447 = vmatpush.msra.mxu0 %v429
    %448 = vmatpush.msra.mxu0 %v428
    %449 = vmatpush.msra.mxu0 %v427
    %450 = vmatpush.msra.mxu0 %v426
    %451 = vmatmul.f32.gmra.mxu0 %v433
    %v452 = vpop.f32.mrf.mxu0
    %v453 = vadd.f32 0.0, %v452
    %454 = vdwg.mxu0
    %455 = vmatpush.msra.mxu0 0.0
    %456 = vmatpush.msra.mxu0 0.0
    %457 = vmatpush.msra.mxu0 0.0
    %458 = vmatpush.msra.mxu0 0.0
    %459 = vmatpush.msra.mxu0 0.0
    %460 = vmatpush.msra.mxu0 0.0
    %461 = vmatpush.msra.mxu0 0.0
    %462 = vmatpush.msra.mxu0 0.0
    %463 = vmatpush.msra.mxu0 0.0
    %464 = vmatpush.msra.mxu0 0.0
    %465 = vmatpush.msra.mxu0 0.0
    %466 = vmatpush.msra.mxu0 0.0
    %467 = vmatpush.msra.mxu0 %v377
    %468 = vmatpush.msra.mxu0 %v376
    %469 = vmatpush.msra.mxu0 %v375
    %470 = vmatpush.msra.mxu0 %v374
    %471 = vmatmul.f32.gmra.mxu0 %v382
    %v472 = vpop.f32.mrf.mxu0
    %v473 = vadd.f32 %v453, %v472
    %474 = vdwg.mxu0
    %v475 = vld [vmem:[#allocation2 + $0x10] sm:$0xff]
    %476 = vmatpush.msra.mxu0 0.0
    %477 = vmatpush.msra.mxu0 0.0
    %478 = vmatpush.msra.mxu0 0.0
    %479 = vmatpush.msra.mxu0 0.0
    %480 = vmatpush.msra.mxu0 0.0
    %481 = vmatpush.msra.mxu0 0.0
    %482 = vmatpush.msra.mxu0 0.0
    %483 = vmatpush.msra.mxu0 0.0
    %484 = vmatpush.msra.mxu0 0.0
    %485 = vmatpush.msra.mxu0 0.0
    %486 = vmatpush.msra.mxu0 0.0
    %487 = vmatpush.msra.mxu0 0.0
    %488 = vmatpush.msra.mxu0 %v319
    %489 = vmatpush.msra.mxu0 %v318
    %490 = vmatpush.msra.mxu0 %v317
    %491 = vmatpush.msra.mxu0 %v316
    %492 = vmatmul.f32.gmra.mxu0 %v433
    %v493 = vpop.f32.mrf.mxu0
    %v494 = vadd.f32 0.0, %v493
    %495 = vdwg.mxu0
    %v496 = vadd.f32 %v475, %v494
    %v497 = vtanh.pop %v496
    %v498 = vmul.f32 %v497, %v322
    %v499 = vadd.f32 %v498, %v326
    %v500 = vmul.f32 %v499, %v418
    %502 = vrot.lane.b32.xlu0 %v499, 64
    %v503 = vpop.permute.xlu0 %502
    %v505 = vmul.f32 %v499, %v503
    %507 = vrot.lane.b32.xlu0 %v505, 32
    %v508 = vpop.permute.xlu0 %507
    %v510 = vadd.f32 %v500, %v508
    %v511 = vtanh.pop %v510
    %513 = vrot.lane.b32.xlu0 %v511, 64
    %v514 = vpop.permute.xlu0 %513
    %v516 = vmul.f32 %v499, %v514
    %s517 = scalar_lea.vmem [#allocation4], 64
    %v518 = vld [vmem:[%s517] sm:$0xff]
    %v519 = vld [vmem:[%s517 + $0x8] sm:$0xff]
    %v520 = vld [vmem:[%s517 + $0x10] sm:$0xff]
    %v521 = vld [vmem:[%s517 + $0x18] sm:$0xff]
    %523 = vrot.lane.b32.xlu0 %v516, 32
    %v524 = vpop.permute.xlu0 %523
    %v525 = vsel %vm329, %v524, 0
    %527 = vmatpush.msra.mxu0 0.0
    %528 = vmatpush.msra.mxu0 0.0
    %529 = vmatpush.msra.mxu0 0.0
    %530 = vmatpush.msra.mxu0 0.0
    %531 = vmatpush.msra.mxu0 0.0
    %532 = vmatpush.msra.mxu0 0.0
    %533 = vmatpush.msra.mxu0 0.0
    %534 = vmatpush.msra.mxu0 0.0
    %535 = vmatpush.msra.mxu0 0.0
    %536 = vmatpush.msra.mxu0 0.0
    %537 = vmatpush.msra.mxu0 0.0
    %538 = vmatpush.msra.mxu0 0.0
    %539 = vmatpush.msra.mxu0 %v521
    %540 = vmatpush.msra.mxu0 %v520
    %541 = vmatpush.msra.mxu0 %v519
    %542 = vmatpush.msra.mxu0 %v518
    %543 = vmatmul.f32.gmra.mxu0 %v525
    %v544 = vpop.f32.mrf.mxu0
    %v545 = vadd.f32 0.0, %v544
    %546 = vdwg.mxu0
    %v547 = vadd.f32 %v473, %v545
    %v548 = vld [vmem:[#allocation2 + $0x18] sm:$0xff]
    %549 = vmatpush.msra.mxu0 0.0
    %550 = vmatpush.msra.mxu0 0.0
    %551 = vmatpush.msra.mxu0 0.0
    %552 = vmatpush.msra.mxu0 0.0
    %553 = vmatpush.msra.mxu0 0.0
    %554 = vmatpush.msra.mxu0 0.0
    %555 = vmatpush.msra.mxu0 0.0
    %556 = vmatpush.msra.mxu0 0.0
    %557 = vmatpush.msra.mxu0 0.0
    %558 = vmatpush.msra.mxu0 0.0
    %559 = vmatpush.msra.mxu0 0.0
    %560 = vmatpush.msra.mxu0 0.0
    %561 = vmatpush.msra.mxu0 %v319
    %562 = vmatpush.msra.mxu0 %v318
    %563 = vmatpush.msra.mxu0 %v317
    %564 = vmatpush.msra.mxu0 %v316
    %565 = vmatmul.f32.gmra.mxu0 %v525
    %v566 = vpop.f32.mrf.mxu0
    %v567 = vadd.f32 0.0, %v566
    %568 = vdwg.mxu0
    %v569 = vadd.f32 %v548, %v567
    %v570 = vtanh.pop %v569
    %v571 = vmul.f32 %v570, %v322
    %v572 = vadd.f32 %v571, %v326
    %v573 = vmul.f32 %v572, %v510
    %575 = vrot.lane.b32.xlu0 %v572, 64
    %v576 = vpop.permute.xlu0 %575
    %v578 = vmul.f32 %v572, %v576
    %580 = vrot.lane.b32.xlu0 %v578, 32
    %v581 = vpop.permute.xlu0 %580
    %v583 = vadd.f32 %v573, %v581
    %v584 = vtanh.pop %v583
    %586 = vrot.lane.b32.xlu0 %v584, 64
    %v587 = vpop.permute.xlu0 %586
    %v589 = vmul.f32 %v572, %v587
    %s590 = scalar_lea.vmem [#allocation4], 96
    %v591 = vld [vmem:[%s590] sm:$0xff]
    %v592 = vld [vmem:[%s590 + $0x8] sm:$0xff]
    %v593 = vld [vmem:[%s590 + $0x10] sm:$0xff]
    %v594 = vld [vmem:[%s590 + $0x18] sm:$0xff]
    %596 = vrot.lane.b32.xlu0 %v589, 32
    %v597 = vpop.permute.xlu0 %596
    %v598 = vsel %vm329, %v597, 0
    %600 = vmatpush.msra.mxu0 0.0
    %601 = vmatpush.msra.mxu0 0.0
    %602 = vmatpush.msra.mxu0 0.0
    %603 = vmatpush.msra.mxu0 0.0
    %604 = vmatpush.msra.mxu0 0.0
    %605 = vmatpush.msra.mxu0 0.0
    %606 = vmatpush.msra.mxu0 0.0
    %607 = vmatpush.msra.mxu0 0.0
    %608 = vmatpush.msra.mxu0 0.0
    %609 = vmatpush.msra.mxu0 0.0
    %610 = vmatpush.msra.mxu0 0.0
    %611 = vmatpush.msra.mxu0 0.0
    %612 = vmatpush.msra.mxu0 %v594
    %613 = vmatpush.msra.mxu0 %v593
    %614 = vmatpush.msra.mxu0 %v592
    %615 = vmatpush.msra.mxu0 %v591
    %616 = vmatmul.f32.gmra.mxu0 %v598
    %v617 = vpop.f32.mrf.mxu0
    %v618 = vadd.f32 0.0, %v617
    %619 = vdwg.mxu0
    %v620 = vadd.f32 %v547, %v618
    %v621 = vld [vmem:[#allocation2 + $0x20] sm:$0xff]
    %622 = vmatpush.msra.mxu0 0.0
    %623 = vmatpush.msra.mxu0 0.0
    %624 = vmatpush.msra.mxu0 0.0
    %625 = vmatpush.msra.mxu0 0.0
    %626 = vmatpush.msra.mxu0 0.0
    %627 = vmatpush.msra.mxu0 0.0
    %628 = vmatpush.msra.mxu0 0.0
    %629 = vmatpush.msra.mxu0 0.0
    %630 = vmatpush.msra.mxu0 0.0
    %631 = vmatpush.msra.mxu0 0.0
    %632 = vmatpush.msra.mxu0 0.0
    %633 = vmatpush.msra.mxu0 0.0
    %634 = vmatpush.msra.mxu0 %v319
    %635 = vmatpush.msra.mxu0 %v318
    %636 = vmatpush.msra.mxu0 %v317
    %637 = vmatpush.msra.mxu0 %v316
    %638 = vmatmul.f32.gmra.mxu0 %v598
    %v639 = vpop.f32.mrf.mxu0
    %v640 = vadd.f32 0.0, %v639
    %641 = vdwg.mxu0
    %v642 = vadd.f32 %v621, %v640
    %v643 = vtanh.pop %v642
    %v644 = vmul.f32 %v643, %v322
    %v645 = vadd.f32 %v644, %v326
    %v646 = vmul.f32 %v645, %v583
    %648 = vrot.lane.b32.xlu0 %v645, 64
    %v649 = vpop.permute.xlu0 %648
    %v651 = vmul.f32 %v645, %v649
    %653 = vrot.lane.b32.xlu0 %v651, 32
    %v654 = vpop.permute.xlu0 %653
    %v656 = vadd.f32 %v646, %v654
    %v657 = vtanh.pop %v656
    %659 = vrot.lane.b32.xlu0 %v657, 64
    %v660 = vpop.permute.xlu0 %659
    %v662 = vmul.f32 %v645, %v660
    %s663 = scalar_lea.vmem [#allocation4], 128
    %v664 = vld [vmem:[%s663] sm:$0xff]
    %v665 = vld [vmem:[%s663 + $0x8] sm:$0xff]
    %v666 = vld [vmem:[%s663 + $0x10] sm:$0xff]
    %v667 = vld [vmem:[%s663 + $0x18] sm:$0xff]
    %669 = vrot.lane.b32.xlu0 %v662, 32
    %v670 = vpop.permute.xlu0 %669
    %v671 = vsel %vm329, %v670, 0
    %673 = vmatpush.msra.mxu0 0.0
    %674 = vmatpush.msra.mxu0 0.0
    %675 = vmatpush.msra.mxu0 0.0
    %676 = vmatpush.msra.mxu0 0.0
    %677 = vmatpush.msra.mxu0 0.0
    %678 = vmatpush.msra.mxu0 0.0
    %679 = vmatpush.msra.mxu0 0.0
    %680 = vmatpush.msra.mxu0 0.0
    %681 = vmatpush.msra.mxu0 0.0
    %682 = vmatpush.msra.mxu0 0.0
    %683 = vmatpush.msra.mxu0 0.0
    %684 = vmatpush.msra.mxu0 0.0
    %685 = vmatpush.msra.mxu0 %v667
    %686 = vmatpush.msra.mxu0 %v666
    %687 = vmatpush.msra.mxu0 %v665
    %688 = vmatpush.msra.mxu0 %v664
    %689 = vmatmul.f32.gmra.mxu0 %v671
    %v690 = vpop.f32.mrf.mxu0
    %v691 = vadd.f32 0.0, %v690
    %692 = vdwg.mxu0
    %v693 = vadd.f32 %v620, %v691
    %v694 = vld [vmem:[#allocation2 + $0x28] sm:$0xff]
    %695 = vmatpush.msra.mxu0 0.0
    %696 = vmatpush.msra.mxu0 0.0
    %697 = vmatpush.msra.mxu0 0.0
    %698 = vmatpush.msra.mxu0 0.0
    %699 = vmatpush.msra.mxu0 0.0
    %700 = vmatpush.msra.mxu0 0.0
    %701 = vmatpush.msra.mxu0 0.0
    %702 = vmatpush.msra.mxu0 0.0
    %703 = vmatpush.msra.mxu0 0.0
    %704 = vmatpush.msra.mxu0 0.0
    %705 = vmatpush.msra.mxu0 0.0
    %706 = vmatpush.msra.mxu0 0.0
    %707 = vmatpush.msra.mxu0 %v319
    %708 = vmatpush.msra.mxu0 %v318
    %709 = vmatpush.msra.mxu0 %v317
    %710 = vmatpush.msra.mxu0 %v316
    %711 = vmatmul.f32.gmra.mxu0 %v671
    %v712 = vpop.f32.mrf.mxu0
    %v713 = vadd.f32 0.0, %v712
    %714 = vdwg.mxu0
    %v715 = vadd.f32 %v694, %v713
    %v716 = vtanh.pop %v715
    %v717 = vmul.f32 %v716, %v322
    %v718 = vadd.f32 %v717, %v326
    %v719 = vmul.f32 %v718, %v656
    %721 = vrot.lane.b32.xlu0 %v718, 64
    %v722 = vpop.permute.xlu0 %721
    %v724 = vmul.f32 %v718, %v722
    %726 = vrot.lane.b32.xlu0 %v724, 32
    %v727 = vpop.permute.xlu0 %726
    %v729 = vadd.f32 %v719, %v727
    %v730 = vtanh.pop %v729
    %732 = vrot.lane.b32.xlu0 %v730, 64
    %v733 = vpop.permute.xlu0 %732
    %v735 = vmul.f32 %v718, %v733
    %s736 = scalar_lea.vmem [#allocation4], 160
    %v737 = vld [vmem:[%s736] sm:$0xff]
    %v738 = vld [vmem:[%s736 + $0x8] sm:$0xff]
    %v739 = vld [vmem:[%s736 + $0x10] sm:$0xff]
    %v740 = vld [vmem:[%s736 + $0x18] sm:$0xff]
    %742 = vrot.lane.b32.xlu0 %v735, 32
    %v743 = vpop.permute.xlu0 %742
    %v744 = vsel %vm329, %v743, 0
    %746 = vmatpush.msra.mxu0 0.0
    %747 = vmatpush.msra.mxu0 0.0
    %748 = vmatpush.msra.mxu0 0.0
    %749 = vmatpush.msra.mxu0 0.0
    %750 = vmatpush.msra.mxu0 0.0
    %751 = vmatpush.msra.mxu0 0.0
    %752 = vmatpush.msra.mxu0 0.0
    %753 = vmatpush.msra.mxu0 0.0
    %754 = vmatpush.msra.mxu0 0.0
    %755 = vmatpush.msra.mxu0 0.0
    %756 = vmatpush.msra.mxu0 0.0
    %757 = vmatpush.msra.mxu0 0.0
    %758 = vmatpush.msra.mxu0 %v740
    %759 = vmatpush.msra.mxu0 %v739
    %760 = vmatpush.msra.mxu0 %v738
    %761 = vmatpush.msra.mxu0 %v737
    %762 = vmatmul.f32.gmra.mxu0 %v744
    %v763 = vpop.f32.mrf.mxu0
    %v764 = vadd.f32 0.0, %v763
    %765 = vdwg.mxu0
    %v766 = vadd.f32 %v693, %v764
    %v767 = vld [vmem:[#allocation2 + $0x30] sm:$0xff]
    %768 = vmatpush.msra.mxu0 0.0
    %769 = vmatpush.msra.mxu0 0.0
    %770 = vmatpush.msra.mxu0 0.0
    %771 = vmatpush.msra.mxu0 0.0
    %772 = vmatpush.msra.mxu0 0.0
    %773 = vmatpush.msra.mxu0 0.0
    %774 = vmatpush.msra.mxu0 0.0
    %775 = vmatpush.msra.mxu0 0.0
    %776 = vmatpush.msra.mxu0 0.0
    %777 = vmatpush.msra.mxu0 0.0
    %778 = vmatpush.msra.mxu0 0.0
    %779 = vmatpush.msra.mxu0 0.0
    %780 = vmatpush.msra.mxu0 %v319
    %781 = vmatpush.msra.mxu0 %v318
    %782 = vmatpush.msra.mxu0 %v317
    %783 = vmatpush.msra.mxu0 %v316
    %784 = vmatmul.f32.gmra.mxu0 %v744
    %v785 = vpop.f32.mrf.mxu0
    %v786 = vadd.f32 0.0, %v785
    %787 = vdwg.mxu0
    %v788 = vadd.f32 %v767, %v786
    %v789 = vtanh.pop %v788
    %v790 = vmul.f32 %v789, %v322
    %v791 = vadd.f32 %v790, %v326
    %v792 = vmul.f32 %v791, %v729
    %794 = vrot.lane.b32.xlu0 %v791, 64
    %v795 = vpop.permute.xlu0 %794
    %v797 = vmul.f32 %v791, %v795
    %799 = vrot.lane.b32.xlu0 %v797, 32
    %v800 = vpop.permute.xlu0 %799
    %v802 = vadd.f32 %v792, %v800
    %v803 = vtanh.pop %v802
    %805 = vrot.lane.b32.xlu0 %v803, 64
    %v806 = vpop.permute.xlu0 %805
    %v808 = vmul.f32 %v791, %v806
    %s809 = scalar_lea.vmem [#allocation4], 192
    %v810 = vld [vmem:[%s809] sm:$0xff]
    %v811 = vld [vmem:[%s809 + $0x8] sm:$0xff]
    %v812 = vld [vmem:[%s809 + $0x10] sm:$0xff]
    %v813 = vld [vmem:[%s809 + $0x18] sm:$0xff]
    %815 = vrot.lane.b32.xlu0 %v808, 32
    %v816 = vpop.permute.xlu0 %815
    %v817 = vsel %vm329, %v816, 0
    %819 = vmatpush.msra.mxu0 0.0
    %820 = vmatpush.msra.mxu0 0.0
    %821 = vmatpush.msra.mxu0 0.0
    %822 = vmatpush.msra.mxu0 0.0
    %823 = vmatpush.msra.mxu0 0.0
    %824 = vmatpush.msra.mxu0 0.0
    %825 = vmatpush.msra.mxu0 0.0
    %826 = vmatpush.msra.mxu0 0.0
    %827 = vmatpush.msra.mxu0 0.0
    %828 = vmatpush.msra.mxu0 0.0
    %829 = vmatpush.msra.mxu0 0.0
    %830 = vmatpush.msra.mxu0 0.0
    %831 = vmatpush.msra.mxu0 %v813
    %832 = vmatpush.msra.mxu0 %v812
    %833 = vmatpush.msra.mxu0 %v811
    %834 = vmatpush.msra.mxu0 %v810
    %835 = vmatmul.f32.gmra.mxu0 %v817
    %v836 = vpop.f32.mrf.mxu0
    %v837 = vadd.f32 0.0, %v836
    %838 = vdwg.mxu0
    %v839 = vadd.f32 %v766, %v837
    %v840 = vld [vmem:[#allocation2 + $0x38] sm:$0xff]
    %841 = vmatpush.msra.mxu0 0.0
    %842 = vmatpush.msra.mxu0 0.0
    %843 = vmatpush.msra.mxu0 0.0
    %844 = vmatpush.msra.mxu0 0.0
    %845 = vmatpush.msra.mxu0 0.0
    %846 = vmatpush.msra.mxu0 0.0
    %847 = vmatpush.msra.mxu0 0.0
    %848 = vmatpush.msra.mxu0 0.0
    %849 = vmatpush.msra.mxu0 0.0
    %850 = vmatpush.msra.mxu0 0.0
    %851 = vmatpush.msra.mxu0 0.0
    %852 = vmatpush.msra.mxu0 0.0
    %853 = vmatpush.msra.mxu0 %v319
    %854 = vmatpush.msra.mxu0 %v318
    %855 = vmatpush.msra.mxu0 %v317
    %856 = vmatpush.msra.mxu0 %v316
    %857 = vmatmul.f32.gmra.mxu0 %v817
    %v858 = vpop.f32.mrf.mxu0
    %v859 = vadd.f32 0.0, %v858
    %860 = vdwg.mxu0
    %v861 = vadd.f32 %v840, %v859
    %v862 = vtanh.pop %v861
    %v863 = vmul.f32 %v862, %v322
    %v864 = vadd.f32 %v863, %v326
    %v865 = vmul.f32 %v864, %v802
    %867 = vrot.lane.b32.xlu0 %v864, 64
    %v868 = vpop.permute.xlu0 %867
    %v870 = vmul.f32 %v864, %v868
    %872 = vrot.lane.b32.xlu0 %v870, 32
    %v873 = vpop.permute.xlu0 %872
    %v875 = vadd.f32 %v865, %v873
    %v876 = vtanh.pop %v875
    %878 = vrot.lane.b32.xlu0 %v876, 64
    %v879 = vpop.permute.xlu0 %878
    %v881 = vmul.f32 %v864, %v879
    %s882 = scalar_lea.vmem [#allocation4], 224
    %v883 = vld [vmem:[%s882] sm:$0xff]
    %v884 = vld [vmem:[%s882 + $0x8] sm:$0xff]
    %v885 = vld [vmem:[%s882 + $0x10] sm:$0xff]
    %v886 = vld [vmem:[%s882 + $0x18] sm:$0xff]
    %888 = vrot.lane.b32.xlu0 %v881, 32
    %v889 = vpop.permute.xlu0 %888
    %v890 = vsel %vm329, %v889, 0
    %892 = vmatpush.msra.mxu0 0.0
    %893 = vmatpush.msra.mxu0 0.0
    %894 = vmatpush.msra.mxu0 0.0
    %895 = vmatpush.msra.mxu0 0.0
    %896 = vmatpush.msra.mxu0 0.0
    %897 = vmatpush.msra.mxu0 0.0
    %898 = vmatpush.msra.mxu0 0.0
    %899 = vmatpush.msra.mxu0 0.0
    %900 = vmatpush.msra.mxu0 0.0
    %901 = vmatpush.msra.mxu0 0.0
    %902 = vmatpush.msra.mxu0 0.0
    %903 = vmatpush.msra.mxu0 0.0
    %904 = vmatpush.msra.mxu0 %v886
    %905 = vmatpush.msra.mxu0 %v885
    %906 = vmatpush.msra.mxu0 %v884
    %907 = vmatpush.msra.mxu0 %v883
    %908 = vmatmul.f32.gmra.mxu0 %v890
    %v909 = vpop.f32.mrf.mxu0
    %v910 = vadd.f32 0.0, %v909
    %911 = vdwg.mxu0
    %v912 = vadd.f32 %v839, %v910
    %v913 = vld [vmem:[#allocation2 + $0x40] sm:$0xff]
    %914 = vmatpush.msra.mxu0 0.0
    %915 = vmatpush.msra.mxu0 0.0
    %916 = vmatpush.msra.mxu0 0.0
    %917 = vmatpush.msra.mxu0 0.0
    %918 = vmatpush.msra.mxu0 0.0
    %919 = vmatpush.msra.mxu0 0.0
    %920 = vmatpush.msra.mxu0 0.0
    %921 = vmatpush.msra.mxu0 0.0
    %922 = vmatpush.msra.mxu0 0.0
    %923 = vmatpush.msra.mxu0 0.0
    %924 = vmatpush.msra.mxu0 0.0
    %925 = vmatpush.msra.mxu0 0.0
    %926 = vmatpush.msra.mxu0 %v319
    %927 = vmatpush.msra.mxu0 %v318
    %928 = vmatpush.msra.mxu0 %v317
    %929 = vmatpush.msra.mxu0 %v316
    %930 = vmatmul.f32.gmra.mxu0 %v890
    %v931 = vpop.f32.mrf.mxu0
    %v932 = vadd.f32 0.0, %v931
    %933 = vdwg.mxu0
    %v934 = vadd.f32 %v913, %v932
    %v935 = vtanh.pop %v934
    %v936 = vmul.f32 %v935, %v322
    %v937 = vadd.f32 %v936, %v326
    %v938 = vmul.f32 %v937, %v875
    %940 = vrot.lane.b32.xlu0 %v937, 64
    %v941 = vpop.permute.xlu0 %940
    %v943 = vmul.f32 %v937, %v941
    %945 = vrot.lane.b32.xlu0 %v943, 32
    %v946 = vpop.permute.xlu0 %945
    %v948 = vadd.f32 %v938, %v946
    %v949 = vtanh.pop %v948
    %951 = vrot.lane.b32.xlu0 %v949, 64
    %v952 = vpop.permute.xlu0 %951
    %v954 = vmul.f32 %v937, %v952
    %s955 = scalar_lea.vmem [#allocation4], 256
    %v956 = vld [vmem:[%s955] sm:$0xff]
    %v957 = vld [vmem:[%s955 + $0x8] sm:$0xff]
    %v958 = vld [vmem:[%s955 + $0x10] sm:$0xff]
    %v959 = vld [vmem:[%s955 + $0x18] sm:$0xff]
    %961 = vrot.lane.b32.xlu0 %v954, 32
    %v962 = vpop.permute.xlu0 %961
    %v963 = vsel %vm329, %v962, 0
    %965 = vmatpush.msra.mxu0 0.0
    %966 = vmatpush.msra.mxu0 0.0
    %967 = vmatpush.msra.mxu0 0.0
    %968 = vmatpush.msra.mxu0 0.0
    %969 = vmatpush.msra.mxu0 0.0
    %970 = vmatpush.msra.mxu0 0.0
    %971 = vmatpush.msra.mxu0 0.0
    %972 = vmatpush.msra.mxu0 0.0
    %973 = vmatpush.msra.mxu0 0.0
    %974 = vmatpush.msra.mxu0 0.0
    %975 = vmatpush.msra.mxu0 0.0
    %976 = vmatpush.msra.mxu0 0.0
    %977 = vmatpush.msra.mxu0 %v959
    %978 = vmatpush.msra.mxu0 %v958
    %979 = vmatpush.msra.mxu0 %v957
    %980 = vmatpush.msra.mxu0 %v956
    %981 = vmatmul.f32.gmra.mxu0 %v963
    %v982 = vpop.f32.mrf.mxu0
    %v983 = vadd.f32 0.0, %v982
    %984 = vdwg.mxu0
    %v985 = vadd.f32 %v912, %v983
    %v986 = vld [vmem:[#allocation2 + $0x48] sm:$0xff]
    %987 = vmatpush.msra.mxu0 0.0
    %988 = vmatpush.msra.mxu0 0.0
    %989 = vmatpush.msra.mxu0 0.0
    %990 = vmatpush.msra.mxu0 0.0
    %991 = vmatpush.msra.mxu0 0.0
    %992 = vmatpush.msra.mxu0 0.0
    %993 = vmatpush.msra.mxu0 0.0
    %994 = vmatpush.msra.mxu0 0.0
    %995 = vmatpush.msra.mxu0 0.0
    %996 = vmatpush.msra.mxu0 0.0
    %997 = vmatpush.msra.mxu0 0.0
    %998 = vmatpush.msra.mxu0 0.0
    %999 = vmatpush.msra.mxu0 %v319
    %1000 = vmatpush.msra.mxu0 %v318
    %1001 = vmatpush.msra.mxu0 %v317
    %1002 = vmatpush.msra.mxu0 %v316
    %1003 = vmatmul.f32.gmra.mxu0 %v963
    %v1004 = vpop.f32.mrf.mxu0
    %v1005 = vadd.f32 0.0, %v1004
    %1006 = vdwg.mxu0
    %v1007 = vadd.f32 %v986, %v1005
    %v1008 = vtanh.pop %v1007
    %v1009 = vmul.f32 %v1008, %v322
    %v1010 = vadd.f32 %v1009, %v326
    %v1011 = vmul.f32 %v1010, %v948
    %1013 = vrot.lane.b32.xlu0 %v1010, 64
    %v1014 = vpop.permute.xlu0 %1013
    %v1016 = vmul.f32 %v1010, %v1014
    %1018 = vrot.lane.b32.xlu0 %v1016, 32
    %v1019 = vpop.permute.xlu0 %1018
    %v1021 = vadd.f32 %v1011, %v1019
    %v1022 = vtanh.pop %v1021
    %1024 = vrot.lane.b32.xlu0 %v1022, 64
    %v1025 = vpop.permute.xlu0 %1024
    %v1027 = vmul.f32 %v1010, %v1025
    %s1028 = scalar_lea.vmem [#allocation4], 288
    %v1029 = vld [vmem:[%s1028] sm:$0xff]
    %v1030 = vld [vmem:[%s1028 + $0x8] sm:$0xff]
    %v1031 = vld [vmem:[%s1028 + $0x10] sm:$0xff]
    %v1032 = vld [vmem:[%s1028 + $0x18] sm:$0xff]
    %1034 = vrot.lane.b32.xlu0 %v1027, 32
    %v1035 = vpop.permute.xlu0 %1034
    %v1036 = vsel %vm329, %v1035, 0
    %1038 = vmatpush.msra.mxu0 0.0
    %1039 = vmatpush.msra.mxu0 0.0
    %1040 = vmatpush.msra.mxu0 0.0
    %1041 = vmatpush.msra.mxu0 0.0
    %1042 = vmatpush.msra.mxu0 0.0
    %1043 = vmatpush.msra.mxu0 0.0
    %1044 = vmatpush.msra.mxu0 0.0
    %1045 = vmatpush.msra.mxu0 0.0
    %1046 = vmatpush.msra.mxu0 0.0
    %1047 = vmatpush.msra.mxu0 0.0
    %1048 = vmatpush.msra.mxu0 0.0
    %1049 = vmatpush.msra.mxu0 0.0
    %1050 = vmatpush.msra.mxu0 %v1032
    %1051 = vmatpush.msra.mxu0 %v1031
    %1052 = vmatpush.msra.mxu0 %v1030
    %1053 = vmatpush.msra.mxu0 %v1029
    %1054 = vmatmul.f32.gmra.mxu0 %v1036
    %v1055 = vpop.f32.mrf.mxu0
    %v1056 = vadd.f32 0.0, %v1055
    %1057 = vdwg.mxu0
    %v1058 = vadd.f32 %v985, %v1056
    %v1059 = vld [vmem:[#allocation2 + $0x50] sm:$0xff]
    %1060 = vmatpush.msra.mxu0 0.0
    %1061 = vmatpush.msra.mxu0 0.0
    %1062 = vmatpush.msra.mxu0 0.0
    %1063 = vmatpush.msra.mxu0 0.0
    %1064 = vmatpush.msra.mxu0 0.0
    %1065 = vmatpush.msra.mxu0 0.0
    %1066 = vmatpush.msra.mxu0 0.0
    %1067 = vmatpush.msra.mxu0 0.0
    %1068 = vmatpush.msra.mxu0 0.0
    %1069 = vmatpush.msra.mxu0 0.0
    %1070 = vmatpush.msra.mxu0 0.0
    %1071 = vmatpush.msra.mxu0 0.0
    %1072 = vmatpush.msra.mxu0 %v319
    %1073 = vmatpush.msra.mxu0 %v318
    %1074 = vmatpush.msra.mxu0 %v317
    %1075 = vmatpush.msra.mxu0 %v316
    %1076 = vmatmul.f32.gmra.mxu0 %v1036
    %v1077 = vpop.f32.mrf.mxu0
    %v1078 = vadd.f32 0.0, %v1077
    %1079 = vdwg.mxu0
    %v1080 = vadd.f32 %v1059, %v1078
    %v1081 = vtanh.pop %v1080
    %v1082 = vmul.f32 %v1081, %v322
    %v1083 = vadd.f32 %v1082, %v326
    %v1084 = vmul.f32 %v1083, %v1021
    %1086 = vrot.lane.b32.xlu0 %v1083, 64
    %v1087 = vpop.permute.xlu0 %1086
    %v1089 = vmul.f32 %v1083, %v1087
    %1091 = vrot.lane.b32.xlu0 %v1089, 32
    %v1092 = vpop.permute.xlu0 %1091
    %v1094 = vadd.f32 %v1084, %v1092
    %v1095 = vtanh.pop %v1094
    %1097 = vrot.lane.b32.xlu0 %v1095, 64
    %v1098 = vpop.permute.xlu0 %1097
    %v1100 = vmul.f32 %v1083, %v1098
    %s1101 = scalar_lea.vmem [#allocation4], 320
    %v1102 = vld [vmem:[%s1101] sm:$0xff]
    %v1103 = vld [vmem:[%s1101 + $0x8] sm:$0xff]
    %v1104 = vld [vmem:[%s1101 + $0x10] sm:$0xff]
    %v1105 = vld [vmem:[%s1101 + $0x18] sm:$0xff]
    %1107 = vrot.lane.b32.xlu0 %v1100, 32
    %v1108 = vpop.permute.xlu0 %1107
    %v1109 = vsel %vm329, %v1108, 0
    %1111 = vmatpush.msra.mxu0 0.0
    %1112 = vmatpush.msra.mxu0 0.0
    %1113 = vmatpush.msra.mxu0 0.0
    %1114 = vmatpush.msra.mxu0 0.0
    %1115 = vmatpush.msra.mxu0 0.0
    %1116 = vmatpush.msra.mxu0 0.0
    %1117 = vmatpush.msra.mxu0 0.0
    %1118 = vmatpush.msra.mxu0 0.0
    %1119 = vmatpush.msra.mxu0 0.0
    %1120 = vmatpush.msra.mxu0 0.0
    %1121 = vmatpush.msra.mxu0 0.0
    %1122 = vmatpush.msra.mxu0 0.0
    %1123 = vmatpush.msra.mxu0 %v1105
    %1124 = vmatpush.msra.mxu0 %v1104
    %1125 = vmatpush.msra.mxu0 %v1103
    %1126 = vmatpush.msra.mxu0 %v1102
    %1127 = vmatmul.f32.gmra.mxu0 %v1109
    %v1128 = vpop.f32.mrf.mxu0
    %v1129 = vadd.f32 0.0, %v1128
    %1130 = vdwg.mxu0
    %v1131 = vadd.f32 %v1058, %v1129
    %v1132 = vld [vmem:[#allocation2 + $0x58] sm:$0xff]
    %1133 = vmatpush.msra.mxu0 0.0
    %1134 = vmatpush.msra.mxu0 0.0
    %1135 = vmatpush.msra.mxu0 0.0
    %1136 = vmatpush.msra.mxu0 0.0
    %1137 = vmatpush.msra.mxu0 0.0
    %1138 = vmatpush.msra.mxu0 0.0
    %1139 = vmatpush.msra.mxu0 0.0
    %1140 = vmatpush.msra.mxu0 0.0
    %1141 = vmatpush.msra.mxu0 0.0
    %1142 = vmatpush.msra.mxu0 0.0
    %1143 = vmatpush.msra.mxu0 0.0
    %1144 = vmatpush.msra.mxu0 0.0
    %1145 = vmatpush.msra.mxu0 %v319
    %1146 = vmatpush.msra.mxu0 %v318
    %1147 = vmatpush.msra.mxu0 %v317
    %1148 = vmatpush.msra.mxu0 %v316
    %1149 = vmatmul.f32.gmra.mxu0 %v1109
    %v1150 = vpop.f32.mrf.mxu0
    %v1151 = vadd.f32 0.0, %v1150
    %1152 = vdwg.mxu0
    %v1153 = vadd.f32 %v1132, %v1151
    %v1154 = vtanh.pop %v1153
    %v1155 = vmul.f32 %v1154, %v322
    %v1156 = vadd.f32 %v1155, %v326
    %v1157 = vmul.f32 %v1156, %v1094
    %1159 = vrot.lane.b32.xlu0 %v1156, 64
    %v1160 = vpop.permute.xlu0 %1159
    %v1162 = vmul.f32 %v1156, %v1160
    %1164 = vrot.lane.b32.xlu0 %v1162, 32
    %v1165 = vpop.permute.xlu0 %1164
    %v1167 = vadd.f32 %v1157, %v1165
    %v1168 = vtanh.pop %v1167
    %1170 = vrot.lane.b32.xlu0 %v1168, 64
    %v1171 = vpop.permute.xlu0 %1170
    %v1173 = vmul.f32 %v1156, %v1171
    %s1174 = scalar_lea.vmem [#allocation4], 352
    %v1175 = vld [vmem:[%s1174] sm:$0xff]
    %v1176 = vld [vmem:[%s1174 + $0x8] sm:$0xff]
    %v1177 = vld [vmem:[%s1174 + $0x10] sm:$0xff]
    %v1178 = vld [vmem:[%s1174 + $0x18] sm:$0xff]
    %1180 = vrot.lane.b32.xlu0 %v1173, 32
    %v1181 = vpop.permute.xlu0 %1180
    %v1182 = vsel %vm329, %v1181, 0
    %1184 = vmatpush.msra.mxu0 0.0
    %1185 = vmatpush.msra.mxu0 0.0
    %1186 = vmatpush.msra.mxu0 0.0
    %1187 = vmatpush.msra.mxu0 0.0
    %1188 = vmatpush.msra.mxu0 0.0
    %1189 = vmatpush.msra.mxu0 0.0
    %1190 = vmatpush.msra.mxu0 0.0
    %1191 = vmatpush.msra.mxu0 0.0
    %1192 = vmatpush.msra.mxu0 0.0
    %1193 = vmatpush.msra.mxu0 0.0
    %1194 = vmatpush.msra.mxu0 0.0
    %1195 = vmatpush.msra.mxu0 0.0
    %1196 = vmatpush.msra.mxu0 %v1178
    %1197 = vmatpush.msra.mxu0 %v1177
    %1198 = vmatpush.msra.mxu0 %v1176
    %1199 = vmatpush.msra.mxu0 %v1175
    %1200 = vmatmul.f32.gmra.mxu0 %v1182
    %v1201 = vpop.f32.mrf.mxu0
    %v1202 = vadd.f32 0.0, %v1201
    %1203 = vdwg.mxu0
    %v1204 = vadd.f32 %v1131, %v1202
    %v1205 = vld [vmem:[#allocation2 + $0x60] sm:$0xff]
    %1206 = vmatpush.msra.mxu0 0.0
    %1207 = vmatpush.msra.mxu0 0.0
    %1208 = vmatpush.msra.mxu0 0.0
    %1209 = vmatpush.msra.mxu0 0.0
    %1210 = vmatpush.msra.mxu0 0.0
    %1211 = vmatpush.msra.mxu0 0.0
    %1212 = vmatpush.msra.mxu0 0.0
    %1213 = vmatpush.msra.mxu0 0.0
    %1214 = vmatpush.msra.mxu0 0.0
    %1215 = vmatpush.msra.mxu0 0.0
    %1216 = vmatpush.msra.mxu0 0.0
    %1217 = vmatpush.msra.mxu0 0.0
    %1218 = vmatpush.msra.mxu0 %v319
    %1219 = vmatpush.msra.mxu0 %v318
    %1220 = vmatpush.msra.mxu0 %v317
    %1221 = vmatpush.msra.mxu0 %v316
    %1222 = vmatmul.f32.gmra.mxu0 %v1182
    %v1223 = vpop.f32.mrf.mxu0
    %v1224 = vadd.f32 0.0, %v1223
    %1225 = vdwg.mxu0
    %v1226 = vadd.f32 %v1205, %v1224
    %v1227 = vtanh.pop %v1226
    %v1228 = vmul.f32 %v1227, %v322
    %v1229 = vadd.f32 %v1228, %v326
    %v1230 = vmul.f32 %v1229, %v1167
    %1232 = vrot.lane.b32.xlu0 %v1229, 64
    %v1233 = vpop.permute.xlu0 %1232
    %v1235 = vmul.f32 %v1229, %v1233
    %1237 = vrot.lane.b32.xlu0 %v1235, 32
    %v1238 = vpop.permute.xlu0 %1237
    %v1240 = vadd.f32 %v1230, %v1238
    %v1241 = vtanh.pop %v1240
    %1243 = vrot.lane.b32.xlu0 %v1241, 64
    %v1244 = vpop.permute.xlu0 %1243
    %v1246 = vmul.f32 %v1229, %v1244
    %s1247 = scalar_lea.vmem [#allocation4], 384
    %v1248 = vld [vmem:[%s1247] sm:$0xff]
    %v1249 = vld [vmem:[%s1247 + $0x8] sm:$0xff]
    %v1250 = vld [vmem:[%s1247 + $0x10] sm:$0xff]
    %v1251 = vld [vmem:[%s1247 + $0x18] sm:$0xff]
    %1253 = vrot.lane.b32.xlu0 %v1246, 32
    %v1254 = vpop.permute.xlu0 %1253
    %v1255 = vsel %vm329, %v1254, 0
    %1257 = vmatpush.msra.mxu0 0.0
    %1258 = vmatpush.msra.mxu0 0.0
    %1259 = vmatpush.msra.mxu0 0.0
    %1260 = vmatpush.msra.mxu0 0.0
    %1261 = vmatpush.msra.mxu0 0.0
    %1262 = vmatpush.msra.mxu0 0.0
    %1263 = vmatpush.msra.mxu0 0.0
    %1264 = vmatpush.msra.mxu0 0.0
    %1265 = vmatpush.msra.mxu0 0.0
    %1266 = vmatpush.msra.mxu0 0.0
    %1267 = vmatpush.msra.mxu0 0.0
    %1268 = vmatpush.msra.mxu0 0.0
    %1269 = vmatpush.msra.mxu0 %v1251
    %1270 = vmatpush.msra.mxu0 %v1250
    %1271 = vmatpush.msra.mxu0 %v1249
    %1272 = vmatpush.msra.mxu0 %v1248
    %1273 = vmatmul.f32.gmra.mxu0 %v1255
    %v1274 = vpop.f32.mrf.mxu0
    %v1275 = vadd.f32 0.0, %v1274
    %1276 = vdwg.mxu0
    %v1277 = vadd.f32 %v1204, %v1275
    %v1278 = vld [vmem:[#allocation2 + $0x68] sm:$0xff]
    %1279 = vmatpush.msra.mxu0 0.0
    %1280 = vmatpush.msra.mxu0 0.0
    %1281 = vmatpush.msra.mxu0 0.0
    %1282 = vmatpush.msra.mxu0 0.0
    %1283 = vmatpush.msra.mxu0 0.0
    %1284 = vmatpush.msra.mxu0 0.0
    %1285 = vmatpush.msra.mxu0 0.0
    %1286 = vmatpush.msra.mxu0 0.0
    %1287 = vmatpush.msra.mxu0 0.0
    %1288 = vmatpush.msra.mxu0 0.0
    %1289 = vmatpush.msra.mxu0 0.0
    %1290 = vmatpush.msra.mxu0 0.0
    %1291 = vmatpush.msra.mxu0 %v319
    %1292 = vmatpush.msra.mxu0 %v318
    %1293 = vmatpush.msra.mxu0 %v317
    %1294 = vmatpush.msra.mxu0 %v316
    %1295 = vmatmul.f32.gmra.mxu0 %v1255
    %v1296 = vpop.f32.mrf.mxu0
    %v1297 = vadd.f32 0.0, %v1296
    %1298 = vdwg.mxu0
    %v1299 = vadd.f32 %v1278, %v1297
    %v1300 = vtanh.pop %v1299
    %v1301 = vmul.f32 %v1300, %v322
    %v1302 = vadd.f32 %v1301, %v326
    %v1303 = vmul.f32 %v1302, %v1240
    %1305 = vrot.lane.b32.xlu0 %v1302, 64
    %v1306 = vpop.permute.xlu0 %1305
    %v1308 = vmul.f32 %v1302, %v1306
    %1310 = vrot.lane.b32.xlu0 %v1308, 32
    %v1311 = vpop.permute.xlu0 %1310
    %v1313 = vadd.f32 %v1303, %v1311
    %v1314 = vtanh.pop %v1313
    %1316 = vrot.lane.b32.xlu0 %v1314, 64
    %v1317 = vpop.permute.xlu0 %1316
    %v1319 = vmul.f32 %v1302, %v1317
    %s1320 = scalar_lea.vmem [#allocation4], 416
    %v1321 = vld [vmem:[%s1320] sm:$0xff]
    %v1322 = vld [vmem:[%s1320 + $0x8] sm:$0xff]
    %v1323 = vld [vmem:[%s1320 + $0x10] sm:$0xff]
    %v1324 = vld [vmem:[%s1320 + $0x18] sm:$0xff]
    %1326 = vrot.lane.b32.xlu0 %v1319, 32
    %v1327 = vpop.permute.xlu0 %1326
    %v1328 = vsel %vm329, %v1327, 0
    %1330 = vmatpush.msra.mxu0 0.0
    %1331 = vmatpush.msra.mxu0 0.0
    %1332 = vmatpush.msra.mxu0 0.0
    %1333 = vmatpush.msra.mxu0 0.0
    %1334 = vmatpush.msra.mxu0 0.0
    %1335 = vmatpush.msra.mxu0 0.0
    %1336 = vmatpush.msra.mxu0 0.0
    %1337 = vmatpush.msra.mxu0 0.0
    %1338 = vmatpush.msra.mxu0 0.0
    %1339 = vmatpush.msra.mxu0 0.0
    %1340 = vmatpush.msra.mxu0 0.0
    %1341 = vmatpush.msra.mxu0 0.0
    %1342 = vmatpush.msra.mxu0 %v1324
    %1343 = vmatpush.msra.mxu0 %v1323
    %1344 = vmatpush.msra.mxu0 %v1322
    %1345 = vmatpush.msra.mxu0 %v1321
    %1346 = vmatmul.f32.gmra.mxu0 %v1328
    %v1347 = vpop.f32.mrf.mxu0
    %v1348 = vadd.f32 0.0, %v1347
    %1349 = vdwg.mxu0
    %v1350 = vadd.f32 %v1277, %v1348
    %v1351 = vld [vmem:[#allocation2 + $0x70] sm:$0xff]
    %1352 = vmatpush.msra.mxu0 0.0
    %1353 = vmatpush.msra.mxu0 0.0
    %1354 = vmatpush.msra.mxu0 0.0
    %1355 = vmatpush.msra.mxu0 0.0
    %1356 = vmatpush.msra.mxu0 0.0
    %1357 = vmatpush.msra.mxu0 0.0
    %1358 = vmatpush.msra.mxu0 0.0
    %1359 = vmatpush.msra.mxu0 0.0
    %1360 = vmatpush.msra.mxu0 0.0
    %1361 = vmatpush.msra.mxu0 0.0
    %1362 = vmatpush.msra.mxu0 0.0
    %1363 = vmatpush.msra.mxu0 0.0
    %1364 = vmatpush.msra.mxu0 %v319
    %1365 = vmatpush.msra.mxu0 %v318
    %1366 = vmatpush.msra.mxu0 %v317
    %1367 = vmatpush.msra.mxu0 %v316
    %1368 = vmatmul.f32.gmra.mxu0 %v1328
    %v1369 = vpop.f32.mrf.mxu0
    %v1370 = vadd.f32 0.0, %v1369
    %1371 = vdwg.mxu0
    %v1372 = vadd.f32 %v1351, %v1370
    %v1373 = vtanh.pop %v1372
    %v1374 = vmul.f32 %v1373, %v322
    %v1375 = vadd.f32 %v1374, %v326
    %v1376 = vmul.f32 %v1375, %v1313
    %1378 = vrot.lane.b32.xlu0 %v1375, 64
    %v1379 = vpop.permute.xlu0 %1378
    %v1381 = vmul.f32 %v1375, %v1379
    %1383 = vrot.lane.b32.xlu0 %v1381, 32
    %v1384 = vpop.permute.xlu0 %1383
    %v1386 = vadd.f32 %v1376, %v1384
    %v1387 = vtanh.pop %v1386
    %1389 = vrot.lane.b32.xlu0 %v1387, 64
    %v1390 = vpop.permute.xlu0 %1389
    %v1392 = vmul.f32 %v1375, %v1390
    %s1393 = scalar_lea.vmem [#allocation4], 448
    %v1394 = vld [vmem:[%s1393] sm:$0xff]
    %v1395 = vld [vmem:[%s1393 + $0x8] sm:$0xff]
    %v1396 = vld [vmem:[%s1393 + $0x10] sm:$0xff]
    %v1397 = vld [vmem:[%s1393 + $0x18] sm:$0xff]
    %1399 = vrot.lane.b32.xlu0 %v1392, 32
    %v1400 = vpop.permute.xlu0 %1399
    %v1401 = vsel %vm329, %v1400, 0
    %1403 = vmatpush.msra.mxu0 0.0
    %1404 = vmatpush.msra.mxu0 0.0
    %1405 = vmatpush.msra.mxu0 0.0
    %1406 = vmatpush.msra.mxu0 0.0
    %1407 = vmatpush.msra.mxu0 0.0
    %1408 = vmatpush.msra.mxu0 0.0
    %1409 = vmatpush.msra.mxu0 0.0
    %1410 = vmatpush.msra.mxu0 0.0
    %1411 = vmatpush.msra.mxu0 0.0
    %1412 = vmatpush.msra.mxu0 0.0
    %1413 = vmatpush.msra.mxu0 0.0
    %1414 = vmatpush.msra.mxu0 0.0
    %1415 = vmatpush.msra.mxu0 %v1397
    %1416 = vmatpush.msra.mxu0 %v1396
    %1417 = vmatpush.msra.mxu0 %v1395
    %1418 = vmatpush.msra.mxu0 %v1394
    %1419 = vmatmul.f32.gmra.mxu0 %v1401
    %v1420 = vpop.f32.mrf.mxu0
    %v1421 = vadd.f32 0.0, %v1420
    %1422 = vdwg.mxu0
    %v1423 = vadd.f32 %v1350, %v1421
    %v1424 = vld [vmem:[#allocation2 + $0x78] sm:$0xff]
    %1425 = vmatpush.msra.mxu0 0.0
    %1426 = vmatpush.msra.mxu0 0.0
    %1427 = vmatpush.msra.mxu0 0.0
    %1428 = vmatpush.msra.mxu0 0.0
    %1429 = vmatpush.msra.mxu0 0.0
    %1430 = vmatpush.msra.mxu0 0.0
    %1431 = vmatpush.msra.mxu0 0.0
    %1432 = vmatpush.msra.mxu0 0.0
    %1433 = vmatpush.msra.mxu0 0.0
    %1434 = vmatpush.msra.mxu0 0.0
    %1435 = vmatpush.msra.mxu0 0.0
    %1436 = vmatpush.msra.mxu0 0.0
    %1437 = vmatpush.msra.mxu0 %v319
    %1438 = vmatpush.msra.mxu0 %v318
    %1439 = vmatpush.msra.mxu0 %v317
    %1440 = vmatpush.msra.mxu0 %v316
    %1441 = vmatmul.f32.gmra.mxu0 %v1401
    %v1442 = vpop.f32.mrf.mxu0
    %v1443 = vadd.f32 0.0, %v1442
    %1444 = vdwg.mxu0
    %v1445 = vadd.f32 %v1424, %v1443
    %v1446 = vtanh.pop %v1445
    %v1447 = vmul.f32 %v1446, %v322
    %v1448 = vadd.f32 %v1447, %v326
    %v1449 = vmul.f32 %v1448, %v1386
    %1451 = vrot.lane.b32.xlu0 %v1448, 64
    %v1452 = vpop.permute.xlu0 %1451
    %v1454 = vmul.f32 %v1448, %v1452
    %1456 = vrot.lane.b32.xlu0 %v1454, 32
    %v1457 = vpop.permute.xlu0 %1456
    %v1459 = vadd.f32 %v1449, %v1457
    %v1460 = vtanh.pop %v1459
    %1462 = vrot.lane.b32.xlu0 %v1460, 64
    %v1463 = vpop.permute.xlu0 %1462
    %v1465 = vmul.f32 %v1448, %v1463
    %s1466 = scalar_lea.vmem [#allocation4], 480
    %v1467 = vld [vmem:[%s1466] sm:$0xff]
    %v1468 = vld [vmem:[%s1466 + $0x8] sm:$0xff]
    %v1469 = vld [vmem:[%s1466 + $0x10] sm:$0xff]
    %v1470 = vld [vmem:[%s1466 + $0x18] sm:$0xff]
    %1472 = vrot.lane.b32.xlu0 %v1465, 32
    %v1473 = vpop.permute.xlu0 %1472
    %v1474 = vsel %vm329, %v1473, 0
    %1476 = vmatpush.msra.mxu0 0.0
    %1477 = vmatpush.msra.mxu0 0.0
    %1478 = vmatpush.msra.mxu0 0.0
    %1479 = vmatpush.msra.mxu0 0.0
    %1480 = vmatpush.msra.mxu0 0.0
    %1481 = vmatpush.msra.mxu0 0.0
    %1482 = vmatpush.msra.mxu0 0.0
    %1483 = vmatpush.msra.mxu0 0.0
    %1484 = vmatpush.msra.mxu0 0.0
    %1485 = vmatpush.msra.mxu0 0.0
    %1486 = vmatpush.msra.mxu0 0.0
    %1487 = vmatpush.msra.mxu0 0.0
    %1488 = vmatpush.msra.mxu0 %v1470
    %1489 = vmatpush.msra.mxu0 %v1469
    %1490 = vmatpush.msra.mxu0 %v1468
    %1491 = vmatpush.msra.mxu0 %v1467
    %1492 = vmatmul.f32.gmra.mxu0 %v1474
    %v1493 = vpop.f32.mrf.mxu0
    %v1494 = vadd.f32 0.0, %v1493
    %1495 = vdwg.mxu0
    %v1496 = vadd.f32 %v1423, %v1494
    %v1497 = vld [vmem:[#allocation2 + $0x80] sm:$0xff]
    %1498 = vmatpush.msra.mxu0 0.0
    %1499 = vmatpush.msra.mxu0 0.0
    %1500 = vmatpush.msra.mxu0 0.0
    %1501 = vmatpush.msra.mxu0 0.0
    %1502 = vmatpush.msra.mxu0 0.0
    %1503 = vmatpush.msra.mxu0 0.0
    %1504 = vmatpush.msra.mxu0 0.0
    %1505 = vmatpush.msra.mxu0 0.0
    %1506 = vmatpush.msra.mxu0 0.0
    %1507 = vmatpush.msra.mxu0 0.0
    %1508 = vmatpush.msra.mxu0 0.0
    %1509 = vmatpush.msra.mxu0 0.0
    %1510 = vmatpush.msra.mxu0 %v319
    %1511 = vmatpush.msra.mxu0 %v318
    %1512 = vmatpush.msra.mxu0 %v317
    %1513 = vmatpush.msra.mxu0 %v316
    %1514 = vmatmul.f32.gmra.mxu0 %v1474
    %v1515 = vpop.f32.mrf.mxu0
    %v1516 = vadd.f32 0.0, %v1515
    %1517 = vdwg.mxu0
    %v1518 = vadd.f32 %v1497, %v1516
    %v1519 = vtanh.pop %v1518
    %v1520 = vmul.f32 %v1519, %v322
    %v1521 = vadd.f32 %v1520, %v326
    %v1522 = vmul.f32 %v1521, %v1459
    %1524 = vrot.lane.b32.xlu0 %v1521, 64
    %v1525 = vpop.permute.xlu0 %1524
    %v1527 = vmul.f32 %v1521, %v1525
    %1529 = vrot.lane.b32.xlu0 %v1527, 32
    %v1530 = vpop.permute.xlu0 %1529
    %v1532 = vadd.f32 %v1522, %v1530
    %v1533 = vtanh.pop %v1532
    %1535 = vrot.lane.b32.xlu0 %v1533, 64
    %v1536 = vpop.permute.xlu0 %1535
    %v1538 = vmul.f32 %v1521, %v1536
    %s1539 = scalar_lea.vmem [#allocation4], 512
    %v1540 = vld [vmem:[%s1539] sm:$0xff]
    %v1541 = vld [vmem:[%s1539 + $0x8] sm:$0xff]
    %v1542 = vld [vmem:[%s1539 + $0x10] sm:$0xff]
    %v1543 = vld [vmem:[%s1539 + $0x18] sm:$0xff]
    %1545 = vrot.lane.b32.xlu0 %v1538, 32
    %v1546 = vpop.permute.xlu0 %1545
    %v1547 = vsel %vm329, %v1546, 0
    %1549 = vmatpush.msra.mxu0 0.0
    %1550 = vmatpush.msra.mxu0 0.0
    %1551 = vmatpush.msra.mxu0 0.0
    %1552 = vmatpush.msra.mxu0 0.0
    %1553 = vmatpush.msra.mxu0 0.0
    %1554 = vmatpush.msra.mxu0 0.0
    %1555 = vmatpush.msra.mxu0 0.0
    %1556 = vmatpush.msra.mxu0 0.0
    %1557 = vmatpush.msra.mxu0 0.0
    %1558 = vmatpush.msra.mxu0 0.0
    %1559 = vmatpush.msra.mxu0 0.0
    %1560 = vmatpush.msra.mxu0 0.0
    %1561 = vmatpush.msra.mxu0 %v1543
    %1562 = vmatpush.msra.mxu0 %v1542
    %1563 = vmatpush.msra.mxu0 %v1541
    %1564 = vmatpush.msra.mxu0 %v1540
    %1565 = vmatmul.f32.gmra.mxu0 %v1547
    %v1566 = vpop.f32.mrf.mxu0
    %v1567 = vadd.f32 0.0, %v1566
    %1568 = vdwg.mxu0
    %v1569 = vadd.f32 %v1496, %v1567
    %v1570 = vld [vmem:[#allocation2 + $0x88] sm:$0xff]
    %1571 = vmatpush.msra.mxu0 0.0
    %1572 = vmatpush.msra.mxu0 0.0
    %1573 = vmatpush.msra.mxu0 0.0
    %1574 = vmatpush.msra.mxu0 0.0
    %1575 = vmatpush.msra.mxu0 0.0
    %1576 = vmatpush.msra.mxu0 0.0
    %1577 = vmatpush.msra.mxu0 0.0
    %1578 = vmatpush.msra.mxu0 0.0
    %1579 = vmatpush.msra.mxu0 0.0
    %1580 = vmatpush.msra.mxu0 0.0
    %1581 = vmatpush.msra.mxu0 0.0
    %1582 = vmatpush.msra.mxu0 0.0
    %1583 = vmatpush.msra.mxu0 %v319
    %1584 = vmatpush.msra.mxu0 %v318
    %1585 = vmatpush.msra.mxu0 %v317
    %1586 = vmatpush.msra.mxu0 %v316
    %1587 = vmatmul.f32.gmra.mxu0 %v1547
    %v1588 = vpop.f32.mrf.mxu0
    %v1589 = vadd.f32 0.0, %v1588
    %1590 = vdwg.mxu0
    %v1591 = vadd.f32 %v1570, %v1589
    %v1592 = vtanh.pop %v1591
    %v1593 = vmul.f32 %v1592, %v322
    %v1594 = vadd.f32 %v1593, %v326
    %v1595 = vmul.f32 %v1594, %v1532
    %1597 = vrot.lane.b32.xlu0 %v1594, 64
    %v1598 = vpop.permute.xlu0 %1597
    %v1600 = vmul.f32 %v1594, %v1598
    %1602 = vrot.lane.b32.xlu0 %v1600, 32
    %v1603 = vpop.permute.xlu0 %1602
    %v1605 = vadd.f32 %v1595, %v1603
    %v1606 = vtanh.pop %v1605
    %1608 = vrot.lane.b32.xlu0 %v1606, 64
    %v1609 = vpop.permute.xlu0 %1608
    %v1611 = vmul.f32 %v1594, %v1609
    %s1612 = scalar_lea.vmem [#allocation4], 544
    %v1613 = vld [vmem:[%s1612] sm:$0xff]
    %v1614 = vld [vmem:[%s1612 + $0x8] sm:$0xff]
    %v1615 = vld [vmem:[%s1612 + $0x10] sm:$0xff]
    %v1616 = vld [vmem:[%s1612 + $0x18] sm:$0xff]
    %1618 = vrot.lane.b32.xlu0 %v1611, 32
    %v1619 = vpop.permute.xlu0 %1618
    %v1620 = vsel %vm329, %v1619, 0
    %1622 = vmatpush.msra.mxu0 0.0
    %1623 = vmatpush.msra.mxu0 0.0
    %1624 = vmatpush.msra.mxu0 0.0
    %1625 = vmatpush.msra.mxu0 0.0
    %1626 = vmatpush.msra.mxu0 0.0
    %1627 = vmatpush.msra.mxu0 0.0
    %1628 = vmatpush.msra.mxu0 0.0
    %1629 = vmatpush.msra.mxu0 0.0
    %1630 = vmatpush.msra.mxu0 0.0
    %1631 = vmatpush.msra.mxu0 0.0
    %1632 = vmatpush.msra.mxu0 0.0
    %1633 = vmatpush.msra.mxu0 0.0
    %1634 = vmatpush.msra.mxu0 %v1616
    %1635 = vmatpush.msra.mxu0 %v1615
    %1636 = vmatpush.msra.mxu0 %v1614
    %1637 = vmatpush.msra.mxu0 %v1613
    %1638 = vmatmul.f32.gmra.mxu0 %v1620
    %v1639 = vpop.f32.mrf.mxu0
    %v1640 = vadd.f32 0.0, %v1639
    %1641 = vdwg.mxu0
    %v1642 = vadd.f32 %v1569, %v1640
    %v1643 = vld [vmem:[#allocation2 + $0x90] sm:$0xff]
    %1644 = vmatpush.msra.mxu0 0.0
    %1645 = vmatpush.msra.mxu0 0.0
    %1646 = vmatpush.msra.mxu0 0.0
    %1647 = vmatpush.msra.mxu0 0.0
    %1648 = vmatpush.msra.mxu0 0.0
    %1649 = vmatpush.msra.mxu0 0.0
    %1650 = vmatpush.msra.mxu0 0.0
    %1651 = vmatpush.msra.mxu0 0.0
    %1652 = vmatpush.msra.mxu0 0.0
    %1653 = vmatpush.msra.mxu0 0.0
    %1654 = vmatpush.msra.mxu0 0.0
    %1655 = vmatpush.msra.mxu0 0.0
    %1656 = vmatpush.msra.mxu0 %v319
    %1657 = vmatpush.msra.mxu0 %v318
    %1658 = vmatpush.msra.mxu0 %v317
    %1659 = vmatpush.msra.mxu0 %v316
    %1660 = vmatmul.f32.gmra.mxu0 %v1620
    %v1661 = vpop.f32.mrf.mxu0
    %v1662 = vadd.f32 0.0, %v1661
    %1663 = vdwg.mxu0
    %v1664 = vadd.f32 %v1643, %v1662
    %v1665 = vtanh.pop %v1664
    %v1666 = vmul.f32 %v1665, %v322
    %v1667 = vadd.f32 %v1666, %v326
    %v1668 = vmul.f32 %v1667, %v1605
    %1670 = vrot.lane.b32.xlu0 %v1667, 64
    %v1671 = vpop.permute.xlu0 %1670
    %v1673 = vmul.f32 %v1667, %v1671
    %1675 = vrot.lane.b32.xlu0 %v1673, 32
    %v1676 = vpop.permute.xlu0 %1675
    %v1678 = vadd.f32 %v1668, %v1676
    %v1679 = vtanh.pop %v1678
    %1681 = vrot.lane.b32.xlu0 %v1679, 64
    %v1682 = vpop.permute.xlu0 %1681
    %v1684 = vmul.f32 %v1667, %v1682
    %s1685 = scalar_lea.vmem [#allocation4], 576
    %v1686 = vld [vmem:[%s1685] sm:$0xff]
    %v1687 = vld [vmem:[%s1685 + $0x8] sm:$0xff]
    %v1688 = vld [vmem:[%s1685 + $0x10] sm:$0xff]
    %v1689 = vld [vmem:[%s1685 + $0x18] sm:$0xff]
    %1691 = vrot.lane.b32.xlu0 %v1684, 32
    %v1692 = vpop.permute.xlu0 %1691
    %v1693 = vsel %vm329, %v1692, 0
    %1695 = vmatpush.msra.mxu0 0.0
    %1696 = vmatpush.msra.mxu0 0.0
    %1697 = vmatpush.msra.mxu0 0.0
    %1698 = vmatpush.msra.mxu0 0.0
    %1699 = vmatpush.msra.mxu0 0.0
    %1700 = vmatpush.msra.mxu0 0.0
    %1701 = vmatpush.msra.mxu0 0.0
    %1702 = vmatpush.msra.mxu0 0.0
    %1703 = vmatpush.msra.mxu0 0.0
    %1704 = vmatpush.msra.mxu0 0.0
    %1705 = vmatpush.msra.mxu0 0.0
    %1706 = vmatpush.msra.mxu0 0.0
    %1707 = vmatpush.msra.mxu0 %v1689
    %1708 = vmatpush.msra.mxu0 %v1688
    %1709 = vmatpush.msra.mxu0 %v1687
    %1710 = vmatpush.msra.mxu0 %v1686
    %1711 = vmatmul.f32.gmra.mxu0 %v1693
    %v1712 = vpop.f32.mrf.mxu0
    %v1713 = vadd.f32 0.0, %v1712
    %1714 = vdwg.mxu0
    %v1715 = vadd.f32 %v1642, %v1713
    %v1716 = vld [vmem:[#allocation2 + $0x98] sm:$0xff]
    %1717 = vmatpush.msra.mxu0 0.0
    %1718 = vmatpush.msra.mxu0 0.0
    %1719 = vmatpush.msra.mxu0 0.0
    %1720 = vmatpush.msra.mxu0 0.0
    %1721 = vmatpush.msra.mxu0 0.0
    %1722 = vmatpush.msra.mxu0 0.0
    %1723 = vmatpush.msra.mxu0 0.0
    %1724 = vmatpush.msra.mxu0 0.0
    %1725 = vmatpush.msra.mxu0 0.0
    %1726 = vmatpush.msra.mxu0 0.0
    %1727 = vmatpush.msra.mxu0 0.0
    %1728 = vmatpush.msra.mxu0 0.0
    %1729 = vmatpush.msra.mxu0 %v319
    %1730 = vmatpush.msra.mxu0 %v318
    %1731 = vmatpush.msra.mxu0 %v317
    %1732 = vmatpush.msra.mxu0 %v316
    %1733 = vmatmul.f32.gmra.mxu0 %v1693
    %v1734 = vpop.f32.mrf.mxu0
    %v1735 = vadd.f32 0.0, %v1734
    %1736 = vdwg.mxu0
    %v1737 = vadd.f32 %v1716, %v1735
    %v1738 = vtanh.pop %v1737
    %v1739 = vmul.f32 %v1738, %v322
    %v1740 = vadd.f32 %v1739, %v326
    %v1741 = vmul.f32 %v1740, %v1678
    %1743 = vrot.lane.b32.xlu0 %v1740, 64
    %v1744 = vpop.permute.xlu0 %1743
    %v1746 = vmul.f32 %v1740, %v1744
    %1748 = vrot.lane.b32.xlu0 %v1746, 32
    %v1749 = vpop.permute.xlu0 %1748
    %v1751 = vadd.f32 %v1741, %v1749
    %v1752 = vtanh.pop %v1751
    %1754 = vrot.lane.b32.xlu0 %v1752, 64
    %v1755 = vpop.permute.xlu0 %1754
    %v1757 = vmul.f32 %v1740, %v1755
    %s1758 = scalar_lea.vmem [#allocation4], 608
    %v1759 = vld [vmem:[%s1758] sm:$0xff]
    %v1760 = vld [vmem:[%s1758 + $0x8] sm:$0xff]
    %v1761 = vld [vmem:[%s1758 + $0x10] sm:$0xff]
    %v1762 = vld [vmem:[%s1758 + $0x18] sm:$0xff]
    %1764 = vrot.lane.b32.xlu0 %v1757, 32
    %v1765 = vpop.permute.xlu0 %1764
    %v1766 = vsel %vm329, %v1765, 0
    %1768 = vmatpush.msra.mxu0 0.0
    %1769 = vmatpush.msra.mxu0 0.0
    %1770 = vmatpush.msra.mxu0 0.0
    %1771 = vmatpush.msra.mxu0 0.0
    %1772 = vmatpush.msra.mxu0 0.0
    %1773 = vmatpush.msra.mxu0 0.0
    %1774 = vmatpush.msra.mxu0 0.0
    %1775 = vmatpush.msra.mxu0 0.0
    %1776 = vmatpush.msra.mxu0 0.0
    %1777 = vmatpush.msra.mxu0 0.0
    %1778 = vmatpush.msra.mxu0 0.0
    %1779 = vmatpush.msra.mxu0 0.0
    %1780 = vmatpush.msra.mxu0 %v1762
    %1781 = vmatpush.msra.mxu0 %v1761
    %1782 = vmatpush.msra.mxu0 %v1760
    %1783 = vmatpush.msra.mxu0 %v1759
    %1784 = vmatmul.f32.gmra.mxu0 %v1766
    %v1785 = vpop.f32.mrf.mxu0
    %v1786 = vadd.f32 0.0, %v1785
    %1787 = vdwg.mxu0
    %v1788 = vadd.f32 %v1715, %v1786
    %v1789 = vld [vmem:[#allocation2 + $0xa0] sm:$0xff]
    %1790 = vmatpush.msra.mxu0 0.0
    %1791 = vmatpush.msra.mxu0 0.0
    %1792 = vmatpush.msra.mxu0 0.0
    %1793 = vmatpush.msra.mxu0 0.0
    %1794 = vmatpush.msra.mxu0 0.0
    %1795 = vmatpush.msra.mxu0 0.0
    %1796 = vmatpush.msra.mxu0 0.0
    %1797 = vmatpush.msra.mxu0 0.0
    %1798 = vmatpush.msra.mxu0 0.0
    %1799 = vmatpush.msra.mxu0 0.0
    %1800 = vmatpush.msra.mxu0 0.0
    %1801 = vmatpush.msra.mxu0 0.0
    %1802 = vmatpush.msra.mxu0 %v319
    %1803 = vmatpush.msra.mxu0 %v318
    %1804 = vmatpush.msra.mxu0 %v317
    %1805 = vmatpush.msra.mxu0 %v316
    %1806 = vmatmul.f32.gmra.mxu0 %v1766
    %v1807 = vpop.f32.mrf.mxu0
    %v1808 = vadd.f32 0.0, %v1807
    %1809 = vdwg.mxu0
    %v1810 = vadd.f32 %v1789, %v1808
    %v1811 = vtanh.pop %v1810
    %v1812 = vmul.f32 %v1811, %v322
    %v1813 = vadd.f32 %v1812, %v326
    %v1814 = vmul.f32 %v1813, %v1751
    %1816 = vrot.lane.b32.xlu0 %v1813, 64
    %v1817 = vpop.permute.xlu0 %1816
    %v1819 = vmul.f32 %v1813, %v1817
    %1821 = vrot.lane.b32.xlu0 %v1819, 32
    %v1822 = vpop.permute.xlu0 %1821
    %v1824 = vadd.f32 %v1814, %v1822
    %v1825 = vtanh.pop %v1824
    %1827 = vrot.lane.b32.xlu0 %v1825, 64
    %v1828 = vpop.permute.xlu0 %1827
    %v1830 = vmul.f32 %v1813, %v1828
    %s1831 = scalar_lea.vmem [#allocation4], 640
    %v1832 = vld [vmem:[%s1831] sm:$0xff]
    %v1833 = vld [vmem:[%s1831 + $0x8] sm:$0xff]
    %v1834 = vld [vmem:[%s1831 + $0x10] sm:$0xff]
    %v1835 = vld [vmem:[%s1831 + $0x18] sm:$0xff]
    %1837 = vrot.lane.b32.xlu0 %v1830, 32
    %v1838 = vpop.permute.xlu0 %1837
    %v1839 = vsel %vm329, %v1838, 0
    %1841 = vmatpush.msra.mxu0 0.0
    %1842 = vmatpush.msra.mxu0 0.0
    %1843 = vmatpush.msra.mxu0 0.0
    %1844 = vmatpush.msra.mxu0 0.0
    %1845 = vmatpush.msra.mxu0 0.0
    %1846 = vmatpush.msra.mxu0 0.0
    %1847 = vmatpush.msra.mxu0 0.0
    %1848 = vmatpush.msra.mxu0 0.0
    %1849 = vmatpush.msra.mxu0 0.0
    %1850 = vmatpush.msra.mxu0 0.0
    %1851 = vmatpush.msra.mxu0 0.0
    %1852 = vmatpush.msra.mxu0 0.0
    %1853 = vmatpush.msra.mxu0 %v1835
    %1854 = vmatpush.msra.mxu0 %v1834
    %1855 = vmatpush.msra.mxu0 %v1833
    %1856 = vmatpush.msra.mxu0 %v1832
    %1857 = vmatmul.f32.gmra.mxu0 %v1839
    %v1858 = vpop.f32.mrf.mxu0
    %v1859 = vadd.f32 0.0, %v1858
    %1860 = vdwg.mxu0
    %v1861 = vadd.f32 %v1788, %v1859
    %v1862 = vld [vmem:[#allocation2 + $0xa8] sm:$0xff]
    %1863 = vmatpush.msra.mxu0 0.0
    %1864 = vmatpush.msra.mxu0 0.0
    %1865 = vmatpush.msra.mxu0 0.0
    %1866 = vmatpush.msra.mxu0 0.0
    %1867 = vmatpush.msra.mxu0 0.0
    %1868 = vmatpush.msra.mxu0 0.0
    %1869 = vmatpush.msra.mxu0 0.0
    %1870 = vmatpush.msra.mxu0 0.0
    %1871 = vmatpush.msra.mxu0 0.0
    %1872 = vmatpush.msra.mxu0 0.0
    %1873 = vmatpush.msra.mxu0 0.0
    %1874 = vmatpush.msra.mxu0 0.0
    %1875 = vmatpush.msra.mxu0 %v319
    %1876 = vmatpush.msra.mxu0 %v318
    %1877 = vmatpush.msra.mxu0 %v317
    %1878 = vmatpush.msra.mxu0 %v316
    %1879 = vmatmul.f32.gmra.mxu0 %v1839
    %v1880 = vpop.f32.mrf.mxu0
    %v1881 = vadd.f32 0.0, %v1880
    %1882 = vdwg.mxu0
    %v1883 = vadd.f32 %v1862, %v1881
    %v1884 = vtanh.pop %v1883
    %v1885 = vmul.f32 %v1884, %v322
    %v1886 = vadd.f32 %v1885, %v326
    %v1887 = vmul.f32 %v1886, %v1824
    %1889 = vrot.lane.b32.xlu0 %v1886, 64
    %v1890 = vpop.permute.xlu0 %1889
    %v1892 = vmul.f32 %v1886, %v1890
    %1894 = vrot.lane.b32.xlu0 %v1892, 32
    %v1895 = vpop.permute.xlu0 %1894
    %v1897 = vadd.f32 %v1887, %v1895
    %v1898 = vtanh.pop %v1897
    %1900 = vrot.lane.b32.xlu0 %v1898, 64
    %v1901 = vpop.permute.xlu0 %1900
    %v1903 = vmul.f32 %v1886, %v1901
    %s1904 = scalar_lea.vmem [#allocation4], 672
    %v1905 = vld [vmem:[%s1904] sm:$0xff]
    %v1906 = vld [vmem:[%s1904 + $0x8] sm:$0xff]
    %v1907 = vld [vmem:[%s1904 + $0x10] sm:$0xff]
    %v1908 = vld [vmem:[%s1904 + $0x18] sm:$0xff]
    %1910 = vrot.lane.b32.xlu0 %v1903, 32
    %v1911 = vpop.permute.xlu0 %1910
    %v1912 = vsel %vm329, %v1911, 0
    %1914 = vmatpush.msra.mxu0 0.0
    %1915 = vmatpush.msra.mxu0 0.0
    %1916 = vmatpush.msra.mxu0 0.0
    %1917 = vmatpush.msra.mxu0 0.0
    %1918 = vmatpush.msra.mxu0 0.0
    %1919 = vmatpush.msra.mxu0 0.0
    %1920 = vmatpush.msra.mxu0 0.0
    %1921 = vmatpush.msra.mxu0 0.0
    %1922 = vmatpush.msra.mxu0 0.0
    %1923 = vmatpush.msra.mxu0 0.0
    %1924 = vmatpush.msra.mxu0 0.0
    %1925 = vmatpush.msra.mxu0 0.0
    %1926 = vmatpush.msra.mxu0 %v1908
    %1927 = vmatpush.msra.mxu0 %v1907
    %1928 = vmatpush.msra.mxu0 %v1906
    %1929 = vmatpush.msra.mxu0 %v1905
    %1930 = vmatmul.f32.gmra.mxu0 %v1912
    %v1931 = vpop.f32.mrf.mxu0
    %v1932 = vadd.f32 0.0, %v1931
    %1933 = vdwg.mxu0
    %v1934 = vadd.f32 %v1861, %v1932
    %v1935 = vld [vmem:[#allocation2 + $0xb0] sm:$0xff]
    %1936 = vmatpush.msra.mxu0 0.0
    %1937 = vmatpush.msra.mxu0 0.0
    %1938 = vmatpush.msra.mxu0 0.0
    %1939 = vmatpush.msra.mxu0 0.0
    %1940 = vmatpush.msra.mxu0 0.0
    %1941 = vmatpush.msra.mxu0 0.0
    %1942 = vmatpush.msra.mxu0 0.0
    %1943 = vmatpush.msra.mxu0 0.0
    %1944 = vmatpush.msra.mxu0 0.0
    %1945 = vmatpush.msra.mxu0 0.0
    %1946 = vmatpush.msra.mxu0 0.0
    %1947 = vmatpush.msra.mxu0 0.0
    %1948 = vmatpush.msra.mxu0 %v319
    %1949 = vmatpush.msra.mxu0 %v318
    %1950 = vmatpush.msra.mxu0 %v317
    %1951 = vmatpush.msra.mxu0 %v316
    %1952 = vmatmul.f32.gmra.mxu0 %v1912
    %v1953 = vpop.f32.mrf.mxu0
    %v1954 = vadd.f32 0.0, %v1953
    %1955 = vdwg.mxu0
    %v1956 = vadd.f32 %v1935, %v1954
    %v1957 = vtanh.pop %v1956
    %v1958 = vmul.f32 %v1957, %v322
    %v1959 = vadd.f32 %v1958, %v326
    %v1960 = vmul.f32 %v1959, %v1897
    %1962 = vrot.lane.b32.xlu0 %v1959, 64
    %v1963 = vpop.permute.xlu0 %1962
    %v1965 = vmul.f32 %v1959, %v1963
    %1967 = vrot.lane.b32.xlu0 %v1965, 32
    %v1968 = vpop.permute.xlu0 %1967
    %v1970 = vadd.f32 %v1960, %v1968
    %v1971 = vtanh.pop %v1970
    %1973 = vrot.lane.b32.xlu0 %v1971, 64
    %v1974 = vpop.permute.xlu0 %1973
    %v1976 = vmul.f32 %v1959, %v1974
    %s1977 = scalar_lea.vmem [#allocation4], 704
    %v1978 = vld [vmem:[%s1977] sm:$0xff]
    %v1979 = vld [vmem:[%s1977 + $0x8] sm:$0xff]
    %v1980 = vld [vmem:[%s1977 + $0x10] sm:$0xff]
    %v1981 = vld [vmem:[%s1977 + $0x18] sm:$0xff]
    %1983 = vrot.lane.b32.xlu0 %v1976, 32
    %v1984 = vpop.permute.xlu0 %1983
    %v1985 = vsel %vm329, %v1984, 0
    %1987 = vmatpush.msra.mxu0 0.0
    %1988 = vmatpush.msra.mxu0 0.0
    %1989 = vmatpush.msra.mxu0 0.0
    %1990 = vmatpush.msra.mxu0 0.0
    %1991 = vmatpush.msra.mxu0 0.0
    %1992 = vmatpush.msra.mxu0 0.0
    %1993 = vmatpush.msra.mxu0 0.0
    %1994 = vmatpush.msra.mxu0 0.0
    %1995 = vmatpush.msra.mxu0 0.0
    %1996 = vmatpush.msra.mxu0 0.0
    %1997 = vmatpush.msra.mxu0 0.0
    %1998 = vmatpush.msra.mxu0 0.0
    %1999 = vmatpush.msra.mxu0 %v1981
    %2000 = vmatpush.msra.mxu0 %v1980
    %2001 = vmatpush.msra.mxu0 %v1979
    %2002 = vmatpush.msra.mxu0 %v1978
    %2003 = vmatmul.f32.gmra.mxu0 %v1985
    %v2004 = vpop.f32.mrf.mxu0
    %v2005 = vadd.f32 0.0, %v2004
    %2006 = vdwg.mxu0
    %v2007 = vadd.f32 %v1934, %v2005
    %v2008 = vld [vmem:[#allocation2 + $0xb8] sm:$0xff]
    %2009 = vmatpush.msra.mxu0 0.0
    %2010 = vmatpush.msra.mxu0 0.0
    %2011 = vmatpush.msra.mxu0 0.0
    %2012 = vmatpush.msra.mxu0 0.0
    %2013 = vmatpush.msra.mxu0 0.0
    %2014 = vmatpush.msra.mxu0 0.0
    %2015 = vmatpush.msra.mxu0 0.0
    %2016 = vmatpush.msra.mxu0 0.0
    %2017 = vmatpush.msra.mxu0 0.0
    %2018 = vmatpush.msra.mxu0 0.0
    %2019 = vmatpush.msra.mxu0 0.0
    %2020 = vmatpush.msra.mxu0 0.0
    %2021 = vmatpush.msra.mxu0 %v319
    %2022 = vmatpush.msra.mxu0 %v318
    %2023 = vmatpush.msra.mxu0 %v317
    %2024 = vmatpush.msra.mxu0 %v316
    %2025 = vmatmul.f32.gmra.mxu0 %v1985
    %v2026 = vpop.f32.mrf.mxu0
    %v2027 = vadd.f32 0.0, %v2026
    %2028 = vdwg.mxu0
    %v2029 = vadd.f32 %v2008, %v2027
    %v2030 = vtanh.pop %v2029
    %v2031 = vmul.f32 %v2030, %v322
    %v2032 = vadd.f32 %v2031, %v326
    %v2033 = vmul.f32 %v2032, %v1970
    %2035 = vrot.lane.b32.xlu0 %v2032, 64
    %v2036 = vpop.permute.xlu0 %2035
    %v2038 = vmul.f32 %v2032, %v2036
    %2040 = vrot.lane.b32.xlu0 %v2038, 32
    %v2041 = vpop.permute.xlu0 %2040
    %v2043 = vadd.f32 %v2033, %v2041
    %v2044 = vtanh.pop %v2043
    %2046 = vrot.lane.b32.xlu0 %v2044, 64
    %v2047 = vpop.permute.xlu0 %2046
    %v2049 = vmul.f32 %v2032, %v2047
    %s2050 = scalar_lea.vmem [#allocation4], 736
    %v2051 = vld [vmem:[%s2050] sm:$0xff]
    %v2052 = vld [vmem:[%s2050 + $0x8] sm:$0xff]
    %v2053 = vld [vmem:[%s2050 + $0x10] sm:$0xff]
    %v2054 = vld [vmem:[%s2050 + $0x18] sm:$0xff]
    %2056 = vrot.lane.b32.xlu0 %v2049, 32
    %v2057 = vpop.permute.xlu0 %2056
    %v2058 = vsel %vm329, %v2057, 0
    %2060 = vmatpush.msra.mxu0 0.0
    %2061 = vmatpush.msra.mxu0 0.0
    %2062 = vmatpush.msra.mxu0 0.0
    %2063 = vmatpush.msra.mxu0 0.0
    %2064 = vmatpush.msra.mxu0 0.0
    %2065 = vmatpush.msra.mxu0 0.0
    %2066 = vmatpush.msra.mxu0 0.0
    %2067 = vmatpush.msra.mxu0 0.0
    %2068 = vmatpush.msra.mxu0 0.0
    %2069 = vmatpush.msra.mxu0 0.0
    %2070 = vmatpush.msra.mxu0 0.0
    %2071 = vmatpush.msra.mxu0 0.0
    %2072 = vmatpush.msra.mxu0 %v2054
    %2073 = vmatpush.msra.mxu0 %v2053
    %2074 = vmatpush.msra.mxu0 %v2052
    %2075 = vmatpush.msra.mxu0 %v2051
    %2076 = vmatmul.f32.gmra.mxu0 %v2058
    %v2077 = vpop.f32.mrf.mxu0
    %v2078 = vadd.f32 0.0, %v2077
    %2079 = vdwg.mxu0
    %v2080 = vadd.f32 %v2007, %v2078
    %v2081 = vld [vmem:[#allocation2 + $0xc0] sm:$0xff]
    %2082 = vmatpush.msra.mxu0 0.0
    %2083 = vmatpush.msra.mxu0 0.0
    %2084 = vmatpush.msra.mxu0 0.0
    %2085 = vmatpush.msra.mxu0 0.0
    %2086 = vmatpush.msra.mxu0 0.0
    %2087 = vmatpush.msra.mxu0 0.0
    %2088 = vmatpush.msra.mxu0 0.0
    %2089 = vmatpush.msra.mxu0 0.0
    %2090 = vmatpush.msra.mxu0 0.0
    %2091 = vmatpush.msra.mxu0 0.0
    %2092 = vmatpush.msra.mxu0 0.0
    %2093 = vmatpush.msra.mxu0 0.0
    %2094 = vmatpush.msra.mxu0 %v319
    %2095 = vmatpush.msra.mxu0 %v318
    %2096 = vmatpush.msra.mxu0 %v317
    %2097 = vmatpush.msra.mxu0 %v316
    %2098 = vmatmul.f32.gmra.mxu0 %v2058
    %v2099 = vpop.f32.mrf.mxu0
    %v2100 = vadd.f32 0.0, %v2099
    %2101 = vdwg.mxu0
    %v2102 = vadd.f32 %v2081, %v2100
    %v2103 = vtanh.pop %v2102
    %v2104 = vmul.f32 %v2103, %v322
    %v2105 = vadd.f32 %v2104, %v326
    %v2106 = vmul.f32 %v2105, %v2043
    %2108 = vrot.lane.b32.xlu0 %v2105, 64
    %v2109 = vpop.permute.xlu0 %2108
    %v2111 = vmul.f32 %v2105, %v2109
    %2113 = vrot.lane.b32.xlu0 %v2111, 32
    %v2114 = vpop.permute.xlu0 %2113
    %v2116 = vadd.f32 %v2106, %v2114
    %v2117 = vtanh.pop %v2116
    %2119 = vrot.lane.b32.xlu0 %v2117, 64
    %v2120 = vpop.permute.xlu0 %2119
    %v2122 = vmul.f32 %v2105, %v2120
    %s2123 = scalar_lea.vmem [#allocation4], 768
    %v2124 = vld [vmem:[%s2123] sm:$0xff]
    %v2125 = vld [vmem:[%s2123 + $0x8] sm:$0xff]
    %v2126 = vld [vmem:[%s2123 + $0x10] sm:$0xff]
    %v2127 = vld [vmem:[%s2123 + $0x18] sm:$0xff]
    %2129 = vrot.lane.b32.xlu0 %v2122, 32
    %v2130 = vpop.permute.xlu0 %2129
    %v2131 = vsel %vm329, %v2130, 0
    %2133 = vmatpush.msra.mxu0 0.0
    %2134 = vmatpush.msra.mxu0 0.0
    %2135 = vmatpush.msra.mxu0 0.0
    %2136 = vmatpush.msra.mxu0 0.0
    %2137 = vmatpush.msra.mxu0 0.0
    %2138 = vmatpush.msra.mxu0 0.0
    %2139 = vmatpush.msra.mxu0 0.0
    %2140 = vmatpush.msra.mxu0 0.0
    %2141 = vmatpush.msra.mxu0 0.0
    %2142 = vmatpush.msra.mxu0 0.0
    %2143 = vmatpush.msra.mxu0 0.0
    %2144 = vmatpush.msra.mxu0 0.0
    %2145 = vmatpush.msra.mxu0 %v2127
    %2146 = vmatpush.msra.mxu0 %v2126
    %2147 = vmatpush.msra.mxu0 %v2125
    %2148 = vmatpush.msra.mxu0 %v2124
    %2149 = vmatmul.f32.gmra.mxu0 %v2131
    %v2150 = vpop.f32.mrf.mxu0
    %v2151 = vadd.f32 0.0, %v2150
    %2152 = vdwg.mxu0
    %v2153 = vadd.f32 %v2080, %v2151
    %v2154 = vld [vmem:[#allocation2 + $0xc8] sm:$0xff]
    %2155 = vmatpush.msra.mxu0 0.0
    %2156 = vmatpush.msra.mxu0 0.0
    %2157 = vmatpush.msra.mxu0 0.0
    %2158 = vmatpush.msra.mxu0 0.0
    %2159 = vmatpush.msra.mxu0 0.0
    %2160 = vmatpush.msra.mxu0 0.0
    %2161 = vmatpush.msra.mxu0 0.0
    %2162 = vmatpush.msra.mxu0 0.0
    %2163 = vmatpush.msra.mxu0 0.0
    %2164 = vmatpush.msra.mxu0 0.0
    %2165 = vmatpush.msra.mxu0 0.0
    %2166 = vmatpush.msra.mxu0 0.0
    %2167 = vmatpush.msra.mxu0 %v319
    %2168 = vmatpush.msra.mxu0 %v318
    %2169 = vmatpush.msra.mxu0 %v317
    %2170 = vmatpush.msra.mxu0 %v316
    %2171 = vmatmul.f32.gmra.mxu0 %v2131
    %v2172 = vpop.f32.mrf.mxu0
    %v2173 = vadd.f32 0.0, %v2172
    %2174 = vdwg.mxu0
    %v2175 = vadd.f32 %v2154, %v2173
    %v2176 = vtanh.pop %v2175
    %v2177 = vmul.f32 %v2176, %v322
    %v2178 = vadd.f32 %v2177, %v326
    %v2179 = vmul.f32 %v2178, %v2116
    %2181 = vrot.lane.b32.xlu0 %v2178, 64
    %v2182 = vpop.permute.xlu0 %2181
    %v2184 = vmul.f32 %v2178, %v2182
    %2186 = vrot.lane.b32.xlu0 %v2184, 32
    %v2187 = vpop.permute.xlu0 %2186
    %v2189 = vadd.f32 %v2179, %v2187
    %v2190 = vtanh.pop %v2189
    %2192 = vrot.lane.b32.xlu0 %v2190, 64
    %v2193 = vpop.permute.xlu0 %2192
    %v2195 = vmul.f32 %v2178, %v2193
    %s2196 = scalar_lea.vmem [#allocation4], 800
    %v2197 = vld [vmem:[%s2196] sm:$0xff]
    %v2198 = vld [vmem:[%s2196 + $0x8] sm:$0xff]
    %v2199 = vld [vmem:[%s2196 + $0x10] sm:$0xff]
    %v2200 = vld [vmem:[%s2196 + $0x18] sm:$0xff]
    %2202 = vrot.lane.b32.xlu0 %v2195, 32
    %v2203 = vpop.permute.xlu0 %2202
    %v2204 = vsel %vm329, %v2203, 0
    %2206 = vmatpush.msra.mxu0 0.0
    %2207 = vmatpush.msra.mxu0 0.0
    %2208 = vmatpush.msra.mxu0 0.0
    %2209 = vmatpush.msra.mxu0 0.0
    %2210 = vmatpush.msra.mxu0 0.0
    %2211 = vmatpush.msra.mxu0 0.0
    %2212 = vmatpush.msra.mxu0 0.0
    %2213 = vmatpush.msra.mxu0 0.0
    %2214 = vmatpush.msra.mxu0 0.0
    %2215 = vmatpush.msra.mxu0 0.0
    %2216 = vmatpush.msra.mxu0 0.0
    %2217 = vmatpush.msra.mxu0 0.0
    %2218 = vmatpush.msra.mxu0 %v2200
    %2219 = vmatpush.msra.mxu0 %v2199
    %2220 = vmatpush.msra.mxu0 %v2198
    %2221 = vmatpush.msra.mxu0 %v2197
    %2222 = vmatmul.f32.gmra.mxu0 %v2204
    %v2223 = vpop.f32.mrf.mxu0
    %v2224 = vadd.f32 0.0, %v2223
    %2225 = vdwg.mxu0
    %v2226 = vadd.f32 %v2153, %v2224
    %v2227 = vld [vmem:[#allocation2 + $0xd0] sm:$0xff]
    %2228 = vmatpush.msra.mxu0 0.0
    %2229 = vmatpush.msra.mxu0 0.0
    %2230 = vmatpush.msra.mxu0 0.0
    %2231 = vmatpush.msra.mxu0 0.0
    %2232 = vmatpush.msra.mxu0 0.0
    %2233 = vmatpush.msra.mxu0 0.0
    %2234 = vmatpush.msra.mxu0 0.0
    %2235 = vmatpush.msra.mxu0 0.0
    %2236 = vmatpush.msra.mxu0 0.0
    %2237 = vmatpush.msra.mxu0 0.0
    %2238 = vmatpush.msra.mxu0 0.0
    %2239 = vmatpush.msra.mxu0 0.0
    %2240 = vmatpush.msra.mxu0 %v319
    %2241 = vmatpush.msra.mxu0 %v318
    %2242 = vmatpush.msra.mxu0 %v317
    %2243 = vmatpush.msra.mxu0 %v316
    %2244 = vmatmul.f32.gmra.mxu0 %v2204
    %v2245 = vpop.f32.mrf.mxu0
    %v2246 = vadd.f32 0.0, %v2245
    %2247 = vdwg.mxu0
    %v2248 = vadd.f32 %v2227, %v2246
    %v2249 = vtanh.pop %v2248
    %v2250 = vmul.f32 %v2249, %v322
    %v2251 = vadd.f32 %v2250, %v326
    %v2252 = vmul.f32 %v2251, %v2189
    %2254 = vrot.lane.b32.xlu0 %v2251, 64
    %v2255 = vpop.permute.xlu0 %2254
    %v2257 = vmul.f32 %v2251, %v2255
    %2259 = vrot.lane.b32.xlu0 %v2257, 32
    %v2260 = vpop.permute.xlu0 %2259
    %v2262 = vadd.f32 %v2252, %v2260
    %v2263 = vtanh.pop %v2262
    %2265 = vrot.lane.b32.xlu0 %v2263, 64
    %v2266 = vpop.permute.xlu0 %2265
    %v2268 = vmul.f32 %v2251, %v2266
    %s2269 = scalar_lea.vmem [#allocation4], 832
    %v2270 = vld [vmem:[%s2269] sm:$0xff]
    %v2271 = vld [vmem:[%s2269 + $0x8] sm:$0xff]
    %v2272 = vld [vmem:[%s2269 + $0x10] sm:$0xff]
    %v2273 = vld [vmem:[%s2269 + $0x18] sm:$0xff]
    %2275 = vrot.lane.b32.xlu0 %v2268, 32
    %v2276 = vpop.permute.xlu0 %2275
    %v2277 = vsel %vm329, %v2276, 0
    %2279 = vmatpush.msra.mxu0 0.0
    %2280 = vmatpush.msra.mxu0 0.0
    %2281 = vmatpush.msra.mxu0 0.0
    %2282 = vmatpush.msra.mxu0 0.0
    %2283 = vmatpush.msra.mxu0 0.0
    %2284 = vmatpush.msra.mxu0 0.0
    %2285 = vmatpush.msra.mxu0 0.0
    %2286 = vmatpush.msra.mxu0 0.0
    %2287 = vmatpush.msra.mxu0 0.0
    %2288 = vmatpush.msra.mxu0 0.0
    %2289 = vmatpush.msra.mxu0 0.0
    %2290 = vmatpush.msra.mxu0 0.0
    %2291 = vmatpush.msra.mxu0 %v2273
    %2292 = vmatpush.msra.mxu0 %v2272
    %2293 = vmatpush.msra.mxu0 %v2271
    %2294 = vmatpush.msra.mxu0 %v2270
    %2295 = vmatmul.f32.gmra.mxu0 %v2277
    %v2296 = vpop.f32.mrf.mxu0
    %v2297 = vadd.f32 0.0, %v2296
    %2298 = vdwg.mxu0
    %v2299 = vadd.f32 %v2226, %v2297
    %v2300 = vld [vmem:[#allocation2 + $0xd8] sm:$0xff]
    %2301 = vmatpush.msra.mxu0 0.0
    %2302 = vmatpush.msra.mxu0 0.0
    %2303 = vmatpush.msra.mxu0 0.0
    %2304 = vmatpush.msra.mxu0 0.0
    %2305 = vmatpush.msra.mxu0 0.0
    %2306 = vmatpush.msra.mxu0 0.0
    %2307 = vmatpush.msra.mxu0 0.0
    %2308 = vmatpush.msra.mxu0 0.0
    %2309 = vmatpush.msra.mxu0 0.0
    %2310 = vmatpush.msra.mxu0 0.0
    %2311 = vmatpush.msra.mxu0 0.0
    %2312 = vmatpush.msra.mxu0 0.0
    %2313 = vmatpush.msra.mxu0 %v319
    %2314 = vmatpush.msra.mxu0 %v318
    %2315 = vmatpush.msra.mxu0 %v317
    %2316 = vmatpush.msra.mxu0 %v316
    %2317 = vmatmul.f32.gmra.mxu0 %v2277
    %v2318 = vpop.f32.mrf.mxu0
    %v2319 = vadd.f32 0.0, %v2318
    %2320 = vdwg.mxu0
    %v2321 = vadd.f32 %v2300, %v2319
    %v2322 = vtanh.pop %v2321
    %v2323 = vmul.f32 %v2322, %v322
    %v2324 = vadd.f32 %v2323, %v326
    %v2325 = vmul.f32 %v2324, %v2262
    %2327 = vrot.lane.b32.xlu0 %v2324, 64
    %v2328 = vpop.permute.xlu0 %2327
    %v2330 = vmul.f32 %v2324, %v2328
    %2332 = vrot.lane.b32.xlu0 %v2330, 32
    %v2333 = vpop.permute.xlu0 %2332
    %v2335 = vadd.f32 %v2325, %v2333
    %v2336 = vtanh.pop %v2335
    %2338 = vrot.lane.b32.xlu0 %v2336, 64
    %v2339 = vpop.permute.xlu0 %2338
    %v2341 = vmul.f32 %v2324, %v2339
    %s2342 = scalar_lea.vmem [#allocation4], 864
    %v2343 = vld [vmem:[%s2342] sm:$0xff]
    %v2344 = vld [vmem:[%s2342 + $0x8] sm:$0xff]
    %v2345 = vld [vmem:[%s2342 + $0x10] sm:$0xff]
    %v2346 = vld [vmem:[%s2342 + $0x18] sm:$0xff]
    %2348 = vrot.lane.b32.xlu0 %v2341, 32
    %v2349 = vpop.permute.xlu0 %2348
    %v2350 = vsel %vm329, %v2349, 0
    %2352 = vmatpush.msra.mxu0 0.0
    %2353 = vmatpush.msra.mxu0 0.0
    %2354 = vmatpush.msra.mxu0 0.0
    %2355 = vmatpush.msra.mxu0 0.0
    %2356 = vmatpush.msra.mxu0 0.0
    %2357 = vmatpush.msra.mxu0 0.0
    %2358 = vmatpush.msra.mxu0 0.0
    %2359 = vmatpush.msra.mxu0 0.0
    %2360 = vmatpush.msra.mxu0 0.0
    %2361 = vmatpush.msra.mxu0 0.0
    %2362 = vmatpush.msra.mxu0 0.0
    %2363 = vmatpush.msra.mxu0 0.0
    %2364 = vmatpush.msra.mxu0 %v2346
    %2365 = vmatpush.msra.mxu0 %v2345
    %2366 = vmatpush.msra.mxu0 %v2344
    %2367 = vmatpush.msra.mxu0 %v2343
    %2368 = vmatmul.f32.gmra.mxu0 %v2350
    %v2369 = vpop.f32.mrf.mxu0
    %v2370 = vadd.f32 0.0, %v2369
    %2371 = vdwg.mxu0
    %v2372 = vadd.f32 %v2299, %v2370
    %v2373 = vld [vmem:[#allocation2 + $0xe0] sm:$0xff]
    %2374 = vmatpush.msra.mxu0 0.0
    %2375 = vmatpush.msra.mxu0 0.0
    %2376 = vmatpush.msra.mxu0 0.0
    %2377 = vmatpush.msra.mxu0 0.0
    %2378 = vmatpush.msra.mxu0 0.0
    %2379 = vmatpush.msra.mxu0 0.0
    %2380 = vmatpush.msra.mxu0 0.0
    %2381 = vmatpush.msra.mxu0 0.0
    %2382 = vmatpush.msra.mxu0 0.0
    %2383 = vmatpush.msra.mxu0 0.0
    %2384 = vmatpush.msra.mxu0 0.0
    %2385 = vmatpush.msra.mxu0 0.0
    %2386 = vmatpush.msra.mxu0 %v319
    %2387 = vmatpush.msra.mxu0 %v318
    %2388 = vmatpush.msra.mxu0 %v317
    %2389 = vmatpush.msra.mxu0 %v316
    %2390 = vmatmul.f32.gmra.mxu0 %v2350
    %v2391 = vpop.f32.mrf.mxu0
    %v2392 = vadd.f32 0.0, %v2391
    %2393 = vdwg.mxu0
    %v2394 = vadd.f32 %v2373, %v2392
    %v2395 = vtanh.pop %v2394
    %v2396 = vmul.f32 %v2395, %v322
    %v2397 = vadd.f32 %v2396, %v326
    %v2398 = vmul.f32 %v2397, %v2335
    %2400 = vrot.lane.b32.xlu0 %v2397, 64
    %v2401 = vpop.permute.xlu0 %2400
    %v2403 = vmul.f32 %v2397, %v2401
    %2405 = vrot.lane.b32.xlu0 %v2403, 32
    %v2406 = vpop.permute.xlu0 %2405
    %v2408 = vadd.f32 %v2398, %v2406
    %v2409 = vtanh.pop %v2408
    %2411 = vrot.lane.b32.xlu0 %v2409, 64
    %v2412 = vpop.permute.xlu0 %2411
    %v2414 = vmul.f32 %v2397, %v2412
    %s2415 = scalar_lea.vmem [#allocation4], 896
    %v2416 = vld [vmem:[%s2415] sm:$0xff]
    %v2417 = vld [vmem:[%s2415 + $0x8] sm:$0xff]
    %v2418 = vld [vmem:[%s2415 + $0x10] sm:$0xff]
    %v2419 = vld [vmem:[%s2415 + $0x18] sm:$0xff]
    %2421 = vrot.lane.b32.xlu0 %v2414, 32
    %v2422 = vpop.permute.xlu0 %2421
    %v2423 = vsel %vm329, %v2422, 0
    %2425 = vmatpush.msra.mxu0 0.0
    %2426 = vmatpush.msra.mxu0 0.0
    %2427 = vmatpush.msra.mxu0 0.0
    %2428 = vmatpush.msra.mxu0 0.0
    %2429 = vmatpush.msra.mxu0 0.0
    %2430 = vmatpush.msra.mxu0 0.0
    %2431 = vmatpush.msra.mxu0 0.0
    %2432 = vmatpush.msra.mxu0 0.0
    %2433 = vmatpush.msra.mxu0 0.0
    %2434 = vmatpush.msra.mxu0 0.0
    %2435 = vmatpush.msra.mxu0 0.0
    %2436 = vmatpush.msra.mxu0 0.0
    %2437 = vmatpush.msra.mxu0 %v2419
    %2438 = vmatpush.msra.mxu0 %v2418
    %2439 = vmatpush.msra.mxu0 %v2417
    %2440 = vmatpush.msra.mxu0 %v2416
    %2441 = vmatmul.f32.gmra.mxu0 %v2423
    %v2442 = vpop.f32.mrf.mxu0
    %v2443 = vadd.f32 0.0, %v2442
    %2444 = vdwg.mxu0
    %v2445 = vadd.f32 %v2372, %v2443
    %v2446 = vld [vmem:[#allocation2 + $0xe8] sm:$0xff]
    %2447 = vmatpush.msra.mxu0 0.0
    %2448 = vmatpush.msra.mxu0 0.0
    %2449 = vmatpush.msra.mxu0 0.0
    %2450 = vmatpush.msra.mxu0 0.0
    %2451 = vmatpush.msra.mxu0 0.0
    %2452 = vmatpush.msra.mxu0 0.0
    %2453 = vmatpush.msra.mxu0 0.0
    %2454 = vmatpush.msra.mxu0 0.0
    %2455 = vmatpush.msra.mxu0 0.0
    %2456 = vmatpush.msra.mxu0 0.0
    %2457 = vmatpush.msra.mxu0 0.0
    %2458 = vmatpush.msra.mxu0 0.0
    %2459 = vmatpush.msra.mxu0 %v319
    %2460 = vmatpush.msra.mxu0 %v318
    %2461 = vmatpush.msra.mxu0 %v317
    %2462 = vmatpush.msra.mxu0 %v316
    %2463 = vmatmul.f32.gmra.mxu0 %v2423
    %v2464 = vpop.f32.mrf.mxu0
    %v2465 = vadd.f32 0.0, %v2464
    %2466 = vdwg.mxu0
    %v2467 = vadd.f32 %v2446, %v2465
    %v2468 = vtanh.pop %v2467
    %v2469 = vmul.f32 %v2468, %v322
    %v2470 = vadd.f32 %v2469, %v326
    %v2471 = vmul.f32 %v2470, %v2408
    %2473 = vrot.lane.b32.xlu0 %v2470, 64
    %v2474 = vpop.permute.xlu0 %2473
    %v2476 = vmul.f32 %v2470, %v2474
    %2478 = vrot.lane.b32.xlu0 %v2476, 32
    %v2479 = vpop.permute.xlu0 %2478
    %v2481 = vadd.f32 %v2471, %v2479
    %v2482 = vtanh.pop %v2481
    %2484 = vrot.lane.b32.xlu0 %v2482, 64
    %v2485 = vpop.permute.xlu0 %2484
    %v2487 = vmul.f32 %v2470, %v2485
    %s2488 = scalar_lea.vmem [#allocation4], 928
    %v2489 = vld [vmem:[%s2488] sm:$0xff]
    %v2490 = vld [vmem:[%s2488 + $0x8] sm:$0xff]
    %v2491 = vld [vmem:[%s2488 + $0x10] sm:$0xff]
    %v2492 = vld [vmem:[%s2488 + $0x18] sm:$0xff]
    %2494 = vrot.lane.b32.xlu0 %v2487, 32
    %v2495 = vpop.permute.xlu0 %2494
    %v2496 = vsel %vm329, %v2495, 0
    %2498 = vmatpush.msra.mxu0 0.0
    %2499 = vmatpush.msra.mxu0 0.0
    %2500 = vmatpush.msra.mxu0 0.0
    %2501 = vmatpush.msra.mxu0 0.0
    %2502 = vmatpush.msra.mxu0 0.0
    %2503 = vmatpush.msra.mxu0 0.0
    %2504 = vmatpush.msra.mxu0 0.0
    %2505 = vmatpush.msra.mxu0 0.0
    %2506 = vmatpush.msra.mxu0 0.0
    %2507 = vmatpush.msra.mxu0 0.0
    %2508 = vmatpush.msra.mxu0 0.0
    %2509 = vmatpush.msra.mxu0 0.0
    %2510 = vmatpush.msra.mxu0 %v2492
    %2511 = vmatpush.msra.mxu0 %v2491
    %2512 = vmatpush.msra.mxu0 %v2490
    %2513 = vmatpush.msra.mxu0 %v2489
    %2514 = vmatmul.f32.gmra.mxu0 %v2496
    %v2515 = vpop.f32.mrf.mxu0
    %v2516 = vadd.f32 0.0, %v2515
    %2517 = vdwg.mxu0
    %v2518 = vadd.f32 %v2445, %v2516
    %v2519 = vld [vmem:[%s7] sm:$0x1]
    %v2521 = vperm.slane %v2519, 0
    %v2523 = vadd.f32 %v2518, %v2521
    %v2524 = vmax.f32 %v2523, 0.0
    %v2525 = vld [vmem:[%s8] sm:$0xff]
    %v2526 = vld [vmem:[%s8 + $0x8] sm:$0xff]
    %v2527 = vld [vmem:[%s8 + $0x10] sm:$0xff]
    %v2528 = vld [vmem:[%s8 + $0x18] sm:$0xff]
    %v2529 = vld [vmem:[#allocation3] sm:$0x1]
    %v2531 = vperm.slane %v2529, 0
    %v2534 = vsel %vm329, %v2524, 0
    %2536 = vmatpush.msra.mxu0 0.0
    %2537 = vmatpush.msra.mxu0 0.0
    %2538 = vmatpush.msra.mxu0 0.0
    %2539 = vmatpush.msra.mxu0 0.0
    %2540 = vmatpush.msra.mxu0 0.0
    %2541 = vmatpush.msra.mxu0 0.0
    %2542 = vmatpush.msra.mxu0 0.0
    %2543 = vmatpush.msra.mxu0 0.0
    %2544 = vmatpush.msra.mxu0 0.0
    %2545 = vmatpush.msra.mxu0 0.0
    %2546 = vmatpush.msra.mxu0 0.0
    %2547 = vmatpush.msra.mxu0 0.0
    %2548 = vmatpush.msra.mxu0 %v2528
    %2549 = vmatpush.msra.mxu0 %v2527
    %2550 = vmatpush.msra.mxu0 %v2526
    %2551 = vmatpush.msra.mxu0 %v2525
    %2552 = vmatmul.f32.gmra.mxu0 %v2534
    %v2553 = vpop.f32.mrf.mxu0
    %v2554 = vadd.f32 %v2531, %v2553
    %2555 = vdwg.mxu0
    %vm2556 = vcmask 7168
    %2557 = vst.msk [vmem:[%s10] sm:$0xff] %vm2556, %v2554
    // Predicated region
    $region46: #{tpu_custom_call.1} parent=1 // pred_check
      _
    $region47: #{tpu_custom_call.1} parent=1 // pred_check_branch
      %2559 = sbr.rel (0) target = $region49
    $region48: #{tpu_custom_call.1} parent=1 // pred_region
      _
    $region49: #{tpu_custom_call.1} parent=1 // pred_fallthru
      _
    // Predicated region
    $region50: #{tpu_custom_call.1} parent=1 // pred_check
      _
    $region51: #{tpu_custom_call.1} parent=1 // pred_check_branch
      %2561 = sbr.rel (0) target = $region53
    $region52: #{tpu_custom_call.1} parent=1 // pred_region
      _
    $region53: #{tpu_custom_call.1} parent=1 // pred_fallthru
      _
    %2562 = vsyncpa [#allocation5], 1

</llo_original>
